<compile_context>
chip_gen: v7x
topology: tpu7x:2x2x1
jax: 0.10.0
libtpu: 0.0.40
codegen_flags: <defaults>
</compile_context>

<pallas_src>
import jax
import jax.numpy as jnp
from jax.experimental import pallas as pl
from jax.experimental.pallas import tpu as pltpu

H = 32          # hidden_size
MULT = 4
HM = H * MULT   # 128


def _cross_attention_kernel(op_ref, feats_ref, rel_ref,
                            wq_ref, wkv_ref, wa1_ref, wp1_ref, wp2_ref, wa2_ref,
                            bias_ref, out_ref):
    N, tb, _ = feats_ref.shape

    # biases (one per sublane row of the bias slab; all lane slices start at lane 0)
    bq = bias_ref[0:1, 0:H]
    bkv = bias_ref[1:2, 0:2 * H]
    bp1 = bias_ref[2:3, 0:HM]
    bp2 = bias_ref[3:4, 0:H]
    ba1 = bias_ref[4:5, 0:HM]
    ba2 = bias_ref[5:6, 0:H]

    op = op_ref[...]                                     # (tb, H)
    feats = feats_ref[...].reshape(N * tb, H)            # (N*tb, H)  neighbour-major
    rel = rel_ref[...].reshape(N * tb, 8)                # (N*tb, 8)  rel_pos padded 3->8

    # query projection once per batch block, replicated across neighbours
    q = jnp.dot(op, wq_ref[...], preferred_element_type=jnp.float32) + bq        # (tb, H)
    qN = jnp.broadcast_to(q, (N, tb, H)).reshape(N * tb, H)                       # (N*tb, H)

    # pos_mlp: both layers on the MXU, all neighbours at once
    ph = jnp.dot(rel, wp1_ref[...], preferred_element_type=jnp.float32) + bp1     # (N*tb, HM)
    ph = jnp.maximum(ph, 0.0)
    pos = jnp.dot(ph, wp2_ref[...], preferred_element_type=jnp.float32) + bp2     # (N*tb, H)

    # fused key/value projection
    kv = jnp.dot(feats, wkv_ref[...], preferred_element_type=jnp.float32) + bkv   # (N*tb, 2H)
    k = kv[:, 0:H]
    v = kv[:, H:2 * H] + pos

    # attention_mlp(query - key + position_embedding)
    a_in = qN - k + pos
    ah = jnp.dot(a_in, wa1_ref[...], preferred_element_type=jnp.float32) + ba1    # (N*tb, HM)
    ah = jnp.maximum(ah, 0.0)
    logits = jnp.dot(ah, wa2_ref[...], preferred_element_type=jnp.float32) + ba2  # (N*tb, H)

    # two-pass softmax over the neighbour axis (leading dim of the (N, tb, H) view)
    logits3 = logits.reshape(N, tb, H)
    v3 = v.reshape(N, tb, H)
    m = jnp.max(logits3, axis=0)                          # (tb, H)
    p = jnp.exp(logits3 - m[None, :, :])                  # (N, tb, H)
    l = jnp.sum(p, axis=0)                                # (tb, H)
    acc = jnp.sum(p * v3, axis=0)                         # (tb, H)

    out_ref[...] = acc / l


def _round_up(x, m):
    return ((x + m - 1) // m) * m


def _pick_block_b(B, N):
    # ~8K neighbour-rows of matmul work per grid step (feats block ~1 MiB; total
    # double-buffered inputs + (rows, 128) intermediates stay well under the
    # 24-32 MiB budget that fits every generation, incl. v7x's 64 MiB/TC).
    target_rows = 8192
    tb = max(8, (max(1, target_rows // max(N, 1)) // 8) * 8)
    if B >= 16:
        # guarantee >= 2 batch blocks so ("parallel",) can shard across 2 TCs (v7x)
        tb = min(tb, _round_up(pl.cdiv(B, 2), 8))
    if tb >= B:
        tb = _round_up(B, 8)
    return tb


def cross_attention(op, feats, rel_pos, params, *, block_b=None):
    B, N, _ = feats.shape
    op = op.astype(jnp.float32)
    feats = feats.astype(jnp.float32)
    rel_pos = rel_pos.astype(jnp.float32)

    tb = _pick_block_b(B, N) if block_b is None else block_b
    num_blocks = pl.cdiv(B, tb)
    b_pad = num_blocks * tb
    if b_pad != B:
        # zero-pad the batch tail; padded rows compute harmless values and are sliced off
        op = jnp.pad(op, ((0, b_pad - B), (0, 0)))
        feats = jnp.pad(feats, ((0, b_pad - B), (0, 0), (0, 0)))
        rel_pos = jnp.pad(rel_pos, ((0, b_pad - B), (0, 0), (0, 0)))

    # ---- host-side layout plumbing (negligible cost) ----
    # neighbour-major layout: (N, b_pad, .) so the kernel block flattens to (N*tb, .)
    feats_t = jnp.transpose(feats, (1, 0, 2))                     # (N, b_pad, H)
    rel8 = jnp.pad(rel_pos, ((0, 0), (0, 0), (0, 5)))             # pad 3 -> 8 for the MXU
    rel_t = jnp.transpose(rel8, (1, 0, 2))                        # (N, b_pad, 8)

    # weights (each passed as its own constant-index spec; fetched once)
    wq = params["wq"]                                             # (H, H)
    wkv = jnp.concatenate([params["wk"], params["wv"]], axis=1)   # (H, 2H)
    wa1 = params["wa1"]                                           # (H, HM)
    wp1p = jnp.zeros((8, HM), jnp.float32).at[0:3, :].set(params["wp1"])   # (8, HM)
    wp2 = params["wp2"]                                           # (HM, H)
    wa2 = params["wa2"]                                           # (HM, H)

    bias = jnp.zeros((8, HM), jnp.float32)
    bias = bias.at[0, :H].set(params["bq"].reshape(-1))
    bias = bias.at[1, :2 * H].set(
        jnp.concatenate([params["bk"].reshape(-1), params["bv"].reshape(-1)]))
    bias = bias.at[2, :HM].set(params["bp1"].reshape(-1))
    bias = bias.at[3, :H].set(params["bp2"].reshape(-1))
    bias = bias.at[4, :HM].set(params["ba1"].reshape(-1))
    bias = bias.at[5, :H].set(params["ba2"].reshape(-1))

    out = pl.pallas_call(
        _cross_attention_kernel,
        out_shape=jax.ShapeDtypeStruct((b_pad, H), jnp.float32),
        grid=(num_blocks,),
        in_specs=[
            pl.BlockSpec((tb, H), lambda b: (b, 0)),            # op
            pl.BlockSpec((N, tb, H), lambda b: (0, b, 0)),      # feats (neighbour-major)
            pl.BlockSpec((N, tb, 8), lambda b: (0, b, 0)),      # rel_pos (padded to 8)
            pl.BlockSpec((H, H), lambda b: (0, 0)),             # wq
            pl.BlockSpec((H, 2 * H), lambda b: (0, 0)),         # wkv (fused key/value)
            pl.BlockSpec((H, HM), lambda b: (0, 0)),            # wa1
            pl.BlockSpec((8, HM), lambda b: (0, 0)),            # wp1 (padded)
            pl.BlockSpec((HM, H), lambda b: (0, 0)),            # wp2
            pl.BlockSpec((HM, H), lambda b: (0, 0)),            # wa2
            pl.BlockSpec((8, HM), lambda b: (0, 0)),            # bias slab
        ],
        out_specs=pl.BlockSpec((tb, H), lambda b: (b, 0)),
        compiler_params=pltpu.CompilerParams(
            dimension_semantics=("parallel",),       # independent batch blocks (2 TCs on v7x)
            vmem_limit_bytes=48 * 1024 * 1024,
        ),
    )(op, feats_t, rel_t, wq, wkv, wa1, wp1p, wp2, wa2, bias)
    return out[:B]


def _linear_init(key, fan_in, fan_out):
    # deterministic torch-like init: U(-1/sqrt(fan_in), 1/sqrt(fan_in))
    kw, kb = jax.random.split(key)
    bound = 1.0 / (fan_in ** 0.5)
    w = jax.random.uniform(kw, (fan_in, fan_out), jnp.float32, -bound, bound)
    b = jax.random.uniform(kb, (1, fan_out), jnp.float32, -bound, bound)
    return w, b


def init_params(key):
    ks = jax.random.split(key, 7)
    p = {}
    p["wq"], p["bq"] = _linear_init(ks[0], H, H)
    p["wk"], p["bk"] = _linear_init(ks[1], H, H)
    p["wv"], p["bv"] = _linear_init(ks[2], H, H)
    p["wp1"], p["bp1"] = _linear_init(ks[3], 3, HM)
    p["wp2"], p["bp2"] = _linear_init(ks[4], HM, H)
    p["wa1"], p["ba1"] = _linear_init(ks[5], H, HM)
    p["wa2"], p["ba2"] = _linear_init(ks[6], HM, H)
    return p


def reference_forward(op, feats, rel_pos, p):
    pos = jnp.maximum(rel_pos @ p["wp1"] + p["bp1"], 0.0) @ p["wp2"] + p["bp2"]  # (B,N,H)
    q = (op @ p["wq"] + p["bq"])[:, None, :]                                     # (B,1,H)
    k = feats @ p["wk"] + p["bk"]                                                # (B,N,H)
    v = feats @ p["wv"] + p["bv"] + pos
    a_in = q - k + pos
    logits = jnp.maximum(a_in @ p["wa1"] + p["ba1"], 0.0) @ p["wa2"] + p["ba2"]
    attn = jax.nn.softmax(logits, axis=-2)
    return jnp.sum(attn * v, axis=1)                                             # (B,H)


if __name__ == "__main__":
    jax.config.update("jax_default_matmul_precision", "highest")

    key = jax.random.PRNGKey(0)
    kp, k1, k2, k3 = jax.random.split(key, 4)

    B, N = 2, 8
    params = init_params(kp)
    op = jax.random.normal(k1, (B, H), jnp.float32)
    feats = jax.random.normal(k2, (B, N, H), jnp.float32)
    rel_pos = jax.random.normal(k3, (B, N, 3), jnp.float32)

    out = cross_attention(op, feats, rel_pos, params)
    out = jax.block_until_ready(out)

    ref = reference_forward(op, feats, rel_pos, params)
    assert out.shape == (B, H)
    err = float(jnp.max(jnp.abs(out - ref)))
    assert jnp.allclose(out, ref, atol=2e-4, rtol=2e-4), err
    print("KERNEL_OK")
</pallas_src>

<mosaic_0001>
module attributes {stable_mosaic.version = 11 : i64} {
  func.func @_cross_attention_kernel(%arg0: i32, %arg1: memref<8x32xf32, #tpu.memory_space<vmem>>, %arg2: memref<8x8x32xf32, #tpu.memory_space<vmem>>, %arg3: memref<8x8x8xf32, #tpu.memory_space<vmem>>, %arg4: memref<32x32xf32, #tpu.memory_space<vmem>>, %arg5: memref<32x64xf32, #tpu.memory_space<vmem>>, %arg6: memref<32x128xf32, #tpu.memory_space<vmem>>, %arg7: memref<8x128xf32, #tpu.memory_space<vmem>>, %arg8: memref<128x32xf32, #tpu.memory_space<vmem>>, %arg9: memref<128x32xf32, #tpu.memory_space<vmem>>, %arg10: memref<8x128xf32, #tpu.memory_space<vmem>>, %arg11: memref<8x32xf32, #tpu.memory_space<vmem>>) attributes {dimension_semantics = [#tpu.dimension_semantics<parallel>], iteration_bounds = array<i64: 1>, scalar_prefetch = 0 : i64, scratch_operands = 0 : i64, tpu.core_type = #tpu.core_type<tc>, window_params = [{transform_indices = @transform_0, window_bounds = array<i64: 8, 32>}, {transform_indices = @transform_1, window_bounds = array<i64: 8, 8, 32>}, {transform_indices = @transform_2, window_bounds = array<i64: 8, 8, 8>}, {pipeline_mode = #tpu.pipeline_mode<synchronous>, transform_indices = @transform_3, window_bounds = array<i64: 32, 32>}, {pipeline_mode = #tpu.pipeline_mode<synchronous>, transform_indices = @transform_4, window_bounds = array<i64: 32, 64>}, {pipeline_mode = #tpu.pipeline_mode<synchronous>, transform_indices = @transform_5, window_bounds = array<i64: 32, 128>}, {pipeline_mode = #tpu.pipeline_mode<synchronous>, transform_indices = @transform_6, window_bounds = array<i64: 8, 128>}, {pipeline_mode = #tpu.pipeline_mode<synchronous>, transform_indices = @transform_7, window_bounds = array<i64: 128, 32>}, {pipeline_mode = #tpu.pipeline_mode<synchronous>, transform_indices = @transform_8, window_bounds = array<i64: 128, 32>}, {pipeline_mode = #tpu.pipeline_mode<synchronous>, transform_indices = @transform_9, window_bounds = array<i64: 8, 128>}, {transform_indices = @transform_10, window_bounds = array<i64: 8, 32>}]} {
    %c0 = arith.constant 0 : index
    %c0_0 = arith.constant 0 : index
    %0 = vector.load %arg10[%c0, %c0_0] : memref<8x128xf32, #tpu.memory_space<vmem>>, vector<1x32xf32>
    %c1 = arith.constant 1 : index
    %c0_1 = arith.constant 0 : index
    %1 = vector.load %arg10[%c1, %c0_1] : memref<8x128xf32, #tpu.memory_space<vmem>>, vector<1x64xf32>
    %c2 = arith.constant 2 : index
    %c0_2 = arith.constant 0 : index
    %2 = vector.load %arg10[%c2, %c0_2] : memref<8x128xf32, #tpu.memory_space<vmem>>, vector<1x128xf32>
    %c3 = arith.constant 3 : index
    %c0_3 = arith.constant 0 : index
    %3 = vector.load %arg10[%c3, %c0_3] : memref<8x128xf32, #tpu.memory_space<vmem>>, vector<1x32xf32>
    %c4 = arith.constant 4 : index
    %c0_4 = arith.constant 0 : index
    %4 = vector.load %arg10[%c4, %c0_4] : memref<8x128xf32, #tpu.memory_space<vmem>>, vector<1x128xf32>
    %c5 = arith.constant 5 : index
    %c0_5 = arith.constant 0 : index
    %5 = vector.load %arg10[%c5, %c0_5] : memref<8x128xf32, #tpu.memory_space<vmem>>, vector<1x32xf32>
    %c0_6 = arith.constant 0 : index
    %c0_7 = arith.constant 0 : index
    %6 = vector.load %arg1[%c0_6, %c0_7] : memref<8x32xf32, #tpu.memory_space<vmem>>, vector<8x32xf32>
    %c0_8 = arith.constant 0 : index
    %c0_9 = arith.constant 0 : index
    %c0_10 = arith.constant 0 : index
    %7 = vector.load %arg2[%c0_8, %c0_9, %c0_10] : memref<8x8x32xf32, #tpu.memory_space<vmem>>, vector<8x8x32xf32>
    %8 = vector.shape_cast %7 : vector<8x8x32xf32> to vector<64x32xf32>
    %c0_11 = arith.constant 0 : index
    %c0_12 = arith.constant 0 : index
    %c0_13 = arith.constant 0 : index
    %9 = vector.load %arg3[%c0_11, %c0_12, %c0_13] : memref<8x8x8xf32, #tpu.memory_space<vmem>>, vector<8x8x8xf32>
    %10 = vector.shape_cast %9 : vector<8x8x8xf32> to vector<64x8xf32>
    %c0_14 = arith.constant 0 : index
    %c0_15 = arith.constant 0 : index
    %11 = vector.load %arg4[%c0_14, %c0_15] : memref<32x32xf32, #tpu.memory_space<vmem>>, vector<32x32xf32>
    %cst = arith.constant dense<0.000000e+00> : vector<8x32xf32>
    %12 = tpu.matmul %6, %11, %cst {dimension_numbers = #tpu.dot_dimension_numbers<[1], [0], [0], [1], [0, 0, 1, 1], [], []>, precision = #tpu.contract_precision<fp32>} : vector<8x32xf32>, vector<32x32xf32>, vector<8x32xf32> -> vector<8x32xf32>
    %13 = vector.broadcast %0 : vector<1x32xf32> to vector<8x32xf32>
    %14 = arith.addf %12, %13 : vector<8x32xf32>
    %15 = vector.shape_cast %14 : vector<8x32xf32> to vector<1x8x32xf32>
    %16 = vector.broadcast %15 : vector<1x8x32xf32> to vector<8x8x32xf32>
    %17 = vector.shape_cast %16 : vector<8x8x32xf32> to vector<64x32xf32>
    %c0_16 = arith.constant 0 : index
    %c0_17 = arith.constant 0 : index
    %18 = vector.load %arg7[%c0_16, %c0_17] : memref<8x128xf32, #tpu.memory_space<vmem>>, vector<8x128xf32>
    %cst_18 = arith.constant dense<0.000000e+00> : vector<64x128xf32>
    %19 = tpu.matmul %10, %18, %cst_18 {dimension_numbers = #tpu.dot_dimension_numbers<[1], [0], [0], [1], [0, 0, 1, 1], [], []>, precision = #tpu.contract_precision<fp32>} : vector<64x8xf32>, vector<8x128xf32>, vector<64x128xf32> -> vector<64x128xf32>
    %20 = vector.broadcast %2 : vector<1x128xf32> to vector<64x128xf32>
    %21 = arith.addf %19, %20 : vector<64x128xf32>
    %cst_19 = arith.constant 0.000000e+00 : f32
    %22 = vector.broadcast %cst_19 : f32 to vector<64x128xf32>
    %23 = arith.maximumf %21, %22 : vector<64x128xf32>
    %c0_20 = arith.constant 0 : index
    %c0_21 = arith.constant 0 : index
    %24 = vector.load %arg8[%c0_20, %c0_21] : memref<128x32xf32, #tpu.memory_space<vmem>>, vector<128x32xf32>
    %cst_22 = arith.constant dense<0.000000e+00> : vector<64x32xf32>
    %25 = tpu.matmul %23, %24, %cst_22 {dimension_numbers = #tpu.dot_dimension_numbers<[1], [0], [0], [1], [0, 0, 1, 1], [], []>, precision = #tpu.contract_precision<fp32>} : vector<64x128xf32>, vector<128x32xf32>, vector<64x32xf32> -> vector<64x32xf32>
    %26 = vector.broadcast %3 : vector<1x32xf32> to vector<64x32xf32>
    %27 = arith.addf %25, %26 : vector<64x32xf32>
    %c0_23 = arith.constant 0 : index
    %c0_24 = arith.constant 0 : index
    %28 = vector.load %arg5[%c0_23, %c0_24] : memref<32x64xf32, #tpu.memory_space<vmem>>, vector<32x64xf32>
    %cst_25 = arith.constant dense<0.000000e+00> : vector<64x64xf32>
    %29 = tpu.matmul %8, %28, %cst_25 {dimension_numbers = #tpu.dot_dimension_numbers<[1], [0], [0], [1], [0, 0, 1, 1], [], []>, precision = #tpu.contract_precision<fp32>} : vector<64x32xf32>, vector<32x64xf32>, vector<64x64xf32> -> vector<64x64xf32>
    %30 = vector.broadcast %1 : vector<1x64xf32> to vector<64x64xf32>
    %31 = arith.addf %29, %30 : vector<64x64xf32>
    %32 = vector.extract_strided_slice %31 {offsets = [0, 0], sizes = [64, 32], strides = [1, 1]} : vector<64x64xf32> to vector<64x32xf32>
    %33 = vector.extract_strided_slice %31 {offsets = [0, 32], sizes = [64, 32], strides = [1, 1]} : vector<64x64xf32> to vector<64x32xf32>
    %34 = arith.addf %33, %27 : vector<64x32xf32>
    %35 = arith.subf %17, %32 : vector<64x32xf32>
    %36 = arith.addf %35, %27 : vector<64x32xf32>
    %c0_26 = arith.constant 0 : index
    %c0_27 = arith.constant 0 : index
    %37 = vector.load %arg6[%c0_26, %c0_27] : memref<32x128xf32, #tpu.memory_space<vmem>>, vector<32x128xf32>
    %cst_28 = arith.constant dense<0.000000e+00> : vector<64x128xf32>
    %38 = tpu.matmul %36, %37, %cst_28 {dimension_numbers = #tpu.dot_dimension_numbers<[1], [0], [0], [1], [0, 0, 1, 1], [], []>, precision = #tpu.contract_precision<fp32>} : vector<64x32xf32>, vector<32x128xf32>, vector<64x128xf32> -> vector<64x128xf32>
    %39 = vector.broadcast %4 : vector<1x128xf32> to vector<64x128xf32>
    %40 = arith.addf %38, %39 : vector<64x128xf32>
    %cst_29 = arith.constant 0.000000e+00 : f32
    %41 = vector.broadcast %cst_29 : f32 to vector<64x128xf32>
    %42 = arith.maximumf %40, %41 : vector<64x128xf32>
    %c0_30 = arith.constant 0 : index
    %c0_31 = arith.constant 0 : index
    %43 = vector.load %arg9[%c0_30, %c0_31] : memref<128x32xf32, #tpu.memory_space<vmem>>, vector<128x32xf32>
    %cst_32 = arith.constant dense<0.000000e+00> : vector<64x32xf32>
    %44 = tpu.matmul %42, %43, %cst_32 {dimension_numbers = #tpu.dot_dimension_numbers<[1], [0], [0], [1], [0, 0, 1, 1], [], []>, precision = #tpu.contract_precision<fp32>} : vector<64x128xf32>, vector<128x32xf32>, vector<64x32xf32> -> vector<64x32xf32>
    %45 = vector.broadcast %5 : vector<1x32xf32> to vector<64x32xf32>
    %46 = arith.addf %44, %45 : vector<64x32xf32>
    %47 = vector.shape_cast %46 : vector<64x32xf32> to vector<8x8x32xf32>
    %48 = vector.shape_cast %34 : vector<64x32xf32> to vector<8x8x32xf32>
    %cst_33 = arith.constant dense<0xFF800000> : vector<8x32xf32>
    %49 = vector.multi_reduction <maximumf>, %47, %cst_33 [0] : vector<8x8x32xf32> to vector<8x32xf32>
    %50 = vector.shape_cast %49 : vector<8x32xf32> to vector<1x8x32xf32>
    %51 = vector.broadcast %50 : vector<1x8x32xf32> to vector<8x8x32xf32>
    %52 = arith.subf %47, %51 : vector<8x8x32xf32>
    %53 = math.exp %52 : vector<8x8x32xf32>
    %cst_34 = arith.constant dense<0.000000e+00> : vector<8x32xf32>
    %54 = vector.multi_reduction <add>, %53, %cst_34 [0] : vector<8x8x32xf32> to vector<8x32xf32>
    %55 = arith.mulf %53, %48 : vector<8x8x32xf32>
    %cst_35 = arith.constant dense<0.000000e+00> : vector<8x32xf32>
    %56 = vector.multi_reduction <add>, %55, %cst_35 [0] : vector<8x8x32xf32> to vector<8x32xf32>
    %57 = arith.divf %56, %54 : vector<8x32xf32>
    %c0_36 = arith.constant 0 : index
    %c0_37 = arith.constant 0 : index
    %58 = vector.load %arg11[%c0_36, %c0_37] : memref<8x32xf32, #tpu.memory_space<vmem>>, vector<8x32xf32>
    tpu.vector_store %arg11[%c0_36, %c0_37], %57 {strides = array<i32>} : memref<8x32xf32, #tpu.memory_space<vmem>>, vector<8x32xf32>,
    return
  }
  func.func @transform_0(%arg0: i32) -> (i32, i32) {
    %c0_i32 = arith.constant 0 : i32
    %c0_i32_0 = arith.constant 0 : i32
    return %arg0, %c0_i32 : i32, i32
  }
  func.func @transform_1(%arg0: i32) -> (i32, i32, i32) {
    %c0_i32 = arith.constant 0 : i32
    %c0_i32_0 = arith.constant 0 : i32
    %c0_i32_1 = arith.constant 0 : i32
    return %c0_i32, %arg0, %c0_i32_0 : i32, i32, i32
  }
  func.func @transform_2(%arg0: i32) -> (i32, i32, i32) {
    %c0_i32 = arith.constant 0 : i32
    %c0_i32_0 = arith.constant 0 : i32
    %c0_i32_1 = arith.constant 0 : i32
    return %c0_i32, %arg0, %c0_i32_0 : i32, i32, i32
  }
  func.func @transform_3(%arg0: i32) -> (i32, i32) {
    %c0_i32 = arith.constant 0 : i32
    %c0_i32_0 = arith.constant 0 : i32
    %c0_i32_1 = arith.constant 0 : i32
    return %c0_i32, %c0_i32_0 : i32, i32
  }
  func.func @transform_4(%arg0: i32) -> (i32, i32) {
    %c0_i32 = arith.constant 0 : i32
    %c0_i32_0 = arith.constant 0 : i32
    %c0_i32_1 = arith.constant 0 : i32
    return %c0_i32, %c0_i32_0 : i32, i32
  }
  func.func @transform_5(%arg0: i32) -> (i32, i32) {
    %c0_i32 = arith.constant 0 : i32
    %c0_i32_0 = arith.constant 0 : i32
    %c0_i32_1 = arith.constant 0 : i32
    return %c0_i32, %c0_i32_0 : i32, i32
  }
  func.func @transform_6(%arg0: i32) -> (i32, i32) {
    %c0_i32 = arith.constant 0 : i32
    %c0_i32_0 = arith.constant 0 : i32
    %c0_i32_1 = arith.constant 0 : i32
    return %c0_i32, %c0_i32_0 : i32, i32
  }
  func.func @transform_7(%arg0: i32) -> (i32, i32) {
    %c0_i32 = arith.constant 0 : i32
    %c0_i32_0 = arith.constant 0 : i32
    %c0_i32_1 = arith.constant 0 : i32
    return %c0_i32, %c0_i32_0 : i32, i32
  }
  func.func @transform_8(%arg0: i32) -> (i32, i32) {
    %c0_i32 = arith.constant 0 : i32
    %c0_i32_0 = arith.constant 0 : i32
    %c0_i32_1 = arith.constant 0 : i32
    return %c0_i32, %c0_i32_0 : i32, i32
  }
  func.func @transform_9(%arg0: i32) -> (i32, i32) {
    %c0_i32 = arith.constant 0 : i32
    %c0_i32_0 = arith.constant 0 : i32
    %c0_i32_1 = arith.constant 0 : i32
    return %c0_i32, %c0_i32_0 : i32, i32
  }
  func.func @transform_10(%arg0: i32) -> (i32, i32) {
    %c0_i32 = arith.constant 0 : i32
    %c0_i32_0 = arith.constant 0 : i32
    return %arg0, %c0_i32 : i32, i32
  }
}

</mosaic_0001>

<llo_original>
// kernel: tpu_custom_call.1
$region0: #{tpu_custom_call.1}
  #allocation0 [shape = 'u32[]', space=smem, size = 0x4, offset = 0x4, fixed_abs, tag = 'smem constant byte address 0x4 - core index']
  #allocation1 [shape = 'u32[144,128]{1,0:T(1,128)}', space=vmem, size = 0x12000, scoped, tag = 'internal scratch']
  %s0 = inlined_call_operand.vmem [shape: f32[8,32], index: 0, kind: input, shape index: {}]
  %s1 = inlined_call_operand.vmem [shape: f32[8,8,32], index: 1, kind: input, shape index: {}]
  %s2 = inlined_call_operand.vmem [shape: f32[8,8,8], index: 2, kind: input, shape index: {}]
  %s3 = inlined_call_operand.vmem [shape: f32[32,32], index: 3, kind: input, shape index: {}]
  %s4 = inlined_call_operand.vmem [shape: f32[32,64], index: 4, kind: input, shape index: {}]
  %s5 = inlined_call_operand.vmem [shape: f32[32,128], index: 5, kind: input, shape index: {}]
  %s6 = inlined_call_operand.vmem [shape: f32[8,128], index: 6, kind: input, shape index: {}]
  %s7 = inlined_call_operand.vmem [shape: f32[128,32], index: 7, kind: input, shape index: {}]
  %s8 = inlined_call_operand.vmem [shape: f32[128,32], index: 8, kind: input, shape index: {}]
  %s9 = inlined_call_operand.vmem [shape: f32[8,128], index: 9, kind: input, shape index: {}]
  %s10 = inlined_call_operand.hbm [shape: f32[8,32], index: 10, kind: output, shape index: {}]
  %s11 = sld [smem:[#allocation0]]
  $region50: #{tpu_custom_call.1} parent=0
    _
  %s13 = ssub.s32 1, %s11
  %s14 = scalar_select 0, %s13, %s11
  $region1: #{tpu_custom_call.1} parent=0
    #allocation2 [shape = 'u8[4096]{0}', space=vmem, size = 0x1000, scoped, tag = 'output window, operand 0, single buffered']
    #allocation3 [shape = 's32[1]{0}', space=sflag, size = 0x4, scoped, tag = 'scoped memory for tpu_custom_call.1']
    %15 = vsyncpa [#allocation3], 0
    // Predicated region
    $region2: #{tpu_custom_call.1} parent=1 // pred_check
      _
    $region3: #{tpu_custom_call.1} parent=1 // pred_check_branch
      %17 = sbr.rel (0) target = $region5
    $region4: #{tpu_custom_call.1} parent=1 // pred_region
      _
    $region5: #{tpu_custom_call.1} parent=1 // pred_fallthru
      _
    // Predicated region
    $region6: #{tpu_custom_call.1} parent=1 // pred_check
      _
    $region7: #{tpu_custom_call.1} parent=1 // pred_check_branch
      %19 = sbr.rel (0) target = $region9
    $region8: #{tpu_custom_call.1} parent=1 // pred_region
      _
    $region9: #{tpu_custom_call.1} parent=1 // pred_fallthru
      _
    // Predicated region
    $region10: #{tpu_custom_call.1} parent=1 // pred_check
      _
    $region11: #{tpu_custom_call.1} parent=1 // pred_check_branch
      %21 = sbr.rel (0) target = $region13
    $region12: #{tpu_custom_call.1} parent=1 // pred_region
      _
    $region13: #{tpu_custom_call.1} parent=1 // pred_fallthru
      _
    // Predicated region
    $region14: #{tpu_custom_call.1} parent=1 // pred_check
      _
    $region15: #{tpu_custom_call.1} parent=1 // pred_check_branch
      %23 = sbr.rel (0) target = $region17
    $region16: #{tpu_custom_call.1} parent=1 // pred_region
      _
    $region17: #{tpu_custom_call.1} parent=1 // pred_fallthru
      _
    // Predicated region
    $region18: #{tpu_custom_call.1} parent=1 // pred_check
      _
    $region19: #{tpu_custom_call.1} parent=1 // pred_check_branch
      %25 = sbr.rel (0) target = $region21
    $region20: #{tpu_custom_call.1} parent=1 // pred_region
      _
    $region21: #{tpu_custom_call.1} parent=1 // pred_fallthru
      _
    // Predicated region
    $region22: #{tpu_custom_call.1} parent=1 // pred_check
      _
    $region23: #{tpu_custom_call.1} parent=1 // pred_check_branch
      %27 = sbr.rel (0) target = $region25
    $region24: #{tpu_custom_call.1} parent=1 // pred_region
      _
    $region25: #{tpu_custom_call.1} parent=1 // pred_fallthru
      _
    // Predicated region
    $region26: #{tpu_custom_call.1} parent=1 // pred_check
      _
    $region27: #{tpu_custom_call.1} parent=1 // pred_check_branch
      %29 = sbr.rel (0) target = $region29
    $region28: #{tpu_custom_call.1} parent=1 // pred_region
      _
    $region29: #{tpu_custom_call.1} parent=1 // pred_fallthru
      _
    // Predicated region
    $region30: #{tpu_custom_call.1} parent=1 // pred_check
      _
    $region31: #{tpu_custom_call.1} parent=1 // pred_check_branch
      %31 = sbr.rel (0) target = $region33
    $region32: #{tpu_custom_call.1} parent=1 // pred_region
      _
    $region33: #{tpu_custom_call.1} parent=1 // pred_fallthru
      _
    // Predicated region
    $region34: #{tpu_custom_call.1} parent=1 // pred_check
      _
    $region35: #{tpu_custom_call.1} parent=1 // pred_check_branch
      %33 = sbr.rel (0) target = $region37
    $region36: #{tpu_custom_call.1} parent=1 // pred_region
      _
    $region37: #{tpu_custom_call.1} parent=1 // pred_fallthru
      _
    // Predicated region
    $region38: #{tpu_custom_call.1} parent=1 // pred_check
      _
    $region39: #{tpu_custom_call.1} parent=1 // pred_check_branch
      %35 = sbr.rel (0) target = $region41
    $region40: #{tpu_custom_call.1} parent=1 // pred_region
      _
    $region41: #{tpu_custom_call.1} parent=1 // pred_fallthru
      _
    %v36 = vld [vmem:[%s9] sm:$0x1]
    %v37 = vld [vmem:[%s9 + $0x1] sm:$0x1]
    %v38 = vld [vmem:[%s9 + $0x2] sm:$0x1]
    %v39 = vld [vmem:[%s9 + $0x3] sm:$0x1]
    %v40 = vld [vmem:[%s9 + $0x4] sm:$0x1]
    %v41 = vld [vmem:[%s9 + $0x5] sm:$0x1]
    %v42 = vld [vmem:[%s0] sm:$0xff]
    %v43 = vld [vmem:[%s1] sm:$0xff]
    %v44 = vld [vmem:[%s1 + $0x8] sm:$0xff]
    %v45 = vld [vmem:[%s1 + $0x10] sm:$0xff]
    %v46 = vld [vmem:[%s1 + $0x18] sm:$0xff]
    %v47 = vld [vmem:[%s1 + $0x20] sm:$0xff]
    %v48 = vld [vmem:[%s1 + $0x28] sm:$0xff]
    %v49 = vld [vmem:[%s1 + $0x30] sm:$0xff]
    %v50 = vld [vmem:[%s1 + $0x38] sm:$0xff]
    %v51 = vld [vmem:[%s2] sm:$0xff]
    %v52 = vld [vmem:[%s2 + $0x8] sm:$0xff]
    %v53 = vld [vmem:[%s2 + $0x10] sm:$0xff]
    %v54 = vld [vmem:[%s2 + $0x18] sm:$0xff]
    %v55 = vld [vmem:[%s2 + $0x20] sm:$0xff]
    %v56 = vld [vmem:[%s2 + $0x28] sm:$0xff]
    %v57 = vld [vmem:[%s2 + $0x30] sm:$0xff]
    %v58 = vld [vmem:[%s2 + $0x38] sm:$0xff]
    %v59 = vld [vmem:[%s3] sm:$0xff]
    %v60 = vld [vmem:[%s3 + $0x8] sm:$0xff]
    %v61 = vld [vmem:[%s3 + $0x10] sm:$0xff]
    %v62 = vld [vmem:[%s3 + $0x18] sm:$0xff]
    %v63 = vlaneseq
    %v64 = vshrl.u32 %v63, 7
    %v65 = vsub.s32 0, %v64
    %v66 = vrot.slane %v36, %v65
    %vm67 = vcmask 261120
    %v69 = vsel %vm67, %v42, 0
    %71 = vmatprep.subr.mxu0 0.0
    %v72 = vand.u32 %v59, 4294901760
    %73 = vmatpush1.msra.mxu0 %v72
    %74 = vmatprep.subr.mxu0 0.0
    %v75 = vand.u32 %v60, 4294901760
    %76 = vmatpush1.msra.mxu0 %v75
    %77 = vmatprep.subr.mxu0 0.0
    %v78 = vand.u32 %v61, 4294901760
    %79 = vmatpush1.msra.mxu0 %v78
    %80 = vmatprep.subr.mxu0 0.0
    %v81 = vand.u32 %v62, 4294901760
    %82 = vmatpush1.msra.mxu0 %v81
    %83 = vmatprep.subr.mxu0 0.0
    %84 = vmatpush1.msra.mxu0 0.0
    %85 = vmatprep.subr.mxu0 0.0
    %86 = vmatpush1.msra.mxu0 0.0
    %87 = vmatprep.subr.mxu0 0.0
    %88 = vmatpush1.msra.mxu0 0.0
    %89 = vmatprep.subr.mxu0 0.0
    %90 = vmatpush1.msra.mxu0 0.0
    %91 = vmatprep.subr.mxu0 0.0
    %92 = vmatpush1.msra.mxu0 0.0
    %93 = vmatprep.subr.mxu0 0.0
    %94 = vmatpush1.msra.mxu0 0.0
    %95 = vmatprep.subr.mxu0 0.0
    %96 = vmatpush1.msra.mxu0 0.0
    %97 = vmatprep.subr.mxu0 0.0
    %98 = vmatpush1.msra.mxu0 0.0
    %99 = vmatprep.subr.mxu0 0.0
    %100 = vmatpush1.msra.mxu0 0.0
    %101 = vmatprep.subr.mxu0 0.0
    %102 = vmatpush1.msra.mxu0 0.0
    %103 = vmatprep.subr.mxu0 0.0
    %104 = vmatpush1.msra.mxu0 0.0
    %105 = vmatprep.subr.mxu0 0.0
    %106 = vmatpush1.msra.mxu0 0.0
    %107 = vmatprep.subr.mxu0 0.0
    %108 = vmatpush1.msra.mxu0 0.0
    %109 = vmatprep.subr.mxu0 0.0
    %110 = vmatpush1.msra.mxu0 0.0
    %111 = vmatprep.subr.mxu0 0.0
    %112 = vmatpush1.msra.mxu0 0.0
    %113 = vmatprep.subr.mxu0 0.0
    %114 = vmatpush1.msra.mxu0 0.0
    %115 = vmatprep.subr.mxu0 0.0
    %116 = vmatpush1.msra.mxu0 0.0
    %117 = vmatprep.subr.mxu0 0.0
    %118 = vmatpush1.msra.mxu0 0.0
    %119 = vmatprep.subr.mxu0 0.0
    %120 = vmatpush1.msra.mxu0 0.0
    %121 = vmatprep.subr.mxu0 0.0
    %122 = vmatpush1.msra.mxu0 0.0
    %123 = vmatprep.subr.mxu0 0.0
    %124 = vmatpush1.msra.mxu0 0.0
    %125 = vmatprep.subr.mxu0 0.0
    %126 = vmatpush1.msra.mxu0 0.0
    %127 = vmatprep.subr.mxu0 0.0
    %128 = vmatpush1.msra.mxu0 0.0
    %129 = vmatprep.subr.mxu0 0.0
    %130 = vmatpush1.msra.mxu0 0.0
    %131 = vmatprep.subr.mxu0 0.0
    %132 = vmatpush1.msra.mxu0 0.0
    %133 = vmatprep.subr.mxu0 0.0
    %134 = vmatpush1.msra.mxu0 0.0
    %135 = vmatprep.subr.mxu0 0.0
    %136 = vmatpush1.msra.mxu0 0.0
    %137 = vmatprep.subr.mxu0 0.0
    %138 = vmatpush1.msra.mxu0 0.0
    %139 = vmatprep.mubr.f32.mxu0 0.0
    %v140 = vand.u32 %v69, 4294901760
    %v141 = vsub.f32 %v69, %v140
    %v142 = vand.u32 %v141, 4294901760
    %v143 = vsub.f32 %v141, %v142
    %v144 = vand.u32 %v143, 4294901760
    %145 = vmatmul.mubr.f32.gmra.mrb[0].mxu0 %v144
    %v146 = vpop.f32.mrb[0].mxu0
    %v147 = vadd.f32 %v66, %v146
    %v148 = vpop.f32.mrb[0].mxu0
    %149 = vdwg.mxu0
    %150 = vmatprep.subr.mxu0 0.0
    %v151 = vand.u32 %v59, 4294901760
    %v152 = vsub.f32 %v59, %v151
    %v153 = vand.u32 %v152, 4294901760
    %v154 = vsub.f32 %v152, %v153
    %v155 = vand.u32 %v154, 4294901760
    %156 = vmatpush1.msra.mxu0 %v155
    %157 = vmatprep.subr.mxu0 0.0
    %v158 = vand.u32 %v60, 4294901760
    %v159 = vsub.f32 %v60, %v158
    %v160 = vand.u32 %v159, 4294901760
    %v161 = vsub.f32 %v159, %v160
    %v162 = vand.u32 %v161, 4294901760
    %163 = vmatpush1.msra.mxu0 %v162
    %164 = vmatprep.subr.mxu0 0.0
    %v165 = vand.u32 %v61, 4294901760
    %v166 = vsub.f32 %v61, %v165
    %v167 = vand.u32 %v166, 4294901760
    %v168 = vsub.f32 %v166, %v167
    %v169 = vand.u32 %v168, 4294901760
    %170 = vmatpush1.msra.mxu0 %v169
    %171 = vmatprep.subr.mxu0 0.0
    %v172 = vand.u32 %v62, 4294901760
    %v173 = vsub.f32 %v62, %v172
    %v174 = vand.u32 %v173, 4294901760
    %v175 = vsub.f32 %v173, %v174
    %v176 = vand.u32 %v175, 4294901760
    %177 = vmatpush1.msra.mxu0 %v176
    %178 = vmatprep.subr.mxu0 0.0
    %179 = vmatpush1.msra.mxu0 0.0
    %180 = vmatprep.subr.mxu0 0.0
    %181 = vmatpush1.msra.mxu0 0.0
    %182 = vmatprep.subr.mxu0 0.0
    %183 = vmatpush1.msra.mxu0 0.0
    %184 = vmatprep.subr.mxu0 0.0
    %185 = vmatpush1.msra.mxu0 0.0
    %186 = vmatprep.subr.mxu0 0.0
    %187 = vmatpush1.msra.mxu0 0.0
    %188 = vmatprep.subr.mxu0 0.0
    %189 = vmatpush1.msra.mxu0 0.0
    %190 = vmatprep.subr.mxu0 0.0
    %191 = vmatpush1.msra.mxu0 0.0
    %192 = vmatprep.subr.mxu0 0.0
    %193 = vmatpush1.msra.mxu0 0.0
    %194 = vmatprep.subr.mxu0 0.0
    %195 = vmatpush1.msra.mxu0 0.0
    %196 = vmatprep.subr.mxu0 0.0
    %197 = vmatpush1.msra.mxu0 0.0
    %198 = vmatprep.subr.mxu0 0.0
    %199 = vmatpush1.msra.mxu0 0.0
    %200 = vmatprep.subr.mxu0 0.0
    %201 = vmatpush1.msra.mxu0 0.0
    %202 = vmatprep.subr.mxu0 0.0
    %203 = vmatpush1.msra.mxu0 0.0
    %204 = vmatprep.subr.mxu0 0.0
    %205 = vmatpush1.msra.mxu0 0.0
    %206 = vmatprep.subr.mxu0 0.0
    %207 = vmatpush1.msra.mxu0 0.0
    %208 = vmatprep.subr.mxu0 0.0
    %209 = vmatpush1.msra.mxu0 0.0
    %210 = vmatprep.subr.mxu0 0.0
    %211 = vmatpush1.msra.mxu0 0.0
    %212 = vmatprep.subr.mxu0 0.0
    %213 = vmatpush1.msra.mxu0 0.0
    %214 = vmatprep.subr.mxu0 0.0
    %215 = vmatpush1.msra.mxu0 0.0
    %216 = vmatprep.subr.mxu0 0.0
    %217 = vmatpush1.msra.mxu0 0.0
    %218 = vmatprep.subr.mxu0 0.0
    %219 = vmatpush1.msra.mxu0 0.0
    %220 = vmatprep.subr.mxu0 0.0
    %221 = vmatpush1.msra.mxu0 0.0
    %222 = vmatprep.subr.mxu0 0.0
    %223 = vmatpush1.msra.mxu0 0.0
    %224 = vmatprep.subr.mxu0 0.0
    %225 = vmatpush1.msra.mxu0 0.0
    %226 = vmatprep.subr.mxu0 0.0
    %227 = vmatpush1.msra.mxu0 0.0
    %228 = vmatprep.subr.mxu0 0.0
    %229 = vmatpush1.msra.mxu0 0.0
    %230 = vmatprep.subr.mxu0 0.0
    %231 = vmatpush1.msra.mxu0 0.0
    %232 = vmatprep.subr.mxu0 0.0
    %233 = vmatpush1.msra.mxu0 0.0
    %234 = vmatprep.mubr.f32.mxu0 0.0
    %v235 = vand.u32 %v69, 4294901760
    %236 = vmatmul.mubr.f32.gmra.mrb[0].mxu0 %v235
    %v237 = vpop.f32.mrb[0].mxu0
    %v238 = vadd.f32 %v147, %v237
    %v239 = vpop.f32.mrb[0].mxu0
    %240 = vdwg.mxu0
    %241 = vmatprep.subr.mxu0 0.0
    %v242 = vand.u32 %v59, 4294901760
    %v243 = vsub.f32 %v59, %v242
    %244 = vmatpush1.msra.mxu0 %v243
    %245 = vmatprep.subr.mxu0 0.0
    %v246 = vand.u32 %v60, 4294901760
    %v247 = vsub.f32 %v60, %v246
    %248 = vmatpush1.msra.mxu0 %v247
    %249 = vmatprep.subr.mxu0 0.0
    %v250 = vand.u32 %v61, 4294901760
    %v251 = vsub.f32 %v61, %v250
    %252 = vmatpush1.msra.mxu0 %v251
    %253 = vmatprep.subr.mxu0 0.0
    %v254 = vand.u32 %v62, 4294901760
    %v255 = vsub.f32 %v62, %v254
    %256 = vmatpush1.msra.mxu0 %v255
    %257 = vmatprep.subr.mxu0 0.0
    %258 = vmatpush1.msra.mxu0 0.0
    %259 = vmatprep.subr.mxu0 0.0
    %260 = vmatpush1.msra.mxu0 0.0
    %261 = vmatprep.subr.mxu0 0.0
    %262 = vmatpush1.msra.mxu0 0.0
    %263 = vmatprep.subr.mxu0 0.0
    %264 = vmatpush1.msra.mxu0 0.0
    %265 = vmatprep.subr.mxu0 0.0
    %266 = vmatpush1.msra.mxu0 0.0
    %267 = vmatprep.subr.mxu0 0.0
    %268 = vmatpush1.msra.mxu0 0.0
    %269 = vmatprep.subr.mxu0 0.0
    %270 = vmatpush1.msra.mxu0 0.0
    %271 = vmatprep.subr.mxu0 0.0
    %272 = vmatpush1.msra.mxu0 0.0
    %273 = vmatprep.subr.mxu0 0.0
    %274 = vmatpush1.msra.mxu0 0.0
    %275 = vmatprep.subr.mxu0 0.0
    %276 = vmatpush1.msra.mxu0 0.0
    %277 = vmatprep.subr.mxu0 0.0
    %278 = vmatpush1.msra.mxu0 0.0
    %279 = vmatprep.subr.mxu0 0.0
    %280 = vmatpush1.msra.mxu0 0.0
    %281 = vmatprep.subr.mxu0 0.0
    %282 = vmatpush1.msra.mxu0 0.0
    %283 = vmatprep.subr.mxu0 0.0
    %284 = vmatpush1.msra.mxu0 0.0
    %285 = vmatprep.subr.mxu0 0.0
    %286 = vmatpush1.msra.mxu0 0.0
    %287 = vmatprep.subr.mxu0 0.0
    %288 = vmatpush1.msra.mxu0 0.0
    %289 = vmatprep.subr.mxu0 0.0
    %290 = vmatpush1.msra.mxu0 0.0
    %291 = vmatprep.subr.mxu0 0.0
    %292 = vmatpush1.msra.mxu0 0.0
    %293 = vmatprep.subr.mxu0 0.0
    %294 = vmatpush1.msra.mxu0 0.0
    %295 = vmatprep.subr.mxu0 0.0
    %296 = vmatpush1.msra.mxu0 0.0
    %297 = vmatprep.subr.mxu0 0.0
    %298 = vmatpush1.msra.mxu0 0.0
    %299 = vmatprep.subr.mxu0 0.0
    %300 = vmatpush1.msra.mxu0 0.0
    %301 = vmatprep.subr.mxu0 0.0
    %302 = vmatpush1.msra.mxu0 0.0
    %303 = vmatprep.subr.mxu0 0.0
    %304 = vmatpush1.msra.mxu0 0.0
    %305 = vmatprep.subr.mxu0 0.0
    %306 = vmatpush1.msra.mxu0 0.0
    %307 = vmatprep.subr.mxu0 0.0
    %308 = vmatpush1.msra.mxu0 0.0
    %309 = vmatprep.subr.mxu0 0.0
    %310 = vmatpush1.msra.mxu0 0.0
    %311 = vmatprep.subr.mxu0 0.0
    %312 = vmatpush1.msra.mxu0 0.0
    %313 = vmatprep.mubr.f32.mxu0 0.0
    %v314 = vand.u32 %v69, 4294901760
    %v315 = vsub.f32 %v69, %v314
    %316 = vmatmul.mubr.f32.gmra.mrb[0].mxu0 %v315
    %v317 = vpop.f32.mrb[0].mxu0
    %v318 = vadd.f32 %v238, %v317
    %v319 = vpop.f32.mrb[0].mxu0
    %320 = vdwg.mxu0
    %321 = vmatprep.subr.mxu0 0.0
    %v322 = vand.u32 %v59, 4294901760
    %323 = vmatpush1.msra.mxu0 %v322
    %324 = vmatprep.subr.mxu0 0.0
    %v325 = vand.u32 %v60, 4294901760
    %326 = vmatpush1.msra.mxu0 %v325
    %327 = vmatprep.subr.mxu0 0.0
    %v328 = vand.u32 %v61, 4294901760
    %329 = vmatpush1.msra.mxu0 %v328
    %330 = vmatprep.subr.mxu0 0.0
    %v331 = vand.u32 %v62, 4294901760
    %332 = vmatpush1.msra.mxu0 %v331
    %333 = vmatprep.subr.mxu0 0.0
    %334 = vmatpush1.msra.mxu0 0.0
    %335 = vmatprep.subr.mxu0 0.0
    %336 = vmatpush1.msra.mxu0 0.0
    %337 = vmatprep.subr.mxu0 0.0
    %338 = vmatpush1.msra.mxu0 0.0
    %339 = vmatprep.subr.mxu0 0.0
    %340 = vmatpush1.msra.mxu0 0.0
    %341 = vmatprep.subr.mxu0 0.0
    %342 = vmatpush1.msra.mxu0 0.0
    %343 = vmatprep.subr.mxu0 0.0
    %344 = vmatpush1.msra.mxu0 0.0
    %345 = vmatprep.subr.mxu0 0.0
    %346 = vmatpush1.msra.mxu0 0.0
    %347 = vmatprep.subr.mxu0 0.0
    %348 = vmatpush1.msra.mxu0 0.0
    %349 = vmatprep.subr.mxu0 0.0
    %350 = vmatpush1.msra.mxu0 0.0
    %351 = vmatprep.subr.mxu0 0.0
    %352 = vmatpush1.msra.mxu0 0.0
    %353 = vmatprep.subr.mxu0 0.0
    %354 = vmatpush1.msra.mxu0 0.0
    %355 = vmatprep.subr.mxu0 0.0
    %356 = vmatpush1.msra.mxu0 0.0
    %357 = vmatprep.subr.mxu0 0.0
    %358 = vmatpush1.msra.mxu0 0.0
    %359 = vmatprep.subr.mxu0 0.0
    %360 = vmatpush1.msra.mxu0 0.0
    %361 = vmatprep.subr.mxu0 0.0
    %362 = vmatpush1.msra.mxu0 0.0
    %363 = vmatprep.subr.mxu0 0.0
    %364 = vmatpush1.msra.mxu0 0.0
    %365 = vmatprep.subr.mxu0 0.0
    %366 = vmatpush1.msra.mxu0 0.0
    %367 = vmatprep.subr.mxu0 0.0
    %368 = vmatpush1.msra.mxu0 0.0
    %369 = vmatprep.subr.mxu0 0.0
    %370 = vmatpush1.msra.mxu0 0.0
    %371 = vmatprep.subr.mxu0 0.0
    %372 = vmatpush1.msra.mxu0 0.0
    %373 = vmatprep.subr.mxu0 0.0
    %374 = vmatpush1.msra.mxu0 0.0
    %375 = vmatprep.subr.mxu0 0.0
    %376 = vmatpush1.msra.mxu0 0.0
    %377 = vmatprep.subr.mxu0 0.0
    %378 = vmatpush1.msra.mxu0 0.0
    %379 = vmatprep.subr.mxu0 0.0
    %380 = vmatpush1.msra.mxu0 0.0
    %381 = vmatprep.subr.mxu0 0.0
    %382 = vmatpush1.msra.mxu0 0.0
    %383 = vmatprep.subr.mxu0 0.0
    %384 = vmatpush1.msra.mxu0 0.0
    %385 = vmatprep.subr.mxu0 0.0
    %386 = vmatpush1.msra.mxu0 0.0
    %387 = vmatprep.subr.mxu0 0.0
    %388 = vmatpush1.msra.mxu0 0.0
    %389 = vmatprep.mubr.f32.mxu0 0.0
    %v390 = vand.u32 %v69, 4294901760
    %v391 = vsub.f32 %v69, %v390
    %v392 = vand.u32 %v391, 4294901760
    %393 = vmatmul.mubr.f32.gmra.mrb[0].mxu0 %v392
    %v394 = vpop.f32.mrb[0].mxu0
    %v395 = vadd.f32 %v318, %v394
    %v396 = vpop.f32.mrb[0].mxu0
    %397 = vdwg.mxu0
    %398 = vmatprep.subr.mxu0 0.0
    %v399 = vand.u32 %v59, 4294901760
    %v400 = vsub.f32 %v59, %v399
    %v401 = vand.u32 %v400, 4294901760
    %402 = vmatpush1.msra.mxu0 %v401
    %403 = vmatprep.subr.mxu0 0.0
    %v404 = vand.u32 %v60, 4294901760
    %v405 = vsub.f32 %v60, %v404
    %v406 = vand.u32 %v405, 4294901760
    %407 = vmatpush1.msra.mxu0 %v406
    %408 = vmatprep.subr.mxu0 0.0
    %v409 = vand.u32 %v61, 4294901760
    %v410 = vsub.f32 %v61, %v409
    %v411 = vand.u32 %v410, 4294901760
    %412 = vmatpush1.msra.mxu0 %v411
    %413 = vmatprep.subr.mxu0 0.0
    %v414 = vand.u32 %v62, 4294901760
    %v415 = vsub.f32 %v62, %v414
    %v416 = vand.u32 %v415, 4294901760
    %417 = vmatpush1.msra.mxu0 %v416
    %418 = vmatprep.subr.mxu0 0.0
    %419 = vmatpush1.msra.mxu0 0.0
    %420 = vmatprep.subr.mxu0 0.0
    %421 = vmatpush1.msra.mxu0 0.0
    %422 = vmatprep.subr.mxu0 0.0
    %423 = vmatpush1.msra.mxu0 0.0
    %424 = vmatprep.subr.mxu0 0.0
    %425 = vmatpush1.msra.mxu0 0.0
    %426 = vmatprep.subr.mxu0 0.0
    %427 = vmatpush1.msra.mxu0 0.0
    %428 = vmatprep.subr.mxu0 0.0
    %429 = vmatpush1.msra.mxu0 0.0
    %430 = vmatprep.subr.mxu0 0.0
    %431 = vmatpush1.msra.mxu0 0.0
    %432 = vmatprep.subr.mxu0 0.0
    %433 = vmatpush1.msra.mxu0 0.0
    %434 = vmatprep.subr.mxu0 0.0
    %435 = vmatpush1.msra.mxu0 0.0
    %436 = vmatprep.subr.mxu0 0.0
    %437 = vmatpush1.msra.mxu0 0.0
    %438 = vmatprep.subr.mxu0 0.0
    %439 = vmatpush1.msra.mxu0 0.0
    %440 = vmatprep.subr.mxu0 0.0
    %441 = vmatpush1.msra.mxu0 0.0
    %442 = vmatprep.subr.mxu0 0.0
    %443 = vmatpush1.msra.mxu0 0.0
    %444 = vmatprep.subr.mxu0 0.0
    %445 = vmatpush1.msra.mxu0 0.0
    %446 = vmatprep.subr.mxu0 0.0
    %447 = vmatpush1.msra.mxu0 0.0
    %448 = vmatprep.subr.mxu0 0.0
    %449 = vmatpush1.msra.mxu0 0.0
    %450 = vmatprep.subr.mxu0 0.0
    %451 = vmatpush1.msra.mxu0 0.0
    %452 = vmatprep.subr.mxu0 0.0
    %453 = vmatpush1.msra.mxu0 0.0
    %454 = vmatprep.subr.mxu0 0.0
    %455 = vmatpush1.msra.mxu0 0.0
    %456 = vmatprep.subr.mxu0 0.0
    %457 = vmatpush1.msra.mxu0 0.0
    %458 = vmatprep.subr.mxu0 0.0
    %459 = vmatpush1.msra.mxu0 0.0
    %460 = vmatprep.subr.mxu0 0.0
    %461 = vmatpush1.msra.mxu0 0.0
    %462 = vmatprep.subr.mxu0 0.0
    %463 = vmatpush1.msra.mxu0 0.0
    %464 = vmatprep.subr.mxu0 0.0
    %465 = vmatpush1.msra.mxu0 0.0
    %466 = vmatprep.subr.mxu0 0.0
    %467 = vmatpush1.msra.mxu0 0.0
    %468 = vmatprep.subr.mxu0 0.0
    %469 = vmatpush1.msra.mxu0 0.0
    %470 = vmatprep.subr.mxu0 0.0
    %471 = vmatpush1.msra.mxu0 0.0
    %472 = vmatprep.subr.mxu0 0.0
    %473 = vmatpush1.msra.mxu0 0.0
    %474 = vmatprep.mubr.f32.mxu0 0.0
    %v475 = vand.u32 %v69, 4294901760
    %476 = vmatmul.mubr.f32.gmra.mrb[0].mxu0 %v475
    %v477 = vpop.f32.mrb[0].mxu0
    %v478 = vadd.f32 %v395, %v477
    %v479 = vpop.f32.mrb[0].mxu0
    %480 = vdwg.mxu0
    %481 = vmatprep.subr.mxu0 0.0
    %v482 = vand.u32 %v59, 4294901760
    %483 = vmatpush1.msra.mxu0 %v482
    %484 = vmatprep.subr.mxu0 0.0
    %v485 = vand.u32 %v60, 4294901760
    %486 = vmatpush1.msra.mxu0 %v485
    %487 = vmatprep.subr.mxu0 0.0
    %v488 = vand.u32 %v61, 4294901760
    %489 = vmatpush1.msra.mxu0 %v488
    %490 = vmatprep.subr.mxu0 0.0
    %v491 = vand.u32 %v62, 4294901760
    %492 = vmatpush1.msra.mxu0 %v491
    %493 = vmatprep.subr.mxu0 0.0
    %494 = vmatpush1.msra.mxu0 0.0
    %495 = vmatprep.subr.mxu0 0.0
    %496 = vmatpush1.msra.mxu0 0.0
    %497 = vmatprep.subr.mxu0 0.0
    %498 = vmatpush1.msra.mxu0 0.0
    %499 = vmatprep.subr.mxu0 0.0
    %500 = vmatpush1.msra.mxu0 0.0
    %501 = vmatprep.subr.mxu0 0.0
    %502 = vmatpush1.msra.mxu0 0.0
    %503 = vmatprep.subr.mxu0 0.0
    %504 = vmatpush1.msra.mxu0 0.0
    %505 = vmatprep.subr.mxu0 0.0
    %506 = vmatpush1.msra.mxu0 0.0
    %507 = vmatprep.subr.mxu0 0.0
    %508 = vmatpush1.msra.mxu0 0.0
    %509 = vmatprep.subr.mxu0 0.0
    %510 = vmatpush1.msra.mxu0 0.0
    %511 = vmatprep.subr.mxu0 0.0
    %512 = vmatpush1.msra.mxu0 0.0
    %513 = vmatprep.subr.mxu0 0.0
    %514 = vmatpush1.msra.mxu0 0.0
    %515 = vmatprep.subr.mxu0 0.0
    %516 = vmatpush1.msra.mxu0 0.0
    %517 = vmatprep.subr.mxu0 0.0
    %518 = vmatpush1.msra.mxu0 0.0
    %519 = vmatprep.subr.mxu0 0.0
    %520 = vmatpush1.msra.mxu0 0.0
    %521 = vmatprep.subr.mxu0 0.0
    %522 = vmatpush1.msra.mxu0 0.0
    %523 = vmatprep.subr.mxu0 0.0
    %524 = vmatpush1.msra.mxu0 0.0
    %525 = vmatprep.subr.mxu0 0.0
    %526 = vmatpush1.msra.mxu0 0.0
    %527 = vmatprep.subr.mxu0 0.0
    %528 = vmatpush1.msra.mxu0 0.0
    %529 = vmatprep.subr.mxu0 0.0
    %530 = vmatpush1.msra.mxu0 0.0
    %531 = vmatprep.subr.mxu0 0.0
    %532 = vmatpush1.msra.mxu0 0.0
    %533 = vmatprep.subr.mxu0 0.0
    %534 = vmatpush1.msra.mxu0 0.0
    %535 = vmatprep.subr.mxu0 0.0
    %536 = vmatpush1.msra.mxu0 0.0
    %537 = vmatprep.subr.mxu0 0.0
    %538 = vmatpush1.msra.mxu0 0.0
    %539 = vmatprep.subr.mxu0 0.0
    %540 = vmatpush1.msra.mxu0 0.0
    %541 = vmatprep.subr.mxu0 0.0
    %542 = vmatpush1.msra.mxu0 0.0
    %543 = vmatprep.subr.mxu0 0.0
    %544 = vmatpush1.msra.mxu0 0.0
    %545 = vmatprep.subr.mxu0 0.0
    %546 = vmatpush1.msra.mxu0 0.0
    %547 = vmatprep.subr.mxu0 0.0
    %548 = vmatpush1.msra.mxu0 0.0
    %549 = vmatprep.mubr.f32.mxu0 0.0
    %v550 = vand.u32 %v69, 4294901760
    %551 = vmatmul.mubr.f32.gmra.mrb[0].mxu0 %v550
    %v552 = vpop.f32.mrb[0].mxu0
    %v553 = vadd.f32 %v478, %v552
    %v554 = vpop.f32.mrb[0].mxu0
    %555 = vdwg.mxu0
    %v556 = vld [vmem:[%s6] sm:$0xff]
    %v557 = vlaneseq
    %v558 = vshrl.u32 %v557, 7
    %v559 = vsub.s32 0, %v558
    %v560 = vrot.slane %v38, %v559
    %vm561 = vcmask 64512
    %v563 = vsel %vm561, %v51, 0
    %v566 = vsel %vm561, %v52, 0
    %v569 = vsel %vm561, %v53, 0
    %v572 = vsel %vm561, %v54, 0
    %v575 = vsel %vm561, %v55, 0
    %v578 = vsel %vm561, %v56, 0
    %v581 = vsel %vm561, %v57, 0
    %v584 = vsel %vm561, %v58, 0
    %586 = vmatprep.subr.mxu0 0.0
    %v587 = vand.u32 %v556, 4294901760
    %588 = vmatpush1.msra.mxu0 %v587
    %589 = vmatprep.subr.mxu0 0.0
    %590 = vmatpush1.msra.mxu0 0.0
    %591 = vmatprep.subr.mxu0 0.0
    %592 = vmatpush1.msra.mxu0 0.0
    %593 = vmatprep.subr.mxu0 0.0
    %594 = vmatpush1.msra.mxu0 0.0
    %595 = vmatprep.subr.mxu0 0.0
    %596 = vmatpush1.msra.mxu0 0.0
    %597 = vmatprep.subr.mxu0 0.0
    %598 = vmatpush1.msra.mxu0 0.0
    %599 = vmatprep.subr.mxu0 0.0
    %600 = vmatpush1.msra.mxu0 0.0
    %601 = vmatprep.subr.mxu0 0.0
    %602 = vmatpush1.msra.mxu0 0.0
    %603 = vmatprep.subr.mxu0 0.0
    %604 = vmatpush1.msra.mxu0 0.0
    %605 = vmatprep.subr.mxu0 0.0
    %606 = vmatpush1.msra.mxu0 0.0
    %607 = vmatprep.subr.mxu0 0.0
    %608 = vmatpush1.msra.mxu0 0.0
    %609 = vmatprep.subr.mxu0 0.0
    %610 = vmatpush1.msra.mxu0 0.0
    %611 = vmatprep.subr.mxu0 0.0
    %612 = vmatpush1.msra.mxu0 0.0
    %613 = vmatprep.subr.mxu0 0.0
    %614 = vmatpush1.msra.mxu0 0.0
    %615 = vmatprep.subr.mxu0 0.0
    %616 = vmatpush1.msra.mxu0 0.0
    %617 = vmatprep.subr.mxu0 0.0
    %618 = vmatpush1.msra.mxu0 0.0
    %619 = vmatprep.subr.mxu0 0.0
    %620 = vmatpush1.msra.mxu0 0.0
    %621 = vmatprep.subr.mxu0 0.0
    %622 = vmatpush1.msra.mxu0 0.0
    %623 = vmatprep.subr.mxu0 0.0
    %624 = vmatpush1.msra.mxu0 0.0
    %625 = vmatprep.subr.mxu0 0.0
    %626 = vmatpush1.msra.mxu0 0.0
    %627 = vmatprep.subr.mxu0 0.0
    %628 = vmatpush1.msra.mxu0 0.0
    %629 = vmatprep.subr.mxu0 0.0
    %630 = vmatpush1.msra.mxu0 0.0
    %631 = vmatprep.subr.mxu0 0.0
    %632 = vmatpush1.msra.mxu0 0.0
    %633 = vmatprep.subr.mxu0 0.0
    %634 = vmatpush1.msra.mxu0 0.0
    %635 = vmatprep.subr.mxu0 0.0
    %636 = vmatpush1.msra.mxu0 0.0
    %637 = vmatprep.subr.mxu0 0.0
    %638 = vmatpush1.msra.mxu0 0.0
    %639 = vmatprep.subr.mxu0 0.0
    %640 = vmatpush1.msra.mxu0 0.0
    %641 = vmatprep.subr.mxu0 0.0
    %642 = vmatpush1.msra.mxu0 0.0
    %643 = vmatprep.subr.mxu0 0.0
    %644 = vmatpush1.msra.mxu0 0.0
    %645 = vmatprep.subr.mxu0 0.0
    %646 = vmatpush1.msra.mxu0 0.0
    %647 = vmatprep.subr.mxu0 0.0
    %648 = vmatpush1.msra.mxu0 0.0
    %649 = vmatprep.subr.mxu0 0.0
    %650 = vmatpush1.msra.mxu0 0.0
    %651 = vmatprep.mubr.f32.mxu0 0.0
    %v652 = vand.u32 %v563, 4294901760
    %v653 = vsub.f32 %v563, %v652
    %v654 = vand.u32 %v653, 4294901760
    %v655 = vsub.f32 %v653, %v654
    %v656 = vand.u32 %v655, 4294901760
    %657 = vmatmul.mubr.f32.gmra.mrb[0].mxu0 %v656
    %v658 = vpop.f32.mrb[0].mxu0
    %v659 = vadd.f32 %v560, %v658
    %v660 = vpop.f32.mrb[0].mxu0
    %661 = vmatprep.mubr.f32.mxu0 0.0
    %v662 = vand.u32 %v566, 4294901760
    %v663 = vsub.f32 %v566, %v662
    %v664 = vand.u32 %v663, 4294901760
    %v665 = vsub.f32 %v663, %v664
    %v666 = vand.u32 %v665, 4294901760
    %667 = vmatmul.mubr.f32.gmra.mrb[0].mxu0 %v666
    %v668 = vpop.f32.mrb[0].mxu0
    %v669 = vadd.f32 %v560, %v668
    %v670 = vpop.f32.mrb[0].mxu0
    %671 = vmatprep.mubr.f32.mxu0 0.0
    %v672 = vand.u32 %v569, 4294901760
    %v673 = vsub.f32 %v569, %v672
    %v674 = vand.u32 %v673, 4294901760
    %v675 = vsub.f32 %v673, %v674
    %v676 = vand.u32 %v675, 4294901760
    %677 = vmatmul.mubr.f32.gmra.mrb[0].mxu0 %v676
    %v678 = vpop.f32.mrb[0].mxu0
    %v679 = vadd.f32 %v560, %v678
    %v680 = vpop.f32.mrb[0].mxu0
    %681 = vmatprep.mubr.f32.mxu0 0.0
    %v682 = vand.u32 %v572, 4294901760
    %v683 = vsub.f32 %v572, %v682
    %v684 = vand.u32 %v683, 4294901760
    %v685 = vsub.f32 %v683, %v684
    %v686 = vand.u32 %v685, 4294901760
    %687 = vmatmul.mubr.f32.gmra.mrb[0].mxu0 %v686
    %v688 = vpop.f32.mrb[0].mxu0
    %v689 = vadd.f32 %v560, %v688
    %v690 = vpop.f32.mrb[0].mxu0
    %691 = vmatprep.mubr.f32.mxu0 0.0
    %v692 = vand.u32 %v575, 4294901760
    %v693 = vsub.f32 %v575, %v692
    %v694 = vand.u32 %v693, 4294901760
    %v695 = vsub.f32 %v693, %v694
    %v696 = vand.u32 %v695, 4294901760
    %697 = vmatmul.mubr.f32.gmra.mrb[0].mxu0 %v696
    %v698 = vpop.f32.mrb[0].mxu0
    %v699 = vadd.f32 %v560, %v698
    %v700 = vpop.f32.mrb[0].mxu0
    %701 = vmatprep.mubr.f32.mxu0 0.0
    %v702 = vand.u32 %v578, 4294901760
    %v703 = vsub.f32 %v578, %v702
    %v704 = vand.u32 %v703, 4294901760
    %v705 = vsub.f32 %v703, %v704
    %v706 = vand.u32 %v705, 4294901760
    %707 = vmatmul.mubr.f32.gmra.mrb[0].mxu0 %v706
    %v708 = vpop.f32.mrb[0].mxu0
    %v709 = vadd.f32 %v560, %v708
    %v710 = vpop.f32.mrb[0].mxu0
    %711 = vmatprep.mubr.f32.mxu0 0.0
    %v712 = vand.u32 %v581, 4294901760
    %v713 = vsub.f32 %v581, %v712
    %v714 = vand.u32 %v713, 4294901760
    %v715 = vsub.f32 %v713, %v714
    %v716 = vand.u32 %v715, 4294901760
    %717 = vmatmul.mubr.f32.gmra.mrb[0].mxu0 %v716
    %v718 = vpop.f32.mrb[0].mxu0
    %v719 = vadd.f32 %v560, %v718
    %v720 = vpop.f32.mrb[0].mxu0
    %721 = vmatprep.mubr.f32.mxu0 0.0
    %v722 = vand.u32 %v584, 4294901760
    %v723 = vsub.f32 %v584, %v722
    %v724 = vand.u32 %v723, 4294901760
    %v725 = vsub.f32 %v723, %v724
    %v726 = vand.u32 %v725, 4294901760
    %727 = vmatmul.mubr.f32.gmra.mrb[0].mxu0 %v726
    %v728 = vpop.f32.mrb[0].mxu0
    %v729 = vadd.f32 %v560, %v728
    %v730 = vpop.f32.mrb[0].mxu0
    %731 = vdwg.mxu0
    %732 = vmatprep.subr.mxu0 0.0
    %v733 = vand.u32 %v556, 4294901760
    %v734 = vsub.f32 %v556, %v733
    %v735 = vand.u32 %v734, 4294901760
    %v736 = vsub.f32 %v734, %v735
    %v737 = vand.u32 %v736, 4294901760
    %738 = vmatpush1.msra.mxu0 %v737
    %739 = vmatprep.subr.mxu0 0.0
    %740 = vmatpush1.msra.mxu0 0.0
    %741 = vmatprep.subr.mxu0 0.0
    %742 = vmatpush1.msra.mxu0 0.0
    %743 = vmatprep.subr.mxu0 0.0
    %744 = vmatpush1.msra.mxu0 0.0
    %745 = vmatprep.subr.mxu0 0.0
    %746 = vmatpush1.msra.mxu0 0.0
    %747 = vmatprep.subr.mxu0 0.0
    %748 = vmatpush1.msra.mxu0 0.0
    %749 = vmatprep.subr.mxu0 0.0
    %750 = vmatpush1.msra.mxu0 0.0
    %751 = vmatprep.subr.mxu0 0.0
    %752 = vmatpush1.msra.mxu0 0.0
    %753 = vmatprep.subr.mxu0 0.0
    %754 = vmatpush1.msra.mxu0 0.0
    %755 = vmatprep.subr.mxu0 0.0
    %756 = vmatpush1.msra.mxu0 0.0
    %757 = vmatprep.subr.mxu0 0.0
    %758 = vmatpush1.msra.mxu0 0.0
    %759 = vmatprep.subr.mxu0 0.0
    %760 = vmatpush1.msra.mxu0 0.0
    %761 = vmatprep.subr.mxu0 0.0
    %762 = vmatpush1.msra.mxu0 0.0
    %763 = vmatprep.subr.mxu0 0.0
    %764 = vmatpush1.msra.mxu0 0.0
    %765 = vmatprep.subr.mxu0 0.0
    %766 = vmatpush1.msra.mxu0 0.0
    %767 = vmatprep.subr.mxu0 0.0
    %768 = vmatpush1.msra.mxu0 0.0
    %769 = vmatprep.subr.mxu0 0.0
    %770 = vmatpush1.msra.mxu0 0.0
    %771 = vmatprep.subr.mxu0 0.0
    %772 = vmatpush1.msra.mxu0 0.0
    %773 = vmatprep.subr.mxu0 0.0
    %774 = vmatpush1.msra.mxu0 0.0
    %775 = vmatprep.subr.mxu0 0.0
    %776 = vmatpush1.msra.mxu0 0.0
    %777 = vmatprep.subr.mxu0 0.0
    %778 = vmatpush1.msra.mxu0 0.0
    %779 = vmatprep.subr.mxu0 0.0
    %780 = vmatpush1.msra.mxu0 0.0
    %781 = vmatprep.subr.mxu0 0.0
    %782 = vmatpush1.msra.mxu0 0.0
    %783 = vmatprep.subr.mxu0 0.0
    %784 = vmatpush1.msra.mxu0 0.0
    %785 = vmatprep.subr.mxu0 0.0
    %786 = vmatpush1.msra.mxu0 0.0
    %787 = vmatprep.subr.mxu0 0.0
    %788 = vmatpush1.msra.mxu0 0.0
    %789 = vmatprep.subr.mxu0 0.0
    %790 = vmatpush1.msra.mxu0 0.0
    %791 = vmatprep.subr.mxu0 0.0
    %792 = vmatpush1.msra.mxu0 0.0
    %793 = vmatprep.subr.mxu0 0.0
    %794 = vmatpush1.msra.mxu0 0.0
    %795 = vmatprep.subr.mxu0 0.0
    %796 = vmatpush1.msra.mxu0 0.0
    %797 = vmatprep.subr.mxu0 0.0
    %798 = vmatpush1.msra.mxu0 0.0
    %799 = vmatprep.subr.mxu0 0.0
    %800 = vmatpush1.msra.mxu0 0.0
    %801 = vmatprep.mubr.f32.mxu0 0.0
    %v802 = vand.u32 %v563, 4294901760
    %803 = vmatmul.mubr.f32.gmra.mrb[0].mxu0 %v802
    %v804 = vpop.f32.mrb[0].mxu0
    %v805 = vadd.f32 %v659, %v804
    %v806 = vpop.f32.mrb[0].mxu0
    %807 = vmatprep.mubr.f32.mxu0 0.0
    %v808 = vand.u32 %v566, 4294901760
    %809 = vmatmul.mubr.f32.gmra.mrb[0].mxu0 %v808
    %v810 = vpop.f32.mrb[0].mxu0
    %v811 = vadd.f32 %v669, %v810
    %v812 = vpop.f32.mrb[0].mxu0
    %813 = vmatprep.mubr.f32.mxu0 0.0
    %v814 = vand.u32 %v569, 4294901760
    %815 = vmatmul.mubr.f32.gmra.mrb[0].mxu0 %v814
    %v816 = vpop.f32.mrb[0].mxu0
    %v817 = vadd.f32 %v679, %v816
    %v818 = vpop.f32.mrb[0].mxu0
    %819 = vmatprep.mubr.f32.mxu0 0.0
    %v820 = vand.u32 %v572, 4294901760
    %821 = vmatmul.mubr.f32.gmra.mrb[0].mxu0 %v820
    %v822 = vpop.f32.mrb[0].mxu0
    %v823 = vadd.f32 %v689, %v822
    %v824 = vpop.f32.mrb[0].mxu0
    %825 = vmatprep.mubr.f32.mxu0 0.0
    %v826 = vand.u32 %v575, 4294901760
    %827 = vmatmul.mubr.f32.gmra.mrb[0].mxu0 %v826
    %v828 = vpop.f32.mrb[0].mxu0
    %v829 = vadd.f32 %v699, %v828
    %v830 = vpop.f32.mrb[0].mxu0
    %831 = vmatprep.mubr.f32.mxu0 0.0
    %v832 = vand.u32 %v578, 4294901760
    %833 = vmatmul.mubr.f32.gmra.mrb[0].mxu0 %v832
    %v834 = vpop.f32.mrb[0].mxu0
    %v835 = vadd.f32 %v709, %v834
    %v836 = vpop.f32.mrb[0].mxu0
    %837 = vmatprep.mubr.f32.mxu0 0.0
    %v838 = vand.u32 %v581, 4294901760
    %839 = vmatmul.mubr.f32.gmra.mrb[0].mxu0 %v838
    %v840 = vpop.f32.mrb[0].mxu0
    %v841 = vadd.f32 %v719, %v840
    %v842 = vpop.f32.mrb[0].mxu0
    %843 = vmatprep.mubr.f32.mxu0 0.0
    %v844 = vand.u32 %v584, 4294901760
    %845 = vmatmul.mubr.f32.gmra.mrb[0].mxu0 %v844
    %v846 = vpop.f32.mrb[0].mxu0
    %v847 = vadd.f32 %v729, %v846
    %v848 = vpop.f32.mrb[0].mxu0
    %849 = vdwg.mxu0
    %850 = vmatprep.subr.mxu0 0.0
    %v851 = vand.u32 %v556, 4294901760
    %v852 = vsub.f32 %v556, %v851
    %853 = vmatpush1.msra.mxu0 %v852
    %854 = vmatprep.subr.mxu0 0.0
    %855 = vmatpush1.msra.mxu0 0.0
    %856 = vmatprep.subr.mxu0 0.0
    %857 = vmatpush1.msra.mxu0 0.0
    %858 = vmatprep.subr.mxu0 0.0
    %859 = vmatpush1.msra.mxu0 0.0
    %860 = vmatprep.subr.mxu0 0.0
    %861 = vmatpush1.msra.mxu0 0.0
    %862 = vmatprep.subr.mxu0 0.0
    %863 = vmatpush1.msra.mxu0 0.0
    %864 = vmatprep.subr.mxu0 0.0
    %865 = vmatpush1.msra.mxu0 0.0
    %866 = vmatprep.subr.mxu0 0.0
    %867 = vmatpush1.msra.mxu0 0.0
    %868 = vmatprep.subr.mxu0 0.0
    %869 = vmatpush1.msra.mxu0 0.0
    %870 = vmatprep.subr.mxu0 0.0
    %871 = vmatpush1.msra.mxu0 0.0
    %872 = vmatprep.subr.mxu0 0.0
    %873 = vmatpush1.msra.mxu0 0.0
    %874 = vmatprep.subr.mxu0 0.0
    %875 = vmatpush1.msra.mxu0 0.0
    %876 = vmatprep.subr.mxu0 0.0
    %877 = vmatpush1.msra.mxu0 0.0
    %878 = vmatprep.subr.mxu0 0.0
    %879 = vmatpush1.msra.mxu0 0.0
    %880 = vmatprep.subr.mxu0 0.0
    %881 = vmatpush1.msra.mxu0 0.0
    %882 = vmatprep.subr.mxu0 0.0
    %883 = vmatpush1.msra.mxu0 0.0
    %884 = vmatprep.subr.mxu0 0.0
    %885 = vmatpush1.msra.mxu0 0.0
    %886 = vmatprep.subr.mxu0 0.0
    %887 = vmatpush1.msra.mxu0 0.0
    %888 = vmatprep.subr.mxu0 0.0
    %889 = vmatpush1.msra.mxu0 0.0
    %890 = vmatprep.subr.mxu0 0.0
    %891 = vmatpush1.msra.mxu0 0.0
    %892 = vmatprep.subr.mxu0 0.0
    %893 = vmatpush1.msra.mxu0 0.0
    %894 = vmatprep.subr.mxu0 0.0
    %895 = vmatpush1.msra.mxu0 0.0
    %896 = vmatprep.subr.mxu0 0.0
    %897 = vmatpush1.msra.mxu0 0.0
    %898 = vmatprep.subr.mxu0 0.0
    %899 = vmatpush1.msra.mxu0 0.0
    %900 = vmatprep.subr.mxu0 0.0
    %901 = vmatpush1.msra.mxu0 0.0
    %902 = vmatprep.subr.mxu0 0.0
    %903 = vmatpush1.msra.mxu0 0.0
    %904 = vmatprep.subr.mxu0 0.0
    %905 = vmatpush1.msra.mxu0 0.0
    %906 = vmatprep.subr.mxu0 0.0
    %907 = vmatpush1.msra.mxu0 0.0
    %908 = vmatprep.subr.mxu0 0.0
    %909 = vmatpush1.msra.mxu0 0.0
    %910 = vmatprep.subr.mxu0 0.0
    %911 = vmatpush1.msra.mxu0 0.0
    %912 = vmatprep.subr.mxu0 0.0
    %913 = vmatpush1.msra.mxu0 0.0
    %914 = vmatprep.subr.mxu0 0.0
    %915 = vmatpush1.msra.mxu0 0.0
    %916 = vmatprep.mubr.f32.mxu0 0.0
    %v917 = vand.u32 %v563, 4294901760
    %v918 = vsub.f32 %v563, %v917
    %919 = vmatmul.mubr.f32.gmra.mrb[0].mxu0 %v918
    %v920 = vpop.f32.mrb[0].mxu0
    %v921 = vadd.f32 %v805, %v920
    %v922 = vpop.f32.mrb[0].mxu0
    %923 = vmatprep.mubr.f32.mxu0 0.0
    %v924 = vand.u32 %v566, 4294901760
    %v925 = vsub.f32 %v566, %v924
    %926 = vmatmul.mubr.f32.gmra.mrb[0].mxu0 %v925
    %v927 = vpop.f32.mrb[0].mxu0
    %v928 = vadd.f32 %v811, %v927
    %v929 = vpop.f32.mrb[0].mxu0
    %930 = vmatprep.mubr.f32.mxu0 0.0
    %v931 = vand.u32 %v569, 4294901760
    %v932 = vsub.f32 %v569, %v931
    %933 = vmatmul.mubr.f32.gmra.mrb[0].mxu0 %v932
    %v934 = vpop.f32.mrb[0].mxu0
    %v935 = vadd.f32 %v817, %v934
    %v936 = vpop.f32.mrb[0].mxu0
    %937 = vmatprep.mubr.f32.mxu0 0.0
    %v938 = vand.u32 %v572, 4294901760
    %v939 = vsub.f32 %v572, %v938
    %940 = vmatmul.mubr.f32.gmra.mrb[0].mxu0 %v939
    %v941 = vpop.f32.mrb[0].mxu0
    %v942 = vadd.f32 %v823, %v941
    %v943 = vpop.f32.mrb[0].mxu0
    %944 = vmatprep.mubr.f32.mxu0 0.0
    %v945 = vand.u32 %v575, 4294901760
    %v946 = vsub.f32 %v575, %v945
    %947 = vmatmul.mubr.f32.gmra.mrb[0].mxu0 %v946
    %v948 = vpop.f32.mrb[0].mxu0
    %v949 = vadd.f32 %v829, %v948
    %v950 = vpop.f32.mrb[0].mxu0
    %951 = vmatprep.mubr.f32.mxu0 0.0
    %v952 = vand.u32 %v578, 4294901760
    %v953 = vsub.f32 %v578, %v952
    %954 = vmatmul.mubr.f32.gmra.mrb[0].mxu0 %v953
    %v955 = vpop.f32.mrb[0].mxu0
    %v956 = vadd.f32 %v835, %v955
    %v957 = vpop.f32.mrb[0].mxu0
    %958 = vmatprep.mubr.f32.mxu0 0.0
    %v959 = vand.u32 %v581, 4294901760
    %v960 = vsub.f32 %v581, %v959
    %961 = vmatmul.mubr.f32.gmra.mrb[0].mxu0 %v960
    %v962 = vpop.f32.mrb[0].mxu0
    %v963 = vadd.f32 %v841, %v962
    %v964 = vpop.f32.mrb[0].mxu0
    %965 = vmatprep.mubr.f32.mxu0 0.0
    %v966 = vand.u32 %v584, 4294901760
    %v967 = vsub.f32 %v584, %v966
    %968 = vmatmul.mubr.f32.gmra.mrb[0].mxu0 %v967
    %v969 = vpop.f32.mrb[0].mxu0
    %v970 = vadd.f32 %v847, %v969
    %v971 = vpop.f32.mrb[0].mxu0
    %972 = vdwg.mxu0
    %973 = vmatprep.subr.mxu0 0.0
    %v974 = vand.u32 %v556, 4294901760
    %975 = vmatpush1.msra.mxu0 %v974
    %976 = vmatprep.subr.mxu0 0.0
    %977 = vmatpush1.msra.mxu0 0.0
    %978 = vmatprep.subr.mxu0 0.0
    %979 = vmatpush1.msra.mxu0 0.0
    %980 = vmatprep.subr.mxu0 0.0
    %981 = vmatpush1.msra.mxu0 0.0
    %982 = vmatprep.subr.mxu0 0.0
    %983 = vmatpush1.msra.mxu0 0.0
    %984 = vmatprep.subr.mxu0 0.0
    %985 = vmatpush1.msra.mxu0 0.0
    %986 = vmatprep.subr.mxu0 0.0
    %987 = vmatpush1.msra.mxu0 0.0
    %988 = vmatprep.subr.mxu0 0.0
    %989 = vmatpush1.msra.mxu0 0.0
    %990 = vmatprep.subr.mxu0 0.0
    %991 = vmatpush1.msra.mxu0 0.0
    %992 = vmatprep.subr.mxu0 0.0
    %993 = vmatpush1.msra.mxu0 0.0
    %994 = vmatprep.subr.mxu0 0.0
    %995 = vmatpush1.msra.mxu0 0.0
    %996 = vmatprep.subr.mxu0 0.0
    %997 = vmatpush1.msra.mxu0 0.0
    %998 = vmatprep.subr.mxu0 0.0
    %999 = vmatpush1.msra.mxu0 0.0
    %1000 = vmatprep.subr.mxu0 0.0
    %1001 = vmatpush1.msra.mxu0 0.0
    %1002 = vmatprep.subr.mxu0 0.0
    %1003 = vmatpush1.msra.mxu0 0.0
    %1004 = vmatprep.subr.mxu0 0.0
    %1005 = vmatpush1.msra.mxu0 0.0
    %1006 = vmatprep.subr.mxu0 0.0
    %1007 = vmatpush1.msra.mxu0 0.0
    %1008 = vmatprep.subr.mxu0 0.0
    %1009 = vmatpush1.msra.mxu0 0.0
    %1010 = vmatprep.subr.mxu0 0.0
    %1011 = vmatpush1.msra.mxu0 0.0
    %1012 = vmatprep.subr.mxu0 0.0
    %1013 = vmatpush1.msra.mxu0 0.0
    %1014 = vmatprep.subr.mxu0 0.0
    %1015 = vmatpush1.msra.mxu0 0.0
    %1016 = vmatprep.subr.mxu0 0.0
    %1017 = vmatpush1.msra.mxu0 0.0
    %1018 = vmatprep.subr.mxu0 0.0
    %1019 = vmatpush1.msra.mxu0 0.0
    %1020 = vmatprep.subr.mxu0 0.0
    %1021 = vmatpush1.msra.mxu0 0.0
    %1022 = vmatprep.subr.mxu0 0.0
    %1023 = vmatpush1.msra.mxu0 0.0
    %1024 = vmatprep.subr.mxu0 0.0
    %1025 = vmatpush1.msra.mxu0 0.0
    %1026 = vmatprep.subr.mxu0 0.0
    %1027 = vmatpush1.msra.mxu0 0.0
    %1028 = vmatprep.subr.mxu0 0.0
    %1029 = vmatpush1.msra.mxu0 0.0
    %1030 = vmatprep.subr.mxu0 0.0
    %1031 = vmatpush1.msra.mxu0 0.0
    %1032 = vmatprep.subr.mxu0 0.0
    %1033 = vmatpush1.msra.mxu0 0.0
    %1034 = vmatprep.subr.mxu0 0.0
    %1035 = vmatpush1.msra.mxu0 0.0
    %1036 = vmatprep.subr.mxu0 0.0
    %1037 = vmatpush1.msra.mxu0 0.0
    %1038 = vmatprep.mubr.f32.mxu0 0.0
    %v1039 = vand.u32 %v563, 4294901760
    %v1040 = vsub.f32 %v563, %v1039
    %v1041 = vand.u32 %v1040, 4294901760
    %1042 = vmatmul.mubr.f32.gmra.mrb[0].mxu0 %v1041
    %v1043 = vpop.f32.mrb[0].mxu0
    %v1044 = vadd.f32 %v921, %v1043
    %v1045 = vpop.f32.mrb[0].mxu0
    %1046 = vmatprep.mubr.f32.mxu0 0.0
    %v1047 = vand.u32 %v566, 4294901760
    %v1048 = vsub.f32 %v566, %v1047
    %v1049 = vand.u32 %v1048, 4294901760
    %1050 = vmatmul.mubr.f32.gmra.mrb[0].mxu0 %v1049
    %v1051 = vpop.f32.mrb[0].mxu0
    %v1052 = vadd.f32 %v928, %v1051
    %v1053 = vpop.f32.mrb[0].mxu0
    %1054 = vmatprep.mubr.f32.mxu0 0.0
    %v1055 = vand.u32 %v569, 4294901760
    %v1056 = vsub.f32 %v569, %v1055
    %v1057 = vand.u32 %v1056, 4294901760
    %1058 = vmatmul.mubr.f32.gmra.mrb[0].mxu0 %v1057
    %v1059 = vpop.f32.mrb[0].mxu0
    %v1060 = vadd.f32 %v935, %v1059
    %v1061 = vpop.f32.mrb[0].mxu0
    %1062 = vmatprep.mubr.f32.mxu0 0.0
    %v1063 = vand.u32 %v572, 4294901760
    %v1064 = vsub.f32 %v572, %v1063
    %v1065 = vand.u32 %v1064, 4294901760
    %1066 = vmatmul.mubr.f32.gmra.mrb[0].mxu0 %v1065
    %v1067 = vpop.f32.mrb[0].mxu0
    %v1068 = vadd.f32 %v942, %v1067
    %v1069 = vpop.f32.mrb[0].mxu0
    %1070 = vmatprep.mubr.f32.mxu0 0.0
    %v1071 = vand.u32 %v575, 4294901760
    %v1072 = vsub.f32 %v575, %v1071
    %v1073 = vand.u32 %v1072, 4294901760
    %1074 = vmatmul.mubr.f32.gmra.mrb[0].mxu0 %v1073
    %v1075 = vpop.f32.mrb[0].mxu0
    %v1076 = vadd.f32 %v949, %v1075
    %v1077 = vpop.f32.mrb[0].mxu0
    %1078 = vmatprep.mubr.f32.mxu0 0.0
    %v1079 = vand.u32 %v578, 4294901760
    %v1080 = vsub.f32 %v578, %v1079
    %v1081 = vand.u32 %v1080, 4294901760
    %1082 = vmatmul.mubr.f32.gmra.mrb[0].mxu0 %v1081
    %v1083 = vpop.f32.mrb[0].mxu0
    %v1084 = vadd.f32 %v956, %v1083
    %v1085 = vpop.f32.mrb[0].mxu0
    %1086 = vmatprep.mubr.f32.mxu0 0.0
    %v1087 = vand.u32 %v581, 4294901760
    %v1088 = vsub.f32 %v581, %v1087
    %v1089 = vand.u32 %v1088, 4294901760
    %1090 = vmatmul.mubr.f32.gmra.mrb[0].mxu0 %v1089
    %v1091 = vpop.f32.mrb[0].mxu0
    %v1092 = vadd.f32 %v963, %v1091
    %v1093 = vpop.f32.mrb[0].mxu0
    %1094 = vmatprep.mubr.f32.mxu0 0.0
    %v1095 = vand.u32 %v584, 4294901760
    %v1096 = vsub.f32 %v584, %v1095
    %v1097 = vand.u32 %v1096, 4294901760
    %1098 = vmatmul.mubr.f32.gmra.mrb[0].mxu0 %v1097
    %v1099 = vpop.f32.mrb[0].mxu0
    %v1100 = vadd.f32 %v970, %v1099
    %v1101 = vpop.f32.mrb[0].mxu0
    %1102 = vdwg.mxu0
    %1103 = vmatprep.subr.mxu0 0.0
    %v1104 = vand.u32 %v556, 4294901760
    %v1105 = vsub.f32 %v556, %v1104
    %v1106 = vand.u32 %v1105, 4294901760
    %1107 = vmatpush1.msra.mxu0 %v1106
    %1108 = vmatprep.subr.mxu0 0.0
    %1109 = vmatpush1.msra.mxu0 0.0
    %1110 = vmatprep.subr.mxu0 0.0
    %1111 = vmatpush1.msra.mxu0 0.0
    %1112 = vmatprep.subr.mxu0 0.0
    %1113 = vmatpush1.msra.mxu0 0.0
    %1114 = vmatprep.subr.mxu0 0.0
    %1115 = vmatpush1.msra.mxu0 0.0
    %1116 = vmatprep.subr.mxu0 0.0
    %1117 = vmatpush1.msra.mxu0 0.0
    %1118 = vmatprep.subr.mxu0 0.0
    %1119 = vmatpush1.msra.mxu0 0.0
    %1120 = vmatprep.subr.mxu0 0.0
    %1121 = vmatpush1.msra.mxu0 0.0
    %1122 = vmatprep.subr.mxu0 0.0
    %1123 = vmatpush1.msra.mxu0 0.0
    %1124 = vmatprep.subr.mxu0 0.0
    %1125 = vmatpush1.msra.mxu0 0.0
    %1126 = vmatprep.subr.mxu0 0.0
    %1127 = vmatpush1.msra.mxu0 0.0
    %1128 = vmatprep.subr.mxu0 0.0
    %1129 = vmatpush1.msra.mxu0 0.0
    %1130 = vmatprep.subr.mxu0 0.0
    %1131 = vmatpush1.msra.mxu0 0.0
    %1132 = vmatprep.subr.mxu0 0.0
    %1133 = vmatpush1.msra.mxu0 0.0
    %1134 = vmatprep.subr.mxu0 0.0
    %1135 = vmatpush1.msra.mxu0 0.0
    %1136 = vmatprep.subr.mxu0 0.0
    %1137 = vmatpush1.msra.mxu0 0.0
    %1138 = vmatprep.subr.mxu0 0.0
    %1139 = vmatpush1.msra.mxu0 0.0
    %1140 = vmatprep.subr.mxu0 0.0
    %1141 = vmatpush1.msra.mxu0 0.0
    %1142 = vmatprep.subr.mxu0 0.0
    %1143 = vmatpush1.msra.mxu0 0.0
    %1144 = vmatprep.subr.mxu0 0.0
    %1145 = vmatpush1.msra.mxu0 0.0
    %1146 = vmatprep.subr.mxu0 0.0
    %1147 = vmatpush1.msra.mxu0 0.0
    %1148 = vmatprep.subr.mxu0 0.0
    %1149 = vmatpush1.msra.mxu0 0.0
    %1150 = vmatprep.subr.mxu0 0.0
    %1151 = vmatpush1.msra.mxu0 0.0
    %1152 = vmatprep.subr.mxu0 0.0
    %1153 = vmatpush1.msra.mxu0 0.0
    %1154 = vmatprep.subr.mxu0 0.0
    %1155 = vmatpush1.msra.mxu0 0.0
    %1156 = vmatprep.subr.mxu0 0.0
    %1157 = vmatpush1.msra.mxu0 0.0
    %1158 = vmatprep.subr.mxu0 0.0
    %1159 = vmatpush1.msra.mxu0 0.0
    %1160 = vmatprep.subr.mxu0 0.0
    %1161 = vmatpush1.msra.mxu0 0.0
    %1162 = vmatprep.subr.mxu0 0.0
    %1163 = vmatpush1.msra.mxu0 0.0
    %1164 = vmatprep.subr.mxu0 0.0
    %1165 = vmatpush1.msra.mxu0 0.0
    %1166 = vmatprep.subr.mxu0 0.0
    %1167 = vmatpush1.msra.mxu0 0.0
    %1168 = vmatprep.subr.mxu0 0.0
    %1169 = vmatpush1.msra.mxu0 0.0
    %1170 = vmatprep.mubr.f32.mxu0 0.0
    %v1171 = vand.u32 %v563, 4294901760
    %1172 = vmatmul.mubr.f32.gmra.mrb[0].mxu0 %v1171
    %v1173 = vpop.f32.mrb[0].mxu0
    %v1174 = vadd.f32 %v1044, %v1173
    %v1175 = vpop.f32.mrb[0].mxu0
    %1176 = vmatprep.mubr.f32.mxu0 0.0
    %v1177 = vand.u32 %v566, 4294901760
    %1178 = vmatmul.mubr.f32.gmra.mrb[0].mxu0 %v1177
    %v1179 = vpop.f32.mrb[0].mxu0
    %v1180 = vadd.f32 %v1052, %v1179
    %v1181 = vpop.f32.mrb[0].mxu0
    %1182 = vmatprep.mubr.f32.mxu0 0.0
    %v1183 = vand.u32 %v569, 4294901760
    %1184 = vmatmul.mubr.f32.gmra.mrb[0].mxu0 %v1183
    %v1185 = vpop.f32.mrb[0].mxu0
    %v1186 = vadd.f32 %v1060, %v1185
    %v1187 = vpop.f32.mrb[0].mxu0
    %1188 = vmatprep.mubr.f32.mxu0 0.0
    %v1189 = vand.u32 %v572, 4294901760
    %1190 = vmatmul.mubr.f32.gmra.mrb[0].mxu0 %v1189
    %v1191 = vpop.f32.mrb[0].mxu0
    %v1192 = vadd.f32 %v1068, %v1191
    %v1193 = vpop.f32.mrb[0].mxu0
    %1194 = vmatprep.mubr.f32.mxu0 0.0
    %v1195 = vand.u32 %v575, 4294901760
    %1196 = vmatmul.mubr.f32.gmra.mrb[0].mxu0 %v1195
    %v1197 = vpop.f32.mrb[0].mxu0
    %v1198 = vadd.f32 %v1076, %v1197
    %v1199 = vpop.f32.mrb[0].mxu0
    %1200 = vmatprep.mubr.f32.mxu0 0.0
    %v1201 = vand.u32 %v578, 4294901760
    %1202 = vmatmul.mubr.f32.gmra.mrb[0].mxu0 %v1201
    %v1203 = vpop.f32.mrb[0].mxu0
    %v1204 = vadd.f32 %v1084, %v1203
    %v1205 = vpop.f32.mrb[0].mxu0
    %1206 = vmatprep.mubr.f32.mxu0 0.0
    %v1207 = vand.u32 %v581, 4294901760
    %1208 = vmatmul.mubr.f32.gmra.mrb[0].mxu0 %v1207
    %v1209 = vpop.f32.mrb[0].mxu0
    %v1210 = vadd.f32 %v1092, %v1209
    %v1211 = vpop.f32.mrb[0].mxu0
    %1212 = vmatprep.mubr.f32.mxu0 0.0
    %v1213 = vand.u32 %v584, 4294901760
    %1214 = vmatmul.mubr.f32.gmra.mrb[0].mxu0 %v1213
    %v1215 = vpop.f32.mrb[0].mxu0
    %v1216 = vadd.f32 %v1100, %v1215
    %v1217 = vpop.f32.mrb[0].mxu0
    %1218 = vdwg.mxu0
    %1219 = vmatprep.subr.mxu0 0.0
    %v1220 = vand.u32 %v556, 4294901760
    %1221 = vmatpush1.msra.mxu0 %v1220
    %1222 = vmatprep.subr.mxu0 0.0
    %1223 = vmatpush1.msra.mxu0 0.0
    %1224 = vmatprep.subr.mxu0 0.0
    %1225 = vmatpush1.msra.mxu0 0.0
    %1226 = vmatprep.subr.mxu0 0.0
    %1227 = vmatpush1.msra.mxu0 0.0
    %1228 = vmatprep.subr.mxu0 0.0
    %1229 = vmatpush1.msra.mxu0 0.0
    %1230 = vmatprep.subr.mxu0 0.0
    %1231 = vmatpush1.msra.mxu0 0.0
    %1232 = vmatprep.subr.mxu0 0.0
    %1233 = vmatpush1.msra.mxu0 0.0
    %1234 = vmatprep.subr.mxu0 0.0
    %1235 = vmatpush1.msra.mxu0 0.0
    %1236 = vmatprep.subr.mxu0 0.0
    %1237 = vmatpush1.msra.mxu0 0.0
    %1238 = vmatprep.subr.mxu0 0.0
    %1239 = vmatpush1.msra.mxu0 0.0
    %1240 = vmatprep.subr.mxu0 0.0
    %1241 = vmatpush1.msra.mxu0 0.0
    %1242 = vmatprep.subr.mxu0 0.0
    %1243 = vmatpush1.msra.mxu0 0.0
    %1244 = vmatprep.subr.mxu0 0.0
    %1245 = vmatpush1.msra.mxu0 0.0
    %1246 = vmatprep.subr.mxu0 0.0
    %1247 = vmatpush1.msra.mxu0 0.0
    %1248 = vmatprep.subr.mxu0 0.0
    %1249 = vmatpush1.msra.mxu0 0.0
    %1250 = vmatprep.subr.mxu0 0.0
    %1251 = vmatpush1.msra.mxu0 0.0
    %1252 = vmatprep.subr.mxu0 0.0
    %1253 = vmatpush1.msra.mxu0 0.0
    %1254 = vmatprep.subr.mxu0 0.0
    %1255 = vmatpush1.msra.mxu0 0.0
    %1256 = vmatprep.subr.mxu0 0.0
    %1257 = vmatpush1.msra.mxu0 0.0
    %1258 = vmatprep.subr.mxu0 0.0
    %1259 = vmatpush1.msra.mxu0 0.0
    %1260 = vmatprep.subr.mxu0 0.0
    %1261 = vmatpush1.msra.mxu0 0.0
    %1262 = vmatprep.subr.mxu0 0.0
    %1263 = vmatpush1.msra.mxu0 0.0
    %1264 = vmatprep.subr.mxu0 0.0
    %1265 = vmatpush1.msra.mxu0 0.0
    %1266 = vmatprep.subr.mxu0 0.0
    %1267 = vmatpush1.msra.mxu0 0.0
    %1268 = vmatprep.subr.mxu0 0.0
    %1269 = vmatpush1.msra.mxu0 0.0
    %1270 = vmatprep.subr.mxu0 0.0
    %1271 = vmatpush1.msra.mxu0 0.0
    %1272 = vmatprep.subr.mxu0 0.0
    %1273 = vmatpush1.msra.mxu0 0.0
    %1274 = vmatprep.subr.mxu0 0.0
    %1275 = vmatpush1.msra.mxu0 0.0
    %1276 = vmatprep.subr.mxu0 0.0
    %1277 = vmatpush1.msra.mxu0 0.0
    %1278 = vmatprep.subr.mxu0 0.0
    %1279 = vmatpush1.msra.mxu0 0.0
    %1280 = vmatprep.subr.mxu0 0.0
    %1281 = vmatpush1.msra.mxu0 0.0
    %1282 = vmatprep.subr.mxu0 0.0
    %1283 = vmatpush1.msra.mxu0 0.0
    %1284 = vmatprep.mubr.f32.mxu0 0.0
    %v1285 = vand.u32 %v563, 4294901760
    %1286 = vmatmul.mubr.f32.gmra.mrb[0].mxu0 %v1285
    %v1287 = vpop.f32.mrb[0].mxu0
    %v1288 = vadd.f32 %v1174, %v1287
    %v1289 = vpop.f32.mrb[0].mxu0
    %1290 = vmatprep.mubr.f32.mxu0 0.0
    %v1291 = vand.u32 %v566, 4294901760
    %1292 = vmatmul.mubr.f32.gmra.mrb[0].mxu0 %v1291
    %v1293 = vpop.f32.mrb[0].mxu0
    %v1294 = vadd.f32 %v1180, %v1293
    %v1295 = vpop.f32.mrb[0].mxu0
    %1296 = vmatprep.mubr.f32.mxu0 0.0
    %v1297 = vand.u32 %v569, 4294901760
    %1298 = vmatmul.mubr.f32.gmra.mrb[0].mxu0 %v1297
    %v1299 = vpop.f32.mrb[0].mxu0
    %v1300 = vadd.f32 %v1186, %v1299
    %v1301 = vpop.f32.mrb[0].mxu0
    %1302 = vmatprep.mubr.f32.mxu0 0.0
    %v1303 = vand.u32 %v572, 4294901760
    %1304 = vmatmul.mubr.f32.gmra.mrb[0].mxu0 %v1303
    %v1305 = vpop.f32.mrb[0].mxu0
    %v1306 = vadd.f32 %v1192, %v1305
    %v1307 = vpop.f32.mrb[0].mxu0
    %1308 = vmatprep.mubr.f32.mxu0 0.0
    %v1309 = vand.u32 %v575, 4294901760
    %1310 = vmatmul.mubr.f32.gmra.mrb[0].mxu0 %v1309
    %v1311 = vpop.f32.mrb[0].mxu0
    %v1312 = vadd.f32 %v1198, %v1311
    %v1313 = vpop.f32.mrb[0].mxu0
    %1314 = vmatprep.mubr.f32.mxu0 0.0
    %v1315 = vand.u32 %v578, 4294901760
    %1316 = vmatmul.mubr.f32.gmra.mrb[0].mxu0 %v1315
    %v1317 = vpop.f32.mrb[0].mxu0
    %v1318 = vadd.f32 %v1204, %v1317
    %v1319 = vpop.f32.mrb[0].mxu0
    %1320 = vmatprep.mubr.f32.mxu0 0.0
    %v1321 = vand.u32 %v581, 4294901760
    %1322 = vmatmul.mubr.f32.gmra.mrb[0].mxu0 %v1321
    %v1323 = vpop.f32.mrb[0].mxu0
    %v1324 = vadd.f32 %v1210, %v1323
    %v1325 = vpop.f32.mrb[0].mxu0
    %1326 = vmatprep.mubr.f32.mxu0 0.0
    %v1327 = vand.u32 %v584, 4294901760
    %1328 = vmatmul.mubr.f32.gmra.mrb[0].mxu0 %v1327
    %v1329 = vpop.f32.mrb[0].mxu0
    %v1330 = vadd.f32 %v1216, %v1329
    %v1331 = vpop.f32.mrb[0].mxu0
    %1332 = vdwg.mxu0
    %v1333 = vmax.f32 %v1288, 0.0
    %v1334 = vmax.f32 %v1294, 0.0
    %v1335 = vmax.f32 %v1300, 0.0
    %v1336 = vmax.f32 %v1306, 0.0
    %v1337 = vmax.f32 %v1312, 0.0
    %v1338 = vmax.f32 %v1318, 0.0
    %v1339 = vmax.f32 %v1324, 0.0
    %v1340 = vmax.f32 %v1330, 0.0
    %v1341 = vld [vmem:[%s7] sm:$0xff]
    %v1342 = vld [vmem:[%s7 + $0x8] sm:$0xff]
    %v1343 = vld [vmem:[%s7 + $0x10] sm:$0xff]
    %v1344 = vld [vmem:[%s7 + $0x18] sm:$0xff]
    %v1345 = vld [vmem:[%s7 + $0x20] sm:$0xff]
    %v1346 = vld [vmem:[%s7 + $0x28] sm:$0xff]
    %v1347 = vld [vmem:[%s7 + $0x30] sm:$0xff]
    %v1348 = vld [vmem:[%s7 + $0x38] sm:$0xff]
    %v1349 = vld [vmem:[%s7 + $0x40] sm:$0xff]
    %v1350 = vld [vmem:[%s7 + $0x48] sm:$0xff]
    %v1351 = vld [vmem:[%s7 + $0x50] sm:$0xff]
    %v1352 = vld [vmem:[%s7 + $0x58] sm:$0xff]
    %v1353 = vld [vmem:[%s7 + $0x60] sm:$0xff]
    %v1354 = vld [vmem:[%s7 + $0x68] sm:$0xff]
    %v1355 = vld [vmem:[%s7 + $0x70] sm:$0xff]
    %v1356 = vld [vmem:[%s7 + $0x78] sm:$0xff]
    %v1357 = vlaneseq
    %v1358 = vshrl.u32 %v1357, 7
    %v1359 = vsub.s32 0, %v1358
    %v1360 = vrot.slane %v39, %v1359
    %1361 = vmatprep.subr.mxu0 0.0
    %v1362 = vand.u32 %v1341, 4294901760
    %1363 = vmatpush1.msra.mxu0 %v1362
    %1364 = vmatprep.subr.mxu0 0.0
    %v1365 = vand.u32 %v1342, 4294901760
    %1366 = vmatpush1.msra.mxu0 %v1365
    %1367 = vmatprep.subr.mxu0 0.0
    %v1368 = vand.u32 %v1343, 4294901760
    %1369 = vmatpush1.msra.mxu0 %v1368
    %1370 = vmatprep.subr.mxu0 0.0
    %v1371 = vand.u32 %v1344, 4294901760
    %1372 = vmatpush1.msra.mxu0 %v1371
    %1373 = vmatprep.subr.mxu0 0.0
    %v1374 = vand.u32 %v1345, 4294901760
    %1375 = vmatpush1.msra.mxu0 %v1374
    %1376 = vmatprep.subr.mxu0 0.0
    %v1377 = vand.u32 %v1346, 4294901760
    %1378 = vmatpush1.msra.mxu0 %v1377
    %1379 = vmatprep.subr.mxu0 0.0
    %v1380 = vand.u32 %v1347, 4294901760
    %1381 = vmatpush1.msra.mxu0 %v1380
    %1382 = vmatprep.subr.mxu0 0.0
    %v1383 = vand.u32 %v1348, 4294901760
    %1384 = vmatpush1.msra.mxu0 %v1383
    %1385 = vmatprep.subr.mxu0 0.0
    %v1386 = vand.u32 %v1349, 4294901760
    %1387 = vmatpush1.msra.mxu0 %v1386
    %1388 = vmatprep.subr.mxu0 0.0
    %v1389 = vand.u32 %v1350, 4294901760
    %1390 = vmatpush1.msra.mxu0 %v1389
    %1391 = vmatprep.subr.mxu0 0.0
    %v1392 = vand.u32 %v1351, 4294901760
    %1393 = vmatpush1.msra.mxu0 %v1392
    %1394 = vmatprep.subr.mxu0 0.0
    %v1395 = vand.u32 %v1352, 4294901760
    %1396 = vmatpush1.msra.mxu0 %v1395
    %1397 = vmatprep.subr.mxu0 0.0
    %v1398 = vand.u32 %v1353, 4294901760
    %1399 = vmatpush1.msra.mxu0 %v1398
    %1400 = vmatprep.subr.mxu0 0.0
    %v1401 = vand.u32 %v1354, 4294901760
    %1402 = vmatpush1.msra.mxu0 %v1401
    %1403 = vmatprep.subr.mxu0 0.0
    %v1404 = vand.u32 %v1355, 4294901760
    %1405 = vmatpush1.msra.mxu0 %v1404
    %1406 = vmatprep.subr.mxu0 0.0
    %v1407 = vand.u32 %v1356, 4294901760
    %1408 = vmatpush1.msra.mxu0 %v1407
    %1409 = vmatprep.subr.mxu0 0.0
    %1410 = vmatpush1.msra.mxu0 0.0
    %1411 = vmatprep.subr.mxu0 0.0
    %1412 = vmatpush1.msra.mxu0 0.0
    %1413 = vmatprep.subr.mxu0 0.0
    %1414 = vmatpush1.msra.mxu0 0.0
    %1415 = vmatprep.subr.mxu0 0.0
    %1416 = vmatpush1.msra.mxu0 0.0
    %1417 = vmatprep.subr.mxu0 0.0
    %1418 = vmatpush1.msra.mxu0 0.0
    %1419 = vmatprep.subr.mxu0 0.0
    %1420 = vmatpush1.msra.mxu0 0.0
    %1421 = vmatprep.subr.mxu0 0.0
    %1422 = vmatpush1.msra.mxu0 0.0
    %1423 = vmatprep.subr.mxu0 0.0
    %1424 = vmatpush1.msra.mxu0 0.0
    %1425 = vmatprep.subr.mxu0 0.0
    %1426 = vmatpush1.msra.mxu0 0.0
    %1427 = vmatprep.subr.mxu0 0.0
    %1428 = vmatpush1.msra.mxu0 0.0
    %1429 = vmatprep.subr.mxu0 0.0
    %1430 = vmatpush1.msra.mxu0 0.0
    %1431 = vmatprep.subr.mxu0 0.0
    %1432 = vmatpush1.msra.mxu0 0.0
    %1433 = vmatprep.subr.mxu0 0.0
    %1434 = vmatpush1.msra.mxu0 0.0
    %1435 = vmatprep.subr.mxu0 0.0
    %1436 = vmatpush1.msra.mxu0 0.0
    %1437 = vmatprep.subr.mxu0 0.0
    %1438 = vmatpush1.msra.mxu0 0.0
    %1439 = vmatprep.subr.mxu0 0.0
    %1440 = vmatpush1.msra.mxu0 0.0
    %1441 = vmatprep.mubr.f32.mxu0 0.0
    %v1442 = vand.u32 %v1333, 4294901760
    %v1443 = vsub.f32 %v1333, %v1442
    %v1444 = vand.u32 %v1443, 4294901760
    %v1445 = vsub.f32 %v1443, %v1444
    %v1446 = vand.u32 %v1445, 4294901760
    %1447 = vmatmul.mubr.f32.gmra.mrb[0].mxu0 %v1446
    %v1448 = vpop.f32.mrb[0].mxu0
    %v1449 = vadd.f32 %v1360, %v1448
    %v1450 = vpop.f32.mrb[0].mxu0
    %1451 = vmatprep.mubr.f32.mxu0 0.0
    %v1452 = vand.u32 %v1334, 4294901760
    %v1453 = vsub.f32 %v1334, %v1452
    %v1454 = vand.u32 %v1453, 4294901760
    %v1455 = vsub.f32 %v1453, %v1454
    %v1456 = vand.u32 %v1455, 4294901760
    %1457 = vmatmul.mubr.f32.gmra.mrb[0].mxu0 %v1456
    %v1458 = vpop.f32.mrb[0].mxu0
    %v1459 = vadd.f32 %v1360, %v1458
    %v1460 = vpop.f32.mrb[0].mxu0
    %1461 = vmatprep.mubr.f32.mxu0 0.0
    %v1462 = vand.u32 %v1335, 4294901760
    %v1463 = vsub.f32 %v1335, %v1462
    %v1464 = vand.u32 %v1463, 4294901760
    %v1465 = vsub.f32 %v1463, %v1464
    %v1466 = vand.u32 %v1465, 4294901760
    %1467 = vmatmul.mubr.f32.gmra.mrb[0].mxu0 %v1466
    %v1468 = vpop.f32.mrb[0].mxu0
    %v1469 = vadd.f32 %v1360, %v1468
    %v1470 = vpop.f32.mrb[0].mxu0
    %1471 = vmatprep.mubr.f32.mxu0 0.0
    %v1472 = vand.u32 %v1336, 4294901760
    %v1473 = vsub.f32 %v1336, %v1472
    %v1474 = vand.u32 %v1473, 4294901760
    %v1475 = vsub.f32 %v1473, %v1474
    %v1476 = vand.u32 %v1475, 4294901760
    %1477 = vmatmul.mubr.f32.gmra.mrb[0].mxu0 %v1476
    %v1478 = vpop.f32.mrb[0].mxu0
    %v1479 = vadd.f32 %v1360, %v1478
    %v1480 = vpop.f32.mrb[0].mxu0
    %1481 = vmatprep.mubr.f32.mxu0 0.0
    %v1482 = vand.u32 %v1337, 4294901760
    %v1483 = vsub.f32 %v1337, %v1482
    %v1484 = vand.u32 %v1483, 4294901760
    %v1485 = vsub.f32 %v1483, %v1484
    %v1486 = vand.u32 %v1485, 4294901760
    %1487 = vmatmul.mubr.f32.gmra.mrb[0].mxu0 %v1486
    %v1488 = vpop.f32.mrb[0].mxu0
    %v1489 = vadd.f32 %v1360, %v1488
    %v1490 = vpop.f32.mrb[0].mxu0
    %1491 = vmatprep.mubr.f32.mxu0 0.0
    %v1492 = vand.u32 %v1338, 4294901760
    %v1493 = vsub.f32 %v1338, %v1492
    %v1494 = vand.u32 %v1493, 4294901760
    %v1495 = vsub.f32 %v1493, %v1494
    %v1496 = vand.u32 %v1495, 4294901760
    %1497 = vmatmul.mubr.f32.gmra.mrb[0].mxu0 %v1496
    %v1498 = vpop.f32.mrb[0].mxu0
    %v1499 = vadd.f32 %v1360, %v1498
    %v1500 = vpop.f32.mrb[0].mxu0
    %1501 = vmatprep.mubr.f32.mxu0 0.0
    %v1502 = vand.u32 %v1339, 4294901760
    %v1503 = vsub.f32 %v1339, %v1502
    %v1504 = vand.u32 %v1503, 4294901760
    %v1505 = vsub.f32 %v1503, %v1504
    %v1506 = vand.u32 %v1505, 4294901760
    %1507 = vmatmul.mubr.f32.gmra.mrb[0].mxu0 %v1506
    %v1508 = vpop.f32.mrb[0].mxu0
    %v1509 = vadd.f32 %v1360, %v1508
    %v1510 = vpop.f32.mrb[0].mxu0
    %1511 = vmatprep.mubr.f32.mxu0 0.0
    %v1512 = vand.u32 %v1340, 4294901760
    %v1513 = vsub.f32 %v1340, %v1512
    %v1514 = vand.u32 %v1513, 4294901760
    %v1515 = vsub.f32 %v1513, %v1514
    %v1516 = vand.u32 %v1515, 4294901760
    %1517 = vmatmul.mubr.f32.gmra.mrb[0].mxu0 %v1516
    %v1518 = vpop.f32.mrb[0].mxu0
    %v1519 = vadd.f32 %v1360, %v1518
    %v1520 = vpop.f32.mrb[0].mxu0
    %1521 = vdwg.mxu0
    %1522 = vmatprep.subr.mxu0 0.0
    %v1523 = vand.u32 %v1341, 4294901760
    %v1524 = vsub.f32 %v1341, %v1523
    %v1525 = vand.u32 %v1524, 4294901760
    %v1526 = vsub.f32 %v1524, %v1525
    %v1527 = vand.u32 %v1526, 4294901760
    %1528 = vmatpush1.msra.mxu0 %v1527
    %1529 = vmatprep.subr.mxu0 0.0
    %v1530 = vand.u32 %v1342, 4294901760
    %v1531 = vsub.f32 %v1342, %v1530
    %v1532 = vand.u32 %v1531, 4294901760
    %v1533 = vsub.f32 %v1531, %v1532
    %v1534 = vand.u32 %v1533, 4294901760
    %1535 = vmatpush1.msra.mxu0 %v1534
    %1536 = vmatprep.subr.mxu0 0.0
    %v1537 = vand.u32 %v1343, 4294901760
    %v1538 = vsub.f32 %v1343, %v1537
    %v1539 = vand.u32 %v1538, 4294901760
    %v1540 = vsub.f32 %v1538, %v1539
    %v1541 = vand.u32 %v1540, 4294901760
    %1542 = vmatpush1.msra.mxu0 %v1541
    %1543 = vmatprep.subr.mxu0 0.0
    %v1544 = vand.u32 %v1344, 4294901760
    %v1545 = vsub.f32 %v1344, %v1544
    %v1546 = vand.u32 %v1545, 4294901760
    %v1547 = vsub.f32 %v1545, %v1546
    %v1548 = vand.u32 %v1547, 4294901760
    %1549 = vmatpush1.msra.mxu0 %v1548
    %1550 = vmatprep.subr.mxu0 0.0
    %v1551 = vand.u32 %v1345, 4294901760
    %v1552 = vsub.f32 %v1345, %v1551
    %v1553 = vand.u32 %v1552, 4294901760
    %v1554 = vsub.f32 %v1552, %v1553
    %v1555 = vand.u32 %v1554, 4294901760
    %1556 = vmatpush1.msra.mxu0 %v1555
    %1557 = vmatprep.subr.mxu0 0.0
    %v1558 = vand.u32 %v1346, 4294901760
    %v1559 = vsub.f32 %v1346, %v1558
    %v1560 = vand.u32 %v1559, 4294901760
    %v1561 = vsub.f32 %v1559, %v1560
    %v1562 = vand.u32 %v1561, 4294901760
    %1563 = vmatpush1.msra.mxu0 %v1562
    %1564 = vmatprep.subr.mxu0 0.0
    %v1565 = vand.u32 %v1347, 4294901760
    %v1566 = vsub.f32 %v1347, %v1565
    %v1567 = vand.u32 %v1566, 4294901760
    %v1568 = vsub.f32 %v1566, %v1567
    %v1569 = vand.u32 %v1568, 4294901760
    %1570 = vmatpush1.msra.mxu0 %v1569
    %1571 = vmatprep.subr.mxu0 0.0
    %v1572 = vand.u32 %v1348, 4294901760
    %v1573 = vsub.f32 %v1348, %v1572
    %v1574 = vand.u32 %v1573, 4294901760
    %v1575 = vsub.f32 %v1573, %v1574
    %v1576 = vand.u32 %v1575, 4294901760
    %1577 = vmatpush1.msra.mxu0 %v1576
    %1578 = vmatprep.subr.mxu0 0.0
    %v1579 = vand.u32 %v1349, 4294901760
    %v1580 = vsub.f32 %v1349, %v1579
    %v1581 = vand.u32 %v1580, 4294901760
    %v1582 = vsub.f32 %v1580, %v1581
    %v1583 = vand.u32 %v1582, 4294901760
    %1584 = vmatpush1.msra.mxu0 %v1583
    %1585 = vmatprep.subr.mxu0 0.0
    %v1586 = vand.u32 %v1350, 4294901760
    %v1587 = vsub.f32 %v1350, %v1586
    %v1588 = vand.u32 %v1587, 4294901760
    %v1589 = vsub.f32 %v1587, %v1588
    %v1590 = vand.u32 %v1589, 4294901760
    %1591 = vmatpush1.msra.mxu0 %v1590
    %1592 = vmatprep.subr.mxu0 0.0
    %v1593 = vand.u32 %v1351, 4294901760
    %v1594 = vsub.f32 %v1351, %v1593
    %v1595 = vand.u32 %v1594, 4294901760
    %v1596 = vsub.f32 %v1594, %v1595
    %v1597 = vand.u32 %v1596, 4294901760
    %1598 = vmatpush1.msra.mxu0 %v1597
    %1599 = vmatprep.subr.mxu0 0.0
    %v1600 = vand.u32 %v1352, 4294901760
    %v1601 = vsub.f32 %v1352, %v1600
    %v1602 = vand.u32 %v1601, 4294901760
    %v1603 = vsub.f32 %v1601, %v1602
    %v1604 = vand.u32 %v1603, 4294901760
    %1605 = vmatpush1.msra.mxu0 %v1604
    %1606 = vmatprep.subr.mxu0 0.0
    %v1607 = vand.u32 %v1353, 4294901760
    %v1608 = vsub.f32 %v1353, %v1607
    %v1609 = vand.u32 %v1608, 4294901760
    %v1610 = vsub.f32 %v1608, %v1609
    %v1611 = vand.u32 %v1610, 4294901760
    %1612 = vmatpush1.msra.mxu0 %v1611
    %1613 = vmatprep.subr.mxu0 0.0
    %v1614 = vand.u32 %v1354, 4294901760
    %v1615 = vsub.f32 %v1354, %v1614
    %v1616 = vand.u32 %v1615, 4294901760
    %v1617 = vsub.f32 %v1615, %v1616
    %v1618 = vand.u32 %v1617, 4294901760
    %1619 = vmatpush1.msra.mxu0 %v1618
    %1620 = vmatprep.subr.mxu0 0.0
    %v1621 = vand.u32 %v1355, 4294901760
    %v1622 = vsub.f32 %v1355, %v1621
    %v1623 = vand.u32 %v1622, 4294901760
    %v1624 = vsub.f32 %v1622, %v1623
    %v1625 = vand.u32 %v1624, 4294901760
    %1626 = vmatpush1.msra.mxu0 %v1625
    %1627 = vmatprep.subr.mxu0 0.0
    %v1628 = vand.u32 %v1356, 4294901760
    %v1629 = vsub.f32 %v1356, %v1628
    %v1630 = vand.u32 %v1629, 4294901760
    %v1631 = vsub.f32 %v1629, %v1630
    %v1632 = vand.u32 %v1631, 4294901760
    %1633 = vmatpush1.msra.mxu0 %v1632
    %1634 = vmatprep.subr.mxu0 0.0
    %1635 = vmatpush1.msra.mxu0 0.0
    %1636 = vmatprep.subr.mxu0 0.0
    %1637 = vmatpush1.msra.mxu0 0.0
    %1638 = vmatprep.subr.mxu0 0.0
    %1639 = vmatpush1.msra.mxu0 0.0
    %1640 = vmatprep.subr.mxu0 0.0
    %1641 = vmatpush1.msra.mxu0 0.0
    %1642 = vmatprep.subr.mxu0 0.0
    %1643 = vmatpush1.msra.mxu0 0.0
    %1644 = vmatprep.subr.mxu0 0.0
    %1645 = vmatpush1.msra.mxu0 0.0
    %1646 = vmatprep.subr.mxu0 0.0
    %1647 = vmatpush1.msra.mxu0 0.0
    %1648 = vmatprep.subr.mxu0 0.0
    %1649 = vmatpush1.msra.mxu0 0.0
    %1650 = vmatprep.subr.mxu0 0.0
    %1651 = vmatpush1.msra.mxu0 0.0
    %1652 = vmatprep.subr.mxu0 0.0
    %1653 = vmatpush1.msra.mxu0 0.0
    %1654 = vmatprep.subr.mxu0 0.0
    %1655 = vmatpush1.msra.mxu0 0.0
    %1656 = vmatprep.subr.mxu0 0.0
    %1657 = vmatpush1.msra.mxu0 0.0
    %1658 = vmatprep.subr.mxu0 0.0
    %1659 = vmatpush1.msra.mxu0 0.0
    %1660 = vmatprep.subr.mxu0 0.0
    %1661 = vmatpush1.msra.mxu0 0.0
    %1662 = vmatprep.subr.mxu0 0.0
    %1663 = vmatpush1.msra.mxu0 0.0
    %1664 = vmatprep.subr.mxu0 0.0
    %1665 = vmatpush1.msra.mxu0 0.0
    %1666 = vmatprep.mubr.f32.mxu0 0.0
    %v1667 = vand.u32 %v1333, 4294901760
    %1668 = vmatmul.mubr.f32.gmra.mrb[0].mxu0 %v1667
    %v1669 = vpop.f32.mrb[0].mxu0
    %v1670 = vadd.f32 %v1449, %v1669
    %v1671 = vpop.f32.mrb[0].mxu0
    %1672 = vmatprep.mubr.f32.mxu0 0.0
    %v1673 = vand.u32 %v1334, 4294901760
    %1674 = vmatmul.mubr.f32.gmra.mrb[0].mxu0 %v1673
    %v1675 = vpop.f32.mrb[0].mxu0
    %v1676 = vadd.f32 %v1459, %v1675
    %v1677 = vpop.f32.mrb[0].mxu0
    %1678 = vmatprep.mubr.f32.mxu0 0.0
    %v1679 = vand.u32 %v1335, 4294901760
    %1680 = vmatmul.mubr.f32.gmra.mrb[0].mxu0 %v1679
    %v1681 = vpop.f32.mrb[0].mxu0
    %v1682 = vadd.f32 %v1469, %v1681
    %v1683 = vpop.f32.mrb[0].mxu0
    %1684 = vmatprep.mubr.f32.mxu0 0.0
    %v1685 = vand.u32 %v1336, 4294901760
    %1686 = vmatmul.mubr.f32.gmra.mrb[0].mxu0 %v1685
    %v1687 = vpop.f32.mrb[0].mxu0
    %v1688 = vadd.f32 %v1479, %v1687
    %v1689 = vpop.f32.mrb[0].mxu0
    %1690 = vmatprep.mubr.f32.mxu0 0.0
    %v1691 = vand.u32 %v1337, 4294901760
    %1692 = vmatmul.mubr.f32.gmra.mrb[0].mxu0 %v1691
    %v1693 = vpop.f32.mrb[0].mxu0
    %v1694 = vadd.f32 %v1489, %v1693
    %v1695 = vpop.f32.mrb[0].mxu0
    %1696 = vmatprep.mubr.f32.mxu0 0.0
    %v1697 = vand.u32 %v1338, 4294901760
    %1698 = vmatmul.mubr.f32.gmra.mrb[0].mxu0 %v1697
    %v1699 = vpop.f32.mrb[0].mxu0
    %v1700 = vadd.f32 %v1499, %v1699
    %v1701 = vpop.f32.mrb[0].mxu0
    %1702 = vmatprep.mubr.f32.mxu0 0.0
    %v1703 = vand.u32 %v1339, 4294901760
    %1704 = vmatmul.mubr.f32.gmra.mrb[0].mxu0 %v1703
    %v1705 = vpop.f32.mrb[0].mxu0
    %v1706 = vadd.f32 %v1509, %v1705
    %v1707 = vpop.f32.mrb[0].mxu0
    %1708 = vmatprep.mubr.f32.mxu0 0.0
    %v1709 = vand.u32 %v1340, 4294901760
    %1710 = vmatmul.mubr.f32.gmra.mrb[0].mxu0 %v1709
    %v1711 = vpop.f32.mrb[0].mxu0
    %v1712 = vadd.f32 %v1519, %v1711
    %v1713 = vpop.f32.mrb[0].mxu0
    %1714 = vdwg.mxu0
    %1715 = vmatprep.subr.mxu0 0.0
    %v1716 = vand.u32 %v1341, 4294901760
    %v1717 = vsub.f32 %v1341, %v1716
    %1718 = vmatpush1.msra.mxu0 %v1717
    %1719 = vmatprep.subr.mxu0 0.0
    %v1720 = vand.u32 %v1342, 4294901760
    %v1721 = vsub.f32 %v1342, %v1720
    %1722 = vmatpush1.msra.mxu0 %v1721
    %1723 = vmatprep.subr.mxu0 0.0
    %v1724 = vand.u32 %v1343, 4294901760
    %v1725 = vsub.f32 %v1343, %v1724
    %1726 = vmatpush1.msra.mxu0 %v1725
    %1727 = vmatprep.subr.mxu0 0.0
    %v1728 = vand.u32 %v1344, 4294901760
    %v1729 = vsub.f32 %v1344, %v1728
    %1730 = vmatpush1.msra.mxu0 %v1729
    %1731 = vmatprep.subr.mxu0 0.0
    %v1732 = vand.u32 %v1345, 4294901760
    %v1733 = vsub.f32 %v1345, %v1732
    %1734 = vmatpush1.msra.mxu0 %v1733
    %1735 = vmatprep.subr.mxu0 0.0
    %v1736 = vand.u32 %v1346, 4294901760
    %v1737 = vsub.f32 %v1346, %v1736
    %1738 = vmatpush1.msra.mxu0 %v1737
    %1739 = vmatprep.subr.mxu0 0.0
    %v1740 = vand.u32 %v1347, 4294901760
    %v1741 = vsub.f32 %v1347, %v1740
    %1742 = vmatpush1.msra.mxu0 %v1741
    %1743 = vmatprep.subr.mxu0 0.0
    %v1744 = vand.u32 %v1348, 4294901760
    %v1745 = vsub.f32 %v1348, %v1744
    %1746 = vmatpush1.msra.mxu0 %v1745
    %1747 = vmatprep.subr.mxu0 0.0
    %v1748 = vand.u32 %v1349, 4294901760
    %v1749 = vsub.f32 %v1349, %v1748
    %1750 = vmatpush1.msra.mxu0 %v1749
    %1751 = vmatprep.subr.mxu0 0.0
    %v1752 = vand.u32 %v1350, 4294901760
    %v1753 = vsub.f32 %v1350, %v1752
    %1754 = vmatpush1.msra.mxu0 %v1753
    %1755 = vmatprep.subr.mxu0 0.0
    %v1756 = vand.u32 %v1351, 4294901760
    %v1757 = vsub.f32 %v1351, %v1756
    %1758 = vmatpush1.msra.mxu0 %v1757
    %1759 = vmatprep.subr.mxu0 0.0
    %v1760 = vand.u32 %v1352, 4294901760
    %v1761 = vsub.f32 %v1352, %v1760
    %1762 = vmatpush1.msra.mxu0 %v1761
    %1763 = vmatprep.subr.mxu0 0.0
    %v1764 = vand.u32 %v1353, 4294901760
    %v1765 = vsub.f32 %v1353, %v1764
    %1766 = vmatpush1.msra.mxu0 %v1765
    %1767 = vmatprep.subr.mxu0 0.0
    %v1768 = vand.u32 %v1354, 4294901760
    %v1769 = vsub.f32 %v1354, %v1768
    %1770 = vmatpush1.msra.mxu0 %v1769
    %1771 = vmatprep.subr.mxu0 0.0
    %v1772 = vand.u32 %v1355, 4294901760
    %v1773 = vsub.f32 %v1355, %v1772
    %1774 = vmatpush1.msra.mxu0 %v1773
    %1775 = vmatprep.subr.mxu0 0.0
    %v1776 = vand.u32 %v1356, 4294901760
    %v1777 = vsub.f32 %v1356, %v1776
    %1778 = vmatpush1.msra.mxu0 %v1777
    %1779 = vmatprep.subr.mxu0 0.0
    %1780 = vmatpush1.msra.mxu0 0.0
    %1781 = vmatprep.subr.mxu0 0.0
    %1782 = vmatpush1.msra.mxu0 0.0
    %1783 = vmatprep.subr.mxu0 0.0
    %1784 = vmatpush1.msra.mxu0 0.0
    %1785 = vmatprep.subr.mxu0 0.0
    %1786 = vmatpush1.msra.mxu0 0.0
    %1787 = vmatprep.subr.mxu0 0.0
    %1788 = vmatpush1.msra.mxu0 0.0
    %1789 = vmatprep.subr.mxu0 0.0
    %1790 = vmatpush1.msra.mxu0 0.0
    %1791 = vmatprep.subr.mxu0 0.0
    %1792 = vmatpush1.msra.mxu0 0.0
    %1793 = vmatprep.subr.mxu0 0.0
    %1794 = vmatpush1.msra.mxu0 0.0
    %1795 = vmatprep.subr.mxu0 0.0
    %1796 = vmatpush1.msra.mxu0 0.0
    %1797 = vmatprep.subr.mxu0 0.0
    %1798 = vmatpush1.msra.mxu0 0.0
    %1799 = vmatprep.subr.mxu0 0.0
    %1800 = vmatpush1.msra.mxu0 0.0
    %1801 = vmatprep.subr.mxu0 0.0
    %1802 = vmatpush1.msra.mxu0 0.0
    %1803 = vmatprep.subr.mxu0 0.0
    %1804 = vmatpush1.msra.mxu0 0.0
    %1805 = vmatprep.subr.mxu0 0.0
    %1806 = vmatpush1.msra.mxu0 0.0
    %1807 = vmatprep.subr.mxu0 0.0
    %1808 = vmatpush1.msra.mxu0 0.0
    %1809 = vmatprep.subr.mxu0 0.0
    %1810 = vmatpush1.msra.mxu0 0.0
    %1811 = vmatprep.mubr.f32.mxu0 0.0
    %v1812 = vand.u32 %v1333, 4294901760
    %v1813 = vsub.f32 %v1333, %v1812
    %1814 = vmatmul.mubr.f32.gmra.mrb[0].mxu0 %v1813
    %v1815 = vpop.f32.mrb[0].mxu0
    %v1816 = vadd.f32 %v1670, %v1815
    %v1817 = vpop.f32.mrb[0].mxu0
    %1818 = vmatprep.mubr.f32.mxu0 0.0
    %v1819 = vand.u32 %v1334, 4294901760
    %v1820 = vsub.f32 %v1334, %v1819
    %1821 = vmatmul.mubr.f32.gmra.mrb[0].mxu0 %v1820
    %v1822 = vpop.f32.mrb[0].mxu0
    %v1823 = vadd.f32 %v1676, %v1822
    %v1824 = vpop.f32.mrb[0].mxu0
    %1825 = vmatprep.mubr.f32.mxu0 0.0
    %v1826 = vand.u32 %v1335, 4294901760
    %v1827 = vsub.f32 %v1335, %v1826
    %1828 = vmatmul.mubr.f32.gmra.mrb[0].mxu0 %v1827
    %v1829 = vpop.f32.mrb[0].mxu0
    %v1830 = vadd.f32 %v1682, %v1829
    %v1831 = vpop.f32.mrb[0].mxu0
    %1832 = vmatprep.mubr.f32.mxu0 0.0
    %v1833 = vand.u32 %v1336, 4294901760
    %v1834 = vsub.f32 %v1336, %v1833
    %1835 = vmatmul.mubr.f32.gmra.mrb[0].mxu0 %v1834
    %v1836 = vpop.f32.mrb[0].mxu0
    %v1837 = vadd.f32 %v1688, %v1836
    %v1838 = vpop.f32.mrb[0].mxu0
    %1839 = vmatprep.mubr.f32.mxu0 0.0
    %v1840 = vand.u32 %v1337, 4294901760
    %v1841 = vsub.f32 %v1337, %v1840
    %1842 = vmatmul.mubr.f32.gmra.mrb[0].mxu0 %v1841
    %v1843 = vpop.f32.mrb[0].mxu0
    %v1844 = vadd.f32 %v1694, %v1843
    %v1845 = vpop.f32.mrb[0].mxu0
    %1846 = vmatprep.mubr.f32.mxu0 0.0
    %v1847 = vand.u32 %v1338, 4294901760
    %v1848 = vsub.f32 %v1338, %v1847
    %1849 = vmatmul.mubr.f32.gmra.mrb[0].mxu0 %v1848
    %v1850 = vpop.f32.mrb[0].mxu0
    %v1851 = vadd.f32 %v1700, %v1850
    %v1852 = vpop.f32.mrb[0].mxu0
    %1853 = vmatprep.mubr.f32.mxu0 0.0
    %v1854 = vand.u32 %v1339, 4294901760
    %v1855 = vsub.f32 %v1339, %v1854
    %1856 = vmatmul.mubr.f32.gmra.mrb[0].mxu0 %v1855
    %v1857 = vpop.f32.mrb[0].mxu0
    %v1858 = vadd.f32 %v1706, %v1857
    %v1859 = vpop.f32.mrb[0].mxu0
    %1860 = vmatprep.mubr.f32.mxu0 0.0
    %v1861 = vand.u32 %v1340, 4294901760
    %v1862 = vsub.f32 %v1340, %v1861
    %1863 = vmatmul.mubr.f32.gmra.mrb[0].mxu0 %v1862
    %v1864 = vpop.f32.mrb[0].mxu0
    %v1865 = vadd.f32 %v1712, %v1864
    %v1866 = vpop.f32.mrb[0].mxu0
    %1867 = vdwg.mxu0
    %1868 = vmatprep.subr.mxu0 0.0
    %v1869 = vand.u32 %v1341, 4294901760
    %1870 = vmatpush1.msra.mxu0 %v1869
    %1871 = vmatprep.subr.mxu0 0.0
    %v1872 = vand.u32 %v1342, 4294901760
    %1873 = vmatpush1.msra.mxu0 %v1872
    %1874 = vmatprep.subr.mxu0 0.0
    %v1875 = vand.u32 %v1343, 4294901760
    %1876 = vmatpush1.msra.mxu0 %v1875
    %1877 = vmatprep.subr.mxu0 0.0
    %v1878 = vand.u32 %v1344, 4294901760
    %1879 = vmatpush1.msra.mxu0 %v1878
    %1880 = vmatprep.subr.mxu0 0.0
    %v1881 = vand.u32 %v1345, 4294901760
    %1882 = vmatpush1.msra.mxu0 %v1881
    %1883 = vmatprep.subr.mxu0 0.0
    %v1884 = vand.u32 %v1346, 4294901760
    %1885 = vmatpush1.msra.mxu0 %v1884
    %1886 = vmatprep.subr.mxu0 0.0
    %v1887 = vand.u32 %v1347, 4294901760
    %1888 = vmatpush1.msra.mxu0 %v1887
    %1889 = vmatprep.subr.mxu0 0.0
    %v1890 = vand.u32 %v1348, 4294901760
    %1891 = vmatpush1.msra.mxu0 %v1890
    %1892 = vmatprep.subr.mxu0 0.0
    %v1893 = vand.u32 %v1349, 4294901760
    %1894 = vmatpush1.msra.mxu0 %v1893
    %1895 = vmatprep.subr.mxu0 0.0
    %v1896 = vand.u32 %v1350, 4294901760
    %1897 = vmatpush1.msra.mxu0 %v1896
    %1898 = vmatprep.subr.mxu0 0.0
    %v1899 = vand.u32 %v1351, 4294901760
    %1900 = vmatpush1.msra.mxu0 %v1899
    %1901 = vmatprep.subr.mxu0 0.0
    %v1902 = vand.u32 %v1352, 4294901760
    %1903 = vmatpush1.msra.mxu0 %v1902
    %1904 = vmatprep.subr.mxu0 0.0
    %v1905 = vand.u32 %v1353, 4294901760
    %1906 = vmatpush1.msra.mxu0 %v1905
    %1907 = vmatprep.subr.mxu0 0.0
    %v1908 = vand.u32 %v1354, 4294901760
    %1909 = vmatpush1.msra.mxu0 %v1908
    %1910 = vmatprep.subr.mxu0 0.0
    %v1911 = vand.u32 %v1355, 4294901760
    %1912 = vmatpush1.msra.mxu0 %v1911
    %1913 = vmatprep.subr.mxu0 0.0
    %v1914 = vand.u32 %v1356, 4294901760
    %1915 = vmatpush1.msra.mxu0 %v1914
    %1916 = vmatprep.subr.mxu0 0.0
    %1917 = vmatpush1.msra.mxu0 0.0
    %1918 = vmatprep.subr.mxu0 0.0
    %1919 = vmatpush1.msra.mxu0 0.0
    %1920 = vmatprep.subr.mxu0 0.0
    %1921 = vmatpush1.msra.mxu0 0.0
    %1922 = vmatprep.subr.mxu0 0.0
    %1923 = vmatpush1.msra.mxu0 0.0
    %1924 = vmatprep.subr.mxu0 0.0
    %1925 = vmatpush1.msra.mxu0 0.0
    %1926 = vmatprep.subr.mxu0 0.0
    %1927 = vmatpush1.msra.mxu0 0.0
    %1928 = vmatprep.subr.mxu0 0.0
    %1929 = vmatpush1.msra.mxu0 0.0
    %1930 = vmatprep.subr.mxu0 0.0
    %1931 = vmatpush1.msra.mxu0 0.0
    %1932 = vmatprep.subr.mxu0 0.0
    %1933 = vmatpush1.msra.mxu0 0.0
    %1934 = vmatprep.subr.mxu0 0.0
    %1935 = vmatpush1.msra.mxu0 0.0
    %1936 = vmatprep.subr.mxu0 0.0
    %1937 = vmatpush1.msra.mxu0 0.0
    %1938 = vmatprep.subr.mxu0 0.0
    %1939 = vmatpush1.msra.mxu0 0.0
    %1940 = vmatprep.subr.mxu0 0.0
    %1941 = vmatpush1.msra.mxu0 0.0
    %1942 = vmatprep.subr.mxu0 0.0
    %1943 = vmatpush1.msra.mxu0 0.0
    %1944 = vmatprep.subr.mxu0 0.0
    %1945 = vmatpush1.msra.mxu0 0.0
    %1946 = vmatprep.subr.mxu0 0.0
    %1947 = vmatpush1.msra.mxu0 0.0
    %1948 = vmatprep.mubr.f32.mxu0 0.0
    %v1949 = vand.u32 %v1333, 4294901760
    %v1950 = vsub.f32 %v1333, %v1949
    %v1951 = vand.u32 %v1950, 4294901760
    %1952 = vmatmul.mubr.f32.gmra.mrb[0].mxu0 %v1951
    %v1953 = vpop.f32.mrb[0].mxu0
    %v1954 = vadd.f32 %v1816, %v1953
    %v1955 = vpop.f32.mrb[0].mxu0
    %1956 = vmatprep.mubr.f32.mxu0 0.0
    %v1957 = vand.u32 %v1334, 4294901760
    %v1958 = vsub.f32 %v1334, %v1957
    %v1959 = vand.u32 %v1958, 4294901760
    %1960 = vmatmul.mubr.f32.gmra.mrb[0].mxu0 %v1959
    %v1961 = vpop.f32.mrb[0].mxu0
    %v1962 = vadd.f32 %v1823, %v1961
    %v1963 = vpop.f32.mrb[0].mxu0
    %1964 = vmatprep.mubr.f32.mxu0 0.0
    %v1965 = vand.u32 %v1335, 4294901760
    %v1966 = vsub.f32 %v1335, %v1965
    %v1967 = vand.u32 %v1966, 4294901760
    %1968 = vmatmul.mubr.f32.gmra.mrb[0].mxu0 %v1967
    %v1969 = vpop.f32.mrb[0].mxu0
    %v1970 = vadd.f32 %v1830, %v1969
    %v1971 = vpop.f32.mrb[0].mxu0
    %1972 = vmatprep.mubr.f32.mxu0 0.0
    %v1973 = vand.u32 %v1336, 4294901760
    %v1974 = vsub.f32 %v1336, %v1973
    %v1975 = vand.u32 %v1974, 4294901760
    %1976 = vmatmul.mubr.f32.gmra.mrb[0].mxu0 %v1975
    %v1977 = vpop.f32.mrb[0].mxu0
    %v1978 = vadd.f32 %v1837, %v1977
    %v1979 = vpop.f32.mrb[0].mxu0
    %1980 = vmatprep.mubr.f32.mxu0 0.0
    %v1981 = vand.u32 %v1337, 4294901760
    %v1982 = vsub.f32 %v1337, %v1981
    %v1983 = vand.u32 %v1982, 4294901760
    %1984 = vmatmul.mubr.f32.gmra.mrb[0].mxu0 %v1983
    %v1985 = vpop.f32.mrb[0].mxu0
    %v1986 = vadd.f32 %v1844, %v1985
    %v1987 = vpop.f32.mrb[0].mxu0
    %1988 = vmatprep.mubr.f32.mxu0 0.0
    %v1989 = vand.u32 %v1338, 4294901760
    %v1990 = vsub.f32 %v1338, %v1989
    %v1991 = vand.u32 %v1990, 4294901760
    %1992 = vmatmul.mubr.f32.gmra.mrb[0].mxu0 %v1991
    %v1993 = vpop.f32.mrb[0].mxu0
    %v1994 = vadd.f32 %v1851, %v1993
    %v1995 = vpop.f32.mrb[0].mxu0
    %1996 = vmatprep.mubr.f32.mxu0 0.0
    %v1997 = vand.u32 %v1339, 4294901760
    %v1998 = vsub.f32 %v1339, %v1997
    %v1999 = vand.u32 %v1998, 4294901760
    %2000 = vmatmul.mubr.f32.gmra.mrb[0].mxu0 %v1999
    %v2001 = vpop.f32.mrb[0].mxu0
    %v2002 = vadd.f32 %v1858, %v2001
    %v2003 = vpop.f32.mrb[0].mxu0
    %2004 = vmatprep.mubr.f32.mxu0 0.0
    %v2005 = vand.u32 %v1340, 4294901760
    %v2006 = vsub.f32 %v1340, %v2005
    %v2007 = vand.u32 %v2006, 4294901760
    %2008 = vmatmul.mubr.f32.gmra.mrb[0].mxu0 %v2007
    %v2009 = vpop.f32.mrb[0].mxu0
    %v2010 = vadd.f32 %v1865, %v2009
    %v2011 = vpop.f32.mrb[0].mxu0
    %2012 = vdwg.mxu0
    %2013 = vmatprep.subr.mxu0 0.0
    %v2014 = vand.u32 %v1341, 4294901760
    %v2015 = vsub.f32 %v1341, %v2014
    %v2016 = vand.u32 %v2015, 4294901760
    %2017 = vmatpush1.msra.mxu0 %v2016
    %2018 = vmatprep.subr.mxu0 0.0
    %v2019 = vand.u32 %v1342, 4294901760
    %v2020 = vsub.f32 %v1342, %v2019
    %v2021 = vand.u32 %v2020, 4294901760
    %2022 = vmatpush1.msra.mxu0 %v2021
    %2023 = vmatprep.subr.mxu0 0.0
    %v2024 = vand.u32 %v1343, 4294901760
    %v2025 = vsub.f32 %v1343, %v2024
    %v2026 = vand.u32 %v2025, 4294901760
    %2027 = vmatpush1.msra.mxu0 %v2026
    %2028 = vmatprep.subr.mxu0 0.0
    %v2029 = vand.u32 %v1344, 4294901760
    %v2030 = vsub.f32 %v1344, %v2029
    %v2031 = vand.u32 %v2030, 4294901760
    %2032 = vmatpush1.msra.mxu0 %v2031
    %2033 = vmatprep.subr.mxu0 0.0
    %v2034 = vand.u32 %v1345, 4294901760
    %v2035 = vsub.f32 %v1345, %v2034
    %v2036 = vand.u32 %v2035, 4294901760
    %2037 = vmatpush1.msra.mxu0 %v2036
    %2038 = vmatprep.subr.mxu0 0.0
    %v2039 = vand.u32 %v1346, 4294901760
    %v2040 = vsub.f32 %v1346, %v2039
    %v2041 = vand.u32 %v2040, 4294901760
    %2042 = vmatpush1.msra.mxu0 %v2041
    %2043 = vmatprep.subr.mxu0 0.0
    %v2044 = vand.u32 %v1347, 4294901760
    %v2045 = vsub.f32 %v1347, %v2044
    %v2046 = vand.u32 %v2045, 4294901760
    %2047 = vmatpush1.msra.mxu0 %v2046
    %2048 = vmatprep.subr.mxu0 0.0
    %v2049 = vand.u32 %v1348, 4294901760
    %v2050 = vsub.f32 %v1348, %v2049
    %v2051 = vand.u32 %v2050, 4294901760
    %2052 = vmatpush1.msra.mxu0 %v2051
    %2053 = vmatprep.subr.mxu0 0.0
    %v2054 = vand.u32 %v1349, 4294901760
    %v2055 = vsub.f32 %v1349, %v2054
    %v2056 = vand.u32 %v2055, 4294901760
    %2057 = vmatpush1.msra.mxu0 %v2056
    %2058 = vmatprep.subr.mxu0 0.0
    %v2059 = vand.u32 %v1350, 4294901760
    %v2060 = vsub.f32 %v1350, %v2059
    %v2061 = vand.u32 %v2060, 4294901760
    %2062 = vmatpush1.msra.mxu0 %v2061
    %2063 = vmatprep.subr.mxu0 0.0
    %v2064 = vand.u32 %v1351, 4294901760
    %v2065 = vsub.f32 %v1351, %v2064
    %v2066 = vand.u32 %v2065, 4294901760
    %2067 = vmatpush1.msra.mxu0 %v2066
    %2068 = vmatprep.subr.mxu0 0.0
    %v2069 = vand.u32 %v1352, 4294901760
    %v2070 = vsub.f32 %v1352, %v2069
    %v2071 = vand.u32 %v2070, 4294901760
    %2072 = vmatpush1.msra.mxu0 %v2071
    %2073 = vmatprep.subr.mxu0 0.0
    %v2074 = vand.u32 %v1353, 4294901760
    %v2075 = vsub.f32 %v1353, %v2074
    %v2076 = vand.u32 %v2075, 4294901760
    %2077 = vmatpush1.msra.mxu0 %v2076
    %2078 = vmatprep.subr.mxu0 0.0
    %v2079 = vand.u32 %v1354, 4294901760
    %v2080 = vsub.f32 %v1354, %v2079
    %v2081 = vand.u32 %v2080, 4294901760
    %2082 = vmatpush1.msra.mxu0 %v2081
    %2083 = vmatprep.subr.mxu0 0.0
    %v2084 = vand.u32 %v1355, 4294901760
    %v2085 = vsub.f32 %v1355, %v2084
    %v2086 = vand.u32 %v2085, 4294901760
    %2087 = vmatpush1.msra.mxu0 %v2086
    %2088 = vmatprep.subr.mxu0 0.0
    %v2089 = vand.u32 %v1356, 4294901760
    %v2090 = vsub.f32 %v1356, %v2089
    %v2091 = vand.u32 %v2090, 4294901760
    %2092 = vmatpush1.msra.mxu0 %v2091
    %2093 = vmatprep.subr.mxu0 0.0
    %2094 = vmatpush1.msra.mxu0 0.0
    %2095 = vmatprep.subr.mxu0 0.0
    %2096 = vmatpush1.msra.mxu0 0.0
    %2097 = vmatprep.subr.mxu0 0.0
    %2098 = vmatpush1.msra.mxu0 0.0
    %2099 = vmatprep.subr.mxu0 0.0
    %2100 = vmatpush1.msra.mxu0 0.0
    %2101 = vmatprep.subr.mxu0 0.0
    %2102 = vmatpush1.msra.mxu0 0.0
    %2103 = vmatprep.subr.mxu0 0.0
    %2104 = vmatpush1.msra.mxu0 0.0
    %2105 = vmatprep.subr.mxu0 0.0
    %2106 = vmatpush1.msra.mxu0 0.0
    %2107 = vmatprep.subr.mxu0 0.0
    %2108 = vmatpush1.msra.mxu0 0.0
    %2109 = vmatprep.subr.mxu0 0.0
    %2110 = vmatpush1.msra.mxu0 0.0
    %2111 = vmatprep.subr.mxu0 0.0
    %2112 = vmatpush1.msra.mxu0 0.0
    %2113 = vmatprep.subr.mxu0 0.0
    %2114 = vmatpush1.msra.mxu0 0.0
    %2115 = vmatprep.subr.mxu0 0.0
    %2116 = vmatpush1.msra.mxu0 0.0
    %2117 = vmatprep.subr.mxu0 0.0
    %2118 = vmatpush1.msra.mxu0 0.0
    %2119 = vmatprep.subr.mxu0 0.0
    %2120 = vmatpush1.msra.mxu0 0.0
    %2121 = vmatprep.subr.mxu0 0.0
    %2122 = vmatpush1.msra.mxu0 0.0
    %2123 = vmatprep.subr.mxu0 0.0
    %2124 = vmatpush1.msra.mxu0 0.0
    %2125 = vmatprep.mubr.f32.mxu0 0.0
    %v2126 = vand.u32 %v1333, 4294901760
    %2127 = vmatmul.mubr.f32.gmra.mrb[0].mxu0 %v2126
    %v2128 = vpop.f32.mrb[0].mxu0
    %v2129 = vadd.f32 %v1954, %v2128
    %v2130 = vpop.f32.mrb[0].mxu0
    %2131 = vmatprep.mubr.f32.mxu0 0.0
    %v2132 = vand.u32 %v1334, 4294901760
    %2133 = vmatmul.mubr.f32.gmra.mrb[0].mxu0 %v2132
    %v2134 = vpop.f32.mrb[0].mxu0
    %v2135 = vadd.f32 %v1962, %v2134
    %v2136 = vpop.f32.mrb[0].mxu0
    %2137 = vmatprep.mubr.f32.mxu0 0.0
    %v2138 = vand.u32 %v1335, 4294901760
    %2139 = vmatmul.mubr.f32.gmra.mrb[0].mxu0 %v2138
    %v2140 = vpop.f32.mrb[0].mxu0
    %v2141 = vadd.f32 %v1970, %v2140
    %v2142 = vpop.f32.mrb[0].mxu0
    %2143 = vmatprep.mubr.f32.mxu0 0.0
    %v2144 = vand.u32 %v1336, 4294901760
    %2145 = vmatmul.mubr.f32.gmra.mrb[0].mxu0 %v2144
    %v2146 = vpop.f32.mrb[0].mxu0
    %v2147 = vadd.f32 %v1978, %v2146
    %v2148 = vpop.f32.mrb[0].mxu0
    %2149 = vmatprep.mubr.f32.mxu0 0.0
    %v2150 = vand.u32 %v1337, 4294901760
    %2151 = vmatmul.mubr.f32.gmra.mrb[0].mxu0 %v2150
    %v2152 = vpop.f32.mrb[0].mxu0
    %v2153 = vadd.f32 %v1986, %v2152
    %v2154 = vpop.f32.mrb[0].mxu0
    %2155 = vmatprep.mubr.f32.mxu0 0.0
    %v2156 = vand.u32 %v1338, 4294901760
    %2157 = vmatmul.mubr.f32.gmra.mrb[0].mxu0 %v2156
    %v2158 = vpop.f32.mrb[0].mxu0
    %v2159 = vadd.f32 %v1994, %v2158
    %v2160 = vpop.f32.mrb[0].mxu0
    %2161 = vmatprep.mubr.f32.mxu0 0.0
    %v2162 = vand.u32 %v1339, 4294901760
    %2163 = vmatmul.mubr.f32.gmra.mrb[0].mxu0 %v2162
    %v2164 = vpop.f32.mrb[0].mxu0
    %v2165 = vadd.f32 %v2002, %v2164
    %v2166 = vpop.f32.mrb[0].mxu0
    %2167 = vmatprep.mubr.f32.mxu0 0.0
    %v2168 = vand.u32 %v1340, 4294901760
    %2169 = vmatmul.mubr.f32.gmra.mrb[0].mxu0 %v2168
    %v2170 = vpop.f32.mrb[0].mxu0
    %v2171 = vadd.f32 %v2010, %v2170
    %v2172 = vpop.f32.mrb[0].mxu0
    %2173 = vdwg.mxu0
    %2174 = vmatprep.subr.mxu0 0.0
    %v2175 = vand.u32 %v1341, 4294901760
    %2176 = vmatpush1.msra.mxu0 %v2175
    %2177 = vmatprep.subr.mxu0 0.0
    %v2178 = vand.u32 %v1342, 4294901760
    %2179 = vmatpush1.msra.mxu0 %v2178
    %2180 = vmatprep.subr.mxu0 0.0
    %v2181 = vand.u32 %v1343, 4294901760
    %2182 = vmatpush1.msra.mxu0 %v2181
    %2183 = vmatprep.subr.mxu0 0.0
    %v2184 = vand.u32 %v1344, 4294901760
    %2185 = vmatpush1.msra.mxu0 %v2184
    %2186 = vmatprep.subr.mxu0 0.0
    %v2187 = vand.u32 %v1345, 4294901760
    %2188 = vmatpush1.msra.mxu0 %v2187
    %2189 = vmatprep.subr.mxu0 0.0
    %v2190 = vand.u32 %v1346, 4294901760
    %2191 = vmatpush1.msra.mxu0 %v2190
    %2192 = vmatprep.subr.mxu0 0.0
    %v2193 = vand.u32 %v1347, 4294901760
    %2194 = vmatpush1.msra.mxu0 %v2193
    %2195 = vmatprep.subr.mxu0 0.0
    %v2196 = vand.u32 %v1348, 4294901760
    %2197 = vmatpush1.msra.mxu0 %v2196
    %2198 = vmatprep.subr.mxu0 0.0
    %v2199 = vand.u32 %v1349, 4294901760
    %2200 = vmatpush1.msra.mxu0 %v2199
    %2201 = vmatprep.subr.mxu0 0.0
    %v2202 = vand.u32 %v1350, 4294901760
    %2203 = vmatpush1.msra.mxu0 %v2202
    %2204 = vmatprep.subr.mxu0 0.0
    %v2205 = vand.u32 %v1351, 4294901760
    %2206 = vmatpush1.msra.mxu0 %v2205
    %2207 = vmatprep.subr.mxu0 0.0
    %v2208 = vand.u32 %v1352, 4294901760
    %2209 = vmatpush1.msra.mxu0 %v2208
    %2210 = vmatprep.subr.mxu0 0.0
    %v2211 = vand.u32 %v1353, 4294901760
    %2212 = vmatpush1.msra.mxu0 %v2211
    %2213 = vmatprep.subr.mxu0 0.0
    %v2214 = vand.u32 %v1354, 4294901760
    %2215 = vmatpush1.msra.mxu0 %v2214
    %2216 = vmatprep.subr.mxu0 0.0
    %v2217 = vand.u32 %v1355, 4294901760
    %2218 = vmatpush1.msra.mxu0 %v2217
    %2219 = vmatprep.subr.mxu0 0.0
    %v2220 = vand.u32 %v1356, 4294901760
    %2221 = vmatpush1.msra.mxu0 %v2220
    %2222 = vmatprep.subr.mxu0 0.0
    %2223 = vmatpush1.msra.mxu0 0.0
    %2224 = vmatprep.subr.mxu0 0.0
    %2225 = vmatpush1.msra.mxu0 0.0
    %2226 = vmatprep.subr.mxu0 0.0
    %2227 = vmatpush1.msra.mxu0 0.0
    %2228 = vmatprep.subr.mxu0 0.0
    %2229 = vmatpush1.msra.mxu0 0.0
    %2230 = vmatprep.subr.mxu0 0.0
    %2231 = vmatpush1.msra.mxu0 0.0
    %2232 = vmatprep.subr.mxu0 0.0
    %2233 = vmatpush1.msra.mxu0 0.0
    %2234 = vmatprep.subr.mxu0 0.0
    %2235 = vmatpush1.msra.mxu0 0.0
    %2236 = vmatprep.subr.mxu0 0.0
    %2237 = vmatpush1.msra.mxu0 0.0
    %2238 = vmatprep.subr.mxu0 0.0
    %2239 = vmatpush1.msra.mxu0 0.0
    %2240 = vmatprep.subr.mxu0 0.0
    %2241 = vmatpush1.msra.mxu0 0.0
    %2242 = vmatprep.subr.mxu0 0.0
    %2243 = vmatpush1.msra.mxu0 0.0
    %2244 = vmatprep.subr.mxu0 0.0
    %2245 = vmatpush1.msra.mxu0 0.0
    %2246 = vmatprep.subr.mxu0 0.0
    %2247 = vmatpush1.msra.mxu0 0.0
    %2248 = vmatprep.subr.mxu0 0.0
    %2249 = vmatpush1.msra.mxu0 0.0
    %2250 = vmatprep.subr.mxu0 0.0
    %2251 = vmatpush1.msra.mxu0 0.0
    %2252 = vmatprep.subr.mxu0 0.0
    %2253 = vmatpush1.msra.mxu0 0.0
    %2254 = vmatprep.mubr.f32.mxu0 0.0
    %v2255 = vand.u32 %v1333, 4294901760
    %2256 = vmatmul.mubr.f32.gmra.mrb[0].mxu0 %v2255
    %v2257 = vpop.f32.mrb[0].mxu0
    %v2258 = vadd.f32 %v2129, %v2257
    %v2259 = vpop.f32.mrb[0].mxu0
    %2260 = vmatprep.mubr.f32.mxu0 0.0
    %v2261 = vand.u32 %v1334, 4294901760
    %2262 = vmatmul.mubr.f32.gmra.mrb[0].mxu0 %v2261
    %v2263 = vpop.f32.mrb[0].mxu0
    %v2264 = vadd.f32 %v2135, %v2263
    %v2265 = vpop.f32.mrb[0].mxu0
    %2266 = vmatprep.mubr.f32.mxu0 0.0
    %v2267 = vand.u32 %v1335, 4294901760
    %2268 = vmatmul.mubr.f32.gmra.mrb[0].mxu0 %v2267
    %v2269 = vpop.f32.mrb[0].mxu0
    %v2270 = vadd.f32 %v2141, %v2269
    %v2271 = vpop.f32.mrb[0].mxu0
    %2272 = vmatprep.mubr.f32.mxu0 0.0
    %v2273 = vand.u32 %v1336, 4294901760
    %2274 = vmatmul.mubr.f32.gmra.mrb[0].mxu0 %v2273
    %v2275 = vpop.f32.mrb[0].mxu0
    %v2276 = vadd.f32 %v2147, %v2275
    %v2277 = vpop.f32.mrb[0].mxu0
    %2278 = vmatprep.mubr.f32.mxu0 0.0
    %v2279 = vand.u32 %v1337, 4294901760
    %2280 = vmatmul.mubr.f32.gmra.mrb[0].mxu0 %v2279
    %v2281 = vpop.f32.mrb[0].mxu0
    %v2282 = vadd.f32 %v2153, %v2281
    %v2283 = vpop.f32.mrb[0].mxu0
    %2284 = vmatprep.mubr.f32.mxu0 0.0
    %v2285 = vand.u32 %v1338, 4294901760
    %2286 = vmatmul.mubr.f32.gmra.mrb[0].mxu0 %v2285
    %v2287 = vpop.f32.mrb[0].mxu0
    %v2288 = vadd.f32 %v2159, %v2287
    %v2289 = vpop.f32.mrb[0].mxu0
    %2290 = vmatprep.mubr.f32.mxu0 0.0
    %v2291 = vand.u32 %v1339, 4294901760
    %2292 = vmatmul.mubr.f32.gmra.mrb[0].mxu0 %v2291
    %v2293 = vpop.f32.mrb[0].mxu0
    %v2294 = vadd.f32 %v2165, %v2293
    %v2295 = vpop.f32.mrb[0].mxu0
    %2296 = vmatprep.mubr.f32.mxu0 0.0
    %v2297 = vand.u32 %v1340, 4294901760
    %2298 = vmatmul.mubr.f32.gmra.mrb[0].mxu0 %v2297
    %v2299 = vpop.f32.mrb[0].mxu0
    %v2300 = vadd.f32 %v2171, %v2299
    %v2301 = vpop.f32.mrb[0].mxu0
    %2302 = vdwg.mxu0
    %v2303 = vld [vmem:[%s4] sm:$0xff]
    %v2304 = vld [vmem:[%s4 + $0x8] sm:$0xff]
    %v2305 = vld [vmem:[%s4 + $0x10] sm:$0xff]
    %v2306 = vld [vmem:[%s4 + $0x18] sm:$0xff]
    %v2307 = vlaneseq
    %v2308 = vshrl.u32 %v2307, 7
    %v2309 = vsub.s32 0, %v2308
    %v2310 = vrot.slane %v37, %v2309
    %v2312 = vsel %vm67, %v43, 0
    %v2315 = vsel %vm67, %v44, 0
    %v2318 = vsel %vm67, %v45, 0
    %v2321 = vsel %vm67, %v46, 0
    %v2324 = vsel %vm67, %v47, 0
    %v2327 = vsel %vm67, %v48, 0
    %v2330 = vsel %vm67, %v49, 0
    %v2333 = vsel %vm67, %v50, 0
    %2335 = vmatprep.subr.mxu0 0.0
    %v2336 = vand.u32 %v2303, 4294901760
    %2337 = vmatpush1.msra.mxu0 %v2336
    %2338 = vmatprep.subr.mxu0 0.0
    %v2339 = vand.u32 %v2304, 4294901760
    %2340 = vmatpush1.msra.mxu0 %v2339
    %2341 = vmatprep.subr.mxu0 0.0
    %v2342 = vand.u32 %v2305, 4294901760
    %2343 = vmatpush1.msra.mxu0 %v2342
    %2344 = vmatprep.subr.mxu0 0.0
    %v2345 = vand.u32 %v2306, 4294901760
    %2346 = vmatpush1.msra.mxu0 %v2345
    %2347 = vmatprep.subr.mxu0 0.0
    %2348 = vmatpush1.msra.mxu0 0.0
    %2349 = vmatprep.subr.mxu0 0.0
    %2350 = vmatpush1.msra.mxu0 0.0
    %2351 = vmatprep.subr.mxu0 0.0
    %2352 = vmatpush1.msra.mxu0 0.0
    %2353 = vmatprep.subr.mxu0 0.0
    %2354 = vmatpush1.msra.mxu0 0.0
    %2355 = vmatprep.subr.mxu0 0.0
    %2356 = vmatpush1.msra.mxu0 0.0
    %2357 = vmatprep.subr.mxu0 0.0
    %2358 = vmatpush1.msra.mxu0 0.0
    %2359 = vmatprep.subr.mxu0 0.0
    %2360 = vmatpush1.msra.mxu0 0.0
    %2361 = vmatprep.subr.mxu0 0.0
    %2362 = vmatpush1.msra.mxu0 0.0
    %2363 = vmatprep.subr.mxu0 0.0
    %2364 = vmatpush1.msra.mxu0 0.0
    %2365 = vmatprep.subr.mxu0 0.0
    %2366 = vmatpush1.msra.mxu0 0.0
    %2367 = vmatprep.subr.mxu0 0.0
    %2368 = vmatpush1.msra.mxu0 0.0
    %2369 = vmatprep.subr.mxu0 0.0
    %2370 = vmatpush1.msra.mxu0 0.0
    %2371 = vmatprep.subr.mxu0 0.0
    %2372 = vmatpush1.msra.mxu0 0.0
    %2373 = vmatprep.subr.mxu0 0.0
    %2374 = vmatpush1.msra.mxu0 0.0
    %2375 = vmatprep.subr.mxu0 0.0
    %2376 = vmatpush1.msra.mxu0 0.0
    %2377 = vmatprep.subr.mxu0 0.0
    %2378 = vmatpush1.msra.mxu0 0.0
    %2379 = vmatprep.subr.mxu0 0.0
    %2380 = vmatpush1.msra.mxu0 0.0
    %2381 = vmatprep.subr.mxu0 0.0
    %2382 = vmatpush1.msra.mxu0 0.0
    %2383 = vmatprep.subr.mxu0 0.0
    %2384 = vmatpush1.msra.mxu0 0.0
    %2385 = vmatprep.subr.mxu0 0.0
    %2386 = vmatpush1.msra.mxu0 0.0
    %2387 = vmatprep.subr.mxu0 0.0
    %2388 = vmatpush1.msra.mxu0 0.0
    %2389 = vmatprep.subr.mxu0 0.0
    %2390 = vmatpush1.msra.mxu0 0.0
    %2391 = vmatprep.subr.mxu0 0.0
    %2392 = vmatpush1.msra.mxu0 0.0
    %2393 = vmatprep.subr.mxu0 0.0
    %2394 = vmatpush1.msra.mxu0 0.0
    %2395 = vmatprep.subr.mxu0 0.0
    %2396 = vmatpush1.msra.mxu0 0.0
    %2397 = vmatprep.subr.mxu0 0.0
    %2398 = vmatpush1.msra.mxu0 0.0
    %2399 = vmatprep.subr.mxu0 0.0
    %2400 = vmatpush1.msra.mxu0 0.0
    %2401 = vmatprep.subr.mxu0 0.0
    %2402 = vmatpush1.msra.mxu0 0.0
    %2403 = vmatprep.mubr.f32.mxu0 0.0
    %v2404 = vand.u32 %v2312, 4294901760
    %v2405 = vsub.f32 %v2312, %v2404
    %v2406 = vand.u32 %v2405, 4294901760
    %v2407 = vsub.f32 %v2405, %v2406
    %v2408 = vand.u32 %v2407, 4294901760
    %2409 = vmatmul.mubr.f32.gmra.mrb[0].mxu0 %v2408
    %v2410 = vpop.f32.mrb[0].mxu0
    %v2411 = vadd.f32 %v2310, %v2410
    %v2412 = vpop.f32.mrb[0].mxu0
    %2413 = vmatprep.mubr.f32.mxu0 0.0
    %v2414 = vand.u32 %v2315, 4294901760
    %v2415 = vsub.f32 %v2315, %v2414
    %v2416 = vand.u32 %v2415, 4294901760
    %v2417 = vsub.f32 %v2415, %v2416
    %v2418 = vand.u32 %v2417, 4294901760
    %2419 = vmatmul.mubr.f32.gmra.mrb[0].mxu0 %v2418
    %v2420 = vpop.f32.mrb[0].mxu0
    %v2421 = vadd.f32 %v2310, %v2420
    %v2422 = vpop.f32.mrb[0].mxu0
    %2423 = vmatprep.mubr.f32.mxu0 0.0
    %v2424 = vand.u32 %v2318, 4294901760
    %v2425 = vsub.f32 %v2318, %v2424
    %v2426 = vand.u32 %v2425, 4294901760
    %v2427 = vsub.f32 %v2425, %v2426
    %v2428 = vand.u32 %v2427, 4294901760
    %2429 = vmatmul.mubr.f32.gmra.mrb[0].mxu0 %v2428
    %v2430 = vpop.f32.mrb[0].mxu0
    %v2431 = vadd.f32 %v2310, %v2430
    %v2432 = vpop.f32.mrb[0].mxu0
    %2433 = vmatprep.mubr.f32.mxu0 0.0
    %v2434 = vand.u32 %v2321, 4294901760
    %v2435 = vsub.f32 %v2321, %v2434
    %v2436 = vand.u32 %v2435, 4294901760
    %v2437 = vsub.f32 %v2435, %v2436
    %v2438 = vand.u32 %v2437, 4294901760
    %2439 = vmatmul.mubr.f32.gmra.mrb[0].mxu0 %v2438
    %v2440 = vpop.f32.mrb[0].mxu0
    %v2441 = vadd.f32 %v2310, %v2440
    %v2442 = vpop.f32.mrb[0].mxu0
    %2443 = vmatprep.mubr.f32.mxu0 0.0
    %v2444 = vand.u32 %v2324, 4294901760
    %v2445 = vsub.f32 %v2324, %v2444
    %v2446 = vand.u32 %v2445, 4294901760
    %v2447 = vsub.f32 %v2445, %v2446
    %v2448 = vand.u32 %v2447, 4294901760
    %2449 = vmatmul.mubr.f32.gmra.mrb[0].mxu0 %v2448
    %v2450 = vpop.f32.mrb[0].mxu0
    %v2451 = vadd.f32 %v2310, %v2450
    %v2452 = vpop.f32.mrb[0].mxu0
    %2453 = vmatprep.mubr.f32.mxu0 0.0
    %v2454 = vand.u32 %v2327, 4294901760
    %v2455 = vsub.f32 %v2327, %v2454
    %v2456 = vand.u32 %v2455, 4294901760
    %v2457 = vsub.f32 %v2455, %v2456
    %v2458 = vand.u32 %v2457, 4294901760
    %2459 = vmatmul.mubr.f32.gmra.mrb[0].mxu0 %v2458
    %v2460 = vpop.f32.mrb[0].mxu0
    %v2461 = vadd.f32 %v2310, %v2460
    %v2462 = vpop.f32.mrb[0].mxu0
    %2463 = vmatprep.mubr.f32.mxu0 0.0
    %v2464 = vand.u32 %v2330, 4294901760
    %v2465 = vsub.f32 %v2330, %v2464
    %v2466 = vand.u32 %v2465, 4294901760
    %v2467 = vsub.f32 %v2465, %v2466
    %v2468 = vand.u32 %v2467, 4294901760
    %2469 = vmatmul.mubr.f32.gmra.mrb[0].mxu0 %v2468
    %v2470 = vpop.f32.mrb[0].mxu0
    %v2471 = vadd.f32 %v2310, %v2470
    %v2472 = vpop.f32.mrb[0].mxu0
    %2473 = vmatprep.mubr.f32.mxu0 0.0
    %v2474 = vand.u32 %v2333, 4294901760
    %v2475 = vsub.f32 %v2333, %v2474
    %v2476 = vand.u32 %v2475, 4294901760
    %v2477 = vsub.f32 %v2475, %v2476
    %v2478 = vand.u32 %v2477, 4294901760
    %2479 = vmatmul.mubr.f32.gmra.mrb[0].mxu0 %v2478
    %v2480 = vpop.f32.mrb[0].mxu0
    %v2481 = vadd.f32 %v2310, %v2480
    %v2482 = vpop.f32.mrb[0].mxu0
    %2483 = vdwg.mxu0
    %2484 = vmatprep.subr.mxu0 0.0
    %v2485 = vand.u32 %v2303, 4294901760
    %v2486 = vsub.f32 %v2303, %v2485
    %v2487 = vand.u32 %v2486, 4294901760
    %v2488 = vsub.f32 %v2486, %v2487
    %v2489 = vand.u32 %v2488, 4294901760
    %2490 = vmatpush1.msra.mxu0 %v2489
    %2491 = vmatprep.subr.mxu0 0.0
    %v2492 = vand.u32 %v2304, 4294901760
    %v2493 = vsub.f32 %v2304, %v2492
    %v2494 = vand.u32 %v2493, 4294901760
    %v2495 = vsub.f32 %v2493, %v2494
    %v2496 = vand.u32 %v2495, 4294901760
    %2497 = vmatpush1.msra.mxu0 %v2496
    %2498 = vmatprep.subr.mxu0 0.0
    %v2499 = vand.u32 %v2305, 4294901760
    %v2500 = vsub.f32 %v2305, %v2499
    %v2501 = vand.u32 %v2500, 4294901760
    %v2502 = vsub.f32 %v2500, %v2501
    %v2503 = vand.u32 %v2502, 4294901760
    %2504 = vmatpush1.msra.mxu0 %v2503
    %2505 = vmatprep.subr.mxu0 0.0
    %v2506 = vand.u32 %v2306, 4294901760
    %v2507 = vsub.f32 %v2306, %v2506
    %v2508 = vand.u32 %v2507, 4294901760
    %v2509 = vsub.f32 %v2507, %v2508
    %v2510 = vand.u32 %v2509, 4294901760
    %2511 = vmatpush1.msra.mxu0 %v2510
    %2512 = vmatprep.subr.mxu0 0.0
    %2513 = vmatpush1.msra.mxu0 0.0
    %2514 = vmatprep.subr.mxu0 0.0
    %2515 = vmatpush1.msra.mxu0 0.0
    %2516 = vmatprep.subr.mxu0 0.0
    %2517 = vmatpush1.msra.mxu0 0.0
    %2518 = vmatprep.subr.mxu0 0.0
    %2519 = vmatpush1.msra.mxu0 0.0
    %2520 = vmatprep.subr.mxu0 0.0
    %2521 = vmatpush1.msra.mxu0 0.0
    %2522 = vmatprep.subr.mxu0 0.0
    %2523 = vmatpush1.msra.mxu0 0.0
    %2524 = vmatprep.subr.mxu0 0.0
    %2525 = vmatpush1.msra.mxu0 0.0
    %2526 = vmatprep.subr.mxu0 0.0
    %2527 = vmatpush1.msra.mxu0 0.0
    %2528 = vmatprep.subr.mxu0 0.0
    %2529 = vmatpush1.msra.mxu0 0.0
    %2530 = vmatprep.subr.mxu0 0.0
    %2531 = vmatpush1.msra.mxu0 0.0
    %2532 = vmatprep.subr.mxu0 0.0
    %2533 = vmatpush1.msra.mxu0 0.0
    %2534 = vmatprep.subr.mxu0 0.0
    %2535 = vmatpush1.msra.mxu0 0.0
    %2536 = vmatprep.subr.mxu0 0.0
    %2537 = vmatpush1.msra.mxu0 0.0
    %2538 = vmatprep.subr.mxu0 0.0
    %2539 = vmatpush1.msra.mxu0 0.0
    %2540 = vmatprep.subr.mxu0 0.0
    %2541 = vmatpush1.msra.mxu0 0.0
    %2542 = vmatprep.subr.mxu0 0.0
    %2543 = vmatpush1.msra.mxu0 0.0
    %2544 = vmatprep.subr.mxu0 0.0
    %2545 = vmatpush1.msra.mxu0 0.0
    %2546 = vmatprep.subr.mxu0 0.0
    %2547 = vmatpush1.msra.mxu0 0.0
    %2548 = vmatprep.subr.mxu0 0.0
    %2549 = vmatpush1.msra.mxu0 0.0
    %2550 = vmatprep.subr.mxu0 0.0
    %2551 = vmatpush1.msra.mxu0 0.0
    %2552 = vmatprep.subr.mxu0 0.0
    %2553 = vmatpush1.msra.mxu0 0.0
    %2554 = vmatprep.subr.mxu0 0.0
    %2555 = vmatpush1.msra.mxu0 0.0
    %2556 = vmatprep.subr.mxu0 0.0
    %2557 = vmatpush1.msra.mxu0 0.0
    %2558 = vmatprep.subr.mxu0 0.0
    %2559 = vmatpush1.msra.mxu0 0.0
    %2560 = vmatprep.subr.mxu0 0.0
    %2561 = vmatpush1.msra.mxu0 0.0
    %2562 = vmatprep.subr.mxu0 0.0
    %2563 = vmatpush1.msra.mxu0 0.0
    %2564 = vmatprep.subr.mxu0 0.0
    %2565 = vmatpush1.msra.mxu0 0.0
    %2566 = vmatprep.subr.mxu0 0.0
    %2567 = vmatpush1.msra.mxu0 0.0
    %2568 = vmatprep.mubr.f32.mxu0 0.0
    %v2569 = vand.u32 %v2312, 4294901760
    %2570 = vmatmul.mubr.f32.gmra.mrb[0].mxu0 %v2569
    %v2571 = vpop.f32.mrb[0].mxu0
    %v2572 = vadd.f32 %v2411, %v2571
    %v2573 = vpop.f32.mrb[0].mxu0
    %2574 = vmatprep.mubr.f32.mxu0 0.0
    %v2575 = vand.u32 %v2315, 4294901760
    %2576 = vmatmul.mubr.f32.gmra.mrb[0].mxu0 %v2575
    %v2577 = vpop.f32.mrb[0].mxu0
    %v2578 = vadd.f32 %v2421, %v2577
    %v2579 = vpop.f32.mrb[0].mxu0
    %2580 = vmatprep.mubr.f32.mxu0 0.0
    %v2581 = vand.u32 %v2318, 4294901760
    %2582 = vmatmul.mubr.f32.gmra.mrb[0].mxu0 %v2581
    %v2583 = vpop.f32.mrb[0].mxu0
    %v2584 = vadd.f32 %v2431, %v2583
    %v2585 = vpop.f32.mrb[0].mxu0
    %2586 = vmatprep.mubr.f32.mxu0 0.0
    %v2587 = vand.u32 %v2321, 4294901760
    %2588 = vmatmul.mubr.f32.gmra.mrb[0].mxu0 %v2587
    %v2589 = vpop.f32.mrb[0].mxu0
    %v2590 = vadd.f32 %v2441, %v2589
    %v2591 = vpop.f32.mrb[0].mxu0
    %2592 = vmatprep.mubr.f32.mxu0 0.0
    %v2593 = vand.u32 %v2324, 4294901760
    %2594 = vmatmul.mubr.f32.gmra.mrb[0].mxu0 %v2593
    %v2595 = vpop.f32.mrb[0].mxu0
    %v2596 = vadd.f32 %v2451, %v2595
    %v2597 = vpop.f32.mrb[0].mxu0
    %2598 = vmatprep.mubr.f32.mxu0 0.0
    %v2599 = vand.u32 %v2327, 4294901760
    %2600 = vmatmul.mubr.f32.gmra.mrb[0].mxu0 %v2599
    %v2601 = vpop.f32.mrb[0].mxu0
    %v2602 = vadd.f32 %v2461, %v2601
    %v2603 = vpop.f32.mrb[0].mxu0
    %2604 = vmatprep.mubr.f32.mxu0 0.0
    %v2605 = vand.u32 %v2330, 4294901760
    %2606 = vmatmul.mubr.f32.gmra.mrb[0].mxu0 %v2605
    %v2607 = vpop.f32.mrb[0].mxu0
    %v2608 = vadd.f32 %v2471, %v2607
    %v2609 = vpop.f32.mrb[0].mxu0
    %2610 = vmatprep.mubr.f32.mxu0 0.0
    %v2611 = vand.u32 %v2333, 4294901760
    %2612 = vmatmul.mubr.f32.gmra.mrb[0].mxu0 %v2611
    %v2613 = vpop.f32.mrb[0].mxu0
    %v2614 = vadd.f32 %v2481, %v2613
    %v2615 = vpop.f32.mrb[0].mxu0
    %2616 = vdwg.mxu0
    %2617 = vmatprep.subr.mxu0 0.0
    %v2618 = vand.u32 %v2303, 4294901760
    %v2619 = vsub.f32 %v2303, %v2618
    %2620 = vmatpush1.msra.mxu0 %v2619
    %2621 = vmatprep.subr.mxu0 0.0
    %v2622 = vand.u32 %v2304, 4294901760
    %v2623 = vsub.f32 %v2304, %v2622
    %2624 = vmatpush1.msra.mxu0 %v2623
    %2625 = vmatprep.subr.mxu0 0.0
    %v2626 = vand.u32 %v2305, 4294901760
    %v2627 = vsub.f32 %v2305, %v2626
    %2628 = vmatpush1.msra.mxu0 %v2627
    %2629 = vmatprep.subr.mxu0 0.0
    %v2630 = vand.u32 %v2306, 4294901760
    %v2631 = vsub.f32 %v2306, %v2630
    %2632 = vmatpush1.msra.mxu0 %v2631
    %2633 = vmatprep.subr.mxu0 0.0
    %2634 = vmatpush1.msra.mxu0 0.0
    %2635 = vmatprep.subr.mxu0 0.0
    %2636 = vmatpush1.msra.mxu0 0.0
    %2637 = vmatprep.subr.mxu0 0.0
    %2638 = vmatpush1.msra.mxu0 0.0
    %2639 = vmatprep.subr.mxu0 0.0
    %2640 = vmatpush1.msra.mxu0 0.0
    %2641 = vmatprep.subr.mxu0 0.0
    %2642 = vmatpush1.msra.mxu0 0.0
    %2643 = vmatprep.subr.mxu0 0.0
    %2644 = vmatpush1.msra.mxu0 0.0
    %2645 = vmatprep.subr.mxu0 0.0
    %2646 = vmatpush1.msra.mxu0 0.0
    %2647 = vmatprep.subr.mxu0 0.0
    %2648 = vmatpush1.msra.mxu0 0.0
    %2649 = vmatprep.subr.mxu0 0.0
    %2650 = vmatpush1.msra.mxu0 0.0
    %2651 = vmatprep.subr.mxu0 0.0
    %2652 = vmatpush1.msra.mxu0 0.0
    %2653 = vmatprep.subr.mxu0 0.0
    %2654 = vmatpush1.msra.mxu0 0.0
    %2655 = vmatprep.subr.mxu0 0.0
    %2656 = vmatpush1.msra.mxu0 0.0
    %2657 = vmatprep.subr.mxu0 0.0
    %2658 = vmatpush1.msra.mxu0 0.0
    %2659 = vmatprep.subr.mxu0 0.0
    %2660 = vmatpush1.msra.mxu0 0.0
    %2661 = vmatprep.subr.mxu0 0.0
    %2662 = vmatpush1.msra.mxu0 0.0
    %2663 = vmatprep.subr.mxu0 0.0
    %2664 = vmatpush1.msra.mxu0 0.0
    %2665 = vmatprep.subr.mxu0 0.0
    %2666 = vmatpush1.msra.mxu0 0.0
    %2667 = vmatprep.subr.mxu0 0.0
    %2668 = vmatpush1.msra.mxu0 0.0
    %2669 = vmatprep.subr.mxu0 0.0
    %2670 = vmatpush1.msra.mxu0 0.0
    %2671 = vmatprep.subr.mxu0 0.0
    %2672 = vmatpush1.msra.mxu0 0.0
    %2673 = vmatprep.subr.mxu0 0.0
    %2674 = vmatpush1.msra.mxu0 0.0
    %2675 = vmatprep.subr.mxu0 0.0
    %2676 = vmatpush1.msra.mxu0 0.0
    %2677 = vmatprep.subr.mxu0 0.0
    %2678 = vmatpush1.msra.mxu0 0.0
    %2679 = vmatprep.subr.mxu0 0.0
    %2680 = vmatpush1.msra.mxu0 0.0
    %2681 = vmatprep.subr.mxu0 0.0
    %2682 = vmatpush1.msra.mxu0 0.0
    %2683 = vmatprep.subr.mxu0 0.0
    %2684 = vmatpush1.msra.mxu0 0.0
    %2685 = vmatprep.subr.mxu0 0.0
    %2686 = vmatpush1.msra.mxu0 0.0
    %2687 = vmatprep.subr.mxu0 0.0
    %2688 = vmatpush1.msra.mxu0 0.0
    %2689 = vmatprep.mubr.f32.mxu0 0.0
    %v2690 = vand.u32 %v2312, 4294901760
    %v2691 = vsub.f32 %v2312, %v2690
    %2692 = vmatmul.mubr.f32.gmra.mrb[0].mxu0 %v2691
    %v2693 = vpop.f32.mrb[0].mxu0
    %v2694 = vadd.f32 %v2572, %v2693
    %v2695 = vpop.f32.mrb[0].mxu0
    %2696 = vmatprep.mubr.f32.mxu0 0.0
    %v2697 = vand.u32 %v2315, 4294901760
    %v2698 = vsub.f32 %v2315, %v2697
    %2699 = vmatmul.mubr.f32.gmra.mrb[0].mxu0 %v2698
    %v2700 = vpop.f32.mrb[0].mxu0
    %v2701 = vadd.f32 %v2578, %v2700
    %v2702 = vpop.f32.mrb[0].mxu0
    %2703 = vmatprep.mubr.f32.mxu0 0.0
    %v2704 = vand.u32 %v2318, 4294901760
    %v2705 = vsub.f32 %v2318, %v2704
    %2706 = vmatmul.mubr.f32.gmra.mrb[0].mxu0 %v2705
    %v2707 = vpop.f32.mrb[0].mxu0
    %v2708 = vadd.f32 %v2584, %v2707
    %v2709 = vpop.f32.mrb[0].mxu0
    %2710 = vmatprep.mubr.f32.mxu0 0.0
    %v2711 = vand.u32 %v2321, 4294901760
    %v2712 = vsub.f32 %v2321, %v2711
    %2713 = vmatmul.mubr.f32.gmra.mrb[0].mxu0 %v2712
    %v2714 = vpop.f32.mrb[0].mxu0
    %v2715 = vadd.f32 %v2590, %v2714
    %v2716 = vpop.f32.mrb[0].mxu0
    %2717 = vmatprep.mubr.f32.mxu0 0.0
    %v2718 = vand.u32 %v2324, 4294901760
    %v2719 = vsub.f32 %v2324, %v2718
    %2720 = vmatmul.mubr.f32.gmra.mrb[0].mxu0 %v2719
    %v2721 = vpop.f32.mrb[0].mxu0
    %v2722 = vadd.f32 %v2596, %v2721
    %v2723 = vpop.f32.mrb[0].mxu0
    %2724 = vmatprep.mubr.f32.mxu0 0.0
    %v2725 = vand.u32 %v2327, 4294901760
    %v2726 = vsub.f32 %v2327, %v2725
    %2727 = vmatmul.mubr.f32.gmra.mrb[0].mxu0 %v2726
    %v2728 = vpop.f32.mrb[0].mxu0
    %v2729 = vadd.f32 %v2602, %v2728
    %v2730 = vpop.f32.mrb[0].mxu0
    %2731 = vmatprep.mubr.f32.mxu0 0.0
    %v2732 = vand.u32 %v2330, 4294901760
    %v2733 = vsub.f32 %v2330, %v2732
    %2734 = vmatmul.mubr.f32.gmra.mrb[0].mxu0 %v2733
    %v2735 = vpop.f32.mrb[0].mxu0
    %v2736 = vadd.f32 %v2608, %v2735
    %v2737 = vpop.f32.mrb[0].mxu0
    %2738 = vmatprep.mubr.f32.mxu0 0.0
    %v2739 = vand.u32 %v2333, 4294901760
    %v2740 = vsub.f32 %v2333, %v2739
    %2741 = vmatmul.mubr.f32.gmra.mrb[0].mxu0 %v2740
    %v2742 = vpop.f32.mrb[0].mxu0
    %v2743 = vadd.f32 %v2614, %v2742
    %v2744 = vpop.f32.mrb[0].mxu0
    %2745 = vdwg.mxu0
    %2746 = vmatprep.subr.mxu0 0.0
    %v2747 = vand.u32 %v2303, 4294901760
    %2748 = vmatpush1.msra.mxu0 %v2747
    %2749 = vmatprep.subr.mxu0 0.0
    %v2750 = vand.u32 %v2304, 4294901760
    %2751 = vmatpush1.msra.mxu0 %v2750
    %2752 = vmatprep.subr.mxu0 0.0
    %v2753 = vand.u32 %v2305, 4294901760
    %2754 = vmatpush1.msra.mxu0 %v2753
    %2755 = vmatprep.subr.mxu0 0.0
    %v2756 = vand.u32 %v2306, 4294901760
    %2757 = vmatpush1.msra.mxu0 %v2756
    %2758 = vmatprep.subr.mxu0 0.0
    %2759 = vmatpush1.msra.mxu0 0.0
    %2760 = vmatprep.subr.mxu0 0.0
    %2761 = vmatpush1.msra.mxu0 0.0
    %2762 = vmatprep.subr.mxu0 0.0
    %2763 = vmatpush1.msra.mxu0 0.0
    %2764 = vmatprep.subr.mxu0 0.0
    %2765 = vmatpush1.msra.mxu0 0.0
    %2766 = vmatprep.subr.mxu0 0.0
    %2767 = vmatpush1.msra.mxu0 0.0
    %2768 = vmatprep.subr.mxu0 0.0
    %2769 = vmatpush1.msra.mxu0 0.0
    %2770 = vmatprep.subr.mxu0 0.0
    %2771 = vmatpush1.msra.mxu0 0.0
    %2772 = vmatprep.subr.mxu0 0.0
    %2773 = vmatpush1.msra.mxu0 0.0
    %2774 = vmatprep.subr.mxu0 0.0
    %2775 = vmatpush1.msra.mxu0 0.0
    %2776 = vmatprep.subr.mxu0 0.0
    %2777 = vmatpush1.msra.mxu0 0.0
    %2778 = vmatprep.subr.mxu0 0.0
    %2779 = vmatpush1.msra.mxu0 0.0
    %2780 = vmatprep.subr.mxu0 0.0
    %2781 = vmatpush1.msra.mxu0 0.0
    %2782 = vmatprep.subr.mxu0 0.0
    %2783 = vmatpush1.msra.mxu0 0.0
    %2784 = vmatprep.subr.mxu0 0.0
    %2785 = vmatpush1.msra.mxu0 0.0
    %2786 = vmatprep.subr.mxu0 0.0
    %2787 = vmatpush1.msra.mxu0 0.0
    %2788 = vmatprep.subr.mxu0 0.0
    %2789 = vmatpush1.msra.mxu0 0.0
    %2790 = vmatprep.subr.mxu0 0.0
    %2791 = vmatpush1.msra.mxu0 0.0
    %2792 = vmatprep.subr.mxu0 0.0
    %2793 = vmatpush1.msra.mxu0 0.0
    %2794 = vmatprep.subr.mxu0 0.0
    %2795 = vmatpush1.msra.mxu0 0.0
    %2796 = vmatprep.subr.mxu0 0.0
    %2797 = vmatpush1.msra.mxu0 0.0
    %2798 = vmatprep.subr.mxu0 0.0
    %2799 = vmatpush1.msra.mxu0 0.0
    %2800 = vmatprep.subr.mxu0 0.0
    %2801 = vmatpush1.msra.mxu0 0.0
    %2802 = vmatprep.subr.mxu0 0.0
    %2803 = vmatpush1.msra.mxu0 0.0
    %2804 = vmatprep.subr.mxu0 0.0
    %2805 = vmatpush1.msra.mxu0 0.0
    %2806 = vmatprep.subr.mxu0 0.0
    %2807 = vmatpush1.msra.mxu0 0.0
    %2808 = vmatprep.subr.mxu0 0.0
    %2809 = vmatpush1.msra.mxu0 0.0
    %2810 = vmatprep.subr.mxu0 0.0
    %2811 = vmatpush1.msra.mxu0 0.0
    %2812 = vmatprep.subr.mxu0 0.0
    %2813 = vmatpush1.msra.mxu0 0.0
    %2814 = vmatprep.mubr.f32.mxu0 0.0
    %v2815 = vand.u32 %v2312, 4294901760
    %v2816 = vsub.f32 %v2312, %v2815
    %v2817 = vand.u32 %v2816, 4294901760
    %2818 = vmatmul.mubr.f32.gmra.mrb[0].mxu0 %v2817
    %v2819 = vpop.f32.mrb[0].mxu0
    %v2820 = vadd.f32 %v2694, %v2819
    %v2821 = vpop.f32.mrb[0].mxu0
    %2822 = vmatprep.mubr.f32.mxu0 0.0
    %v2823 = vand.u32 %v2315, 4294901760
    %v2824 = vsub.f32 %v2315, %v2823
    %v2825 = vand.u32 %v2824, 4294901760
    %2826 = vmatmul.mubr.f32.gmra.mrb[0].mxu0 %v2825
    %v2827 = vpop.f32.mrb[0].mxu0
    %v2828 = vadd.f32 %v2701, %v2827
    %v2829 = vpop.f32.mrb[0].mxu0
    %2830 = vmatprep.mubr.f32.mxu0 0.0
    %v2831 = vand.u32 %v2318, 4294901760
    %v2832 = vsub.f32 %v2318, %v2831
    %v2833 = vand.u32 %v2832, 4294901760
    %2834 = vmatmul.mubr.f32.gmra.mrb[0].mxu0 %v2833
    %v2835 = vpop.f32.mrb[0].mxu0
    %v2836 = vadd.f32 %v2708, %v2835
    %v2837 = vpop.f32.mrb[0].mxu0
    %2838 = vmatprep.mubr.f32.mxu0 0.0
    %v2839 = vand.u32 %v2321, 4294901760
    %v2840 = vsub.f32 %v2321, %v2839
    %v2841 = vand.u32 %v2840, 4294901760
    %2842 = vmatmul.mubr.f32.gmra.mrb[0].mxu0 %v2841
    %v2843 = vpop.f32.mrb[0].mxu0
    %v2844 = vadd.f32 %v2715, %v2843
    %v2845 = vpop.f32.mrb[0].mxu0
    %2846 = vmatprep.mubr.f32.mxu0 0.0
    %v2847 = vand.u32 %v2324, 4294901760
    %v2848 = vsub.f32 %v2324, %v2847
    %v2849 = vand.u32 %v2848, 4294901760
    %2850 = vmatmul.mubr.f32.gmra.mrb[0].mxu0 %v2849
    %v2851 = vpop.f32.mrb[0].mxu0
    %v2852 = vadd.f32 %v2722, %v2851
    %v2853 = vpop.f32.mrb[0].mxu0
    %2854 = vmatprep.mubr.f32.mxu0 0.0
    %v2855 = vand.u32 %v2327, 4294901760
    %v2856 = vsub.f32 %v2327, %v2855
    %v2857 = vand.u32 %v2856, 4294901760
    %2858 = vmatmul.mubr.f32.gmra.mrb[0].mxu0 %v2857
    %v2859 = vpop.f32.mrb[0].mxu0
    %v2860 = vadd.f32 %v2729, %v2859
    %v2861 = vpop.f32.mrb[0].mxu0
    %2862 = vmatprep.mubr.f32.mxu0 0.0
    %v2863 = vand.u32 %v2330, 4294901760
    %v2864 = vsub.f32 %v2330, %v2863
    %v2865 = vand.u32 %v2864, 4294901760
    %2866 = vmatmul.mubr.f32.gmra.mrb[0].mxu0 %v2865
    %v2867 = vpop.f32.mrb[0].mxu0
    %v2868 = vadd.f32 %v2736, %v2867
    %v2869 = vpop.f32.mrb[0].mxu0
    %2870 = vmatprep.mubr.f32.mxu0 0.0
    %v2871 = vand.u32 %v2333, 4294901760
    %v2872 = vsub.f32 %v2333, %v2871
    %v2873 = vand.u32 %v2872, 4294901760
    %2874 = vmatmul.mubr.f32.gmra.mrb[0].mxu0 %v2873
    %v2875 = vpop.f32.mrb[0].mxu0
    %v2876 = vadd.f32 %v2743, %v2875
    %v2877 = vpop.f32.mrb[0].mxu0
    %2878 = vdwg.mxu0
    %2879 = vmatprep.subr.mxu0 0.0
    %v2880 = vand.u32 %v2303, 4294901760
    %v2881 = vsub.f32 %v2303, %v2880
    %v2882 = vand.u32 %v2881, 4294901760
    %2883 = vmatpush1.msra.mxu0 %v2882
    %2884 = vmatprep.subr.mxu0 0.0
    %v2885 = vand.u32 %v2304, 4294901760
    %v2886 = vsub.f32 %v2304, %v2885
    %v2887 = vand.u32 %v2886, 4294901760
    %2888 = vmatpush1.msra.mxu0 %v2887
    %2889 = vmatprep.subr.mxu0 0.0
    %v2890 = vand.u32 %v2305, 4294901760
    %v2891 = vsub.f32 %v2305, %v2890
    %v2892 = vand.u32 %v2891, 4294901760
    %2893 = vmatpush1.msra.mxu0 %v2892
    %2894 = vmatprep.subr.mxu0 0.0
    %v2895 = vand.u32 %v2306, 4294901760
    %v2896 = vsub.f32 %v2306, %v2895
    %v2897 = vand.u32 %v2896, 4294901760
    %2898 = vmatpush1.msra.mxu0 %v2897
    %2899 = vmatprep.subr.mxu0 0.0
    %2900 = vmatpush1.msra.mxu0 0.0
    %2901 = vmatprep.subr.mxu0 0.0
    %2902 = vmatpush1.msra.mxu0 0.0
    %2903 = vmatprep.subr.mxu0 0.0
    %2904 = vmatpush1.msra.mxu0 0.0
    %2905 = vmatprep.subr.mxu0 0.0
    %2906 = vmatpush1.msra.mxu0 0.0
    %2907 = vmatprep.subr.mxu0 0.0
    %2908 = vmatpush1.msra.mxu0 0.0
    %2909 = vmatprep.subr.mxu0 0.0
    %2910 = vmatpush1.msra.mxu0 0.0
    %2911 = vmatprep.subr.mxu0 0.0
    %2912 = vmatpush1.msra.mxu0 0.0
    %2913 = vmatprep.subr.mxu0 0.0
    %2914 = vmatpush1.msra.mxu0 0.0
    %2915 = vmatprep.subr.mxu0 0.0
    %2916 = vmatpush1.msra.mxu0 0.0
    %2917 = vmatprep.subr.mxu0 0.0
    %2918 = vmatpush1.msra.mxu0 0.0
    %2919 = vmatprep.subr.mxu0 0.0
    %2920 = vmatpush1.msra.mxu0 0.0
    %2921 = vmatprep.subr.mxu0 0.0
    %2922 = vmatpush1.msra.mxu0 0.0
    %2923 = vmatprep.subr.mxu0 0.0
    %2924 = vmatpush1.msra.mxu0 0.0
    %2925 = vmatprep.subr.mxu0 0.0
    %2926 = vmatpush1.msra.mxu0 0.0
    %2927 = vmatprep.subr.mxu0 0.0
    %2928 = vmatpush1.msra.mxu0 0.0
    %2929 = vmatprep.subr.mxu0 0.0
    %2930 = vmatpush1.msra.mxu0 0.0
    %2931 = vmatprep.subr.mxu0 0.0
    %2932 = vmatpush1.msra.mxu0 0.0
    %2933 = vmatprep.subr.mxu0 0.0
    %2934 = vmatpush1.msra.mxu0 0.0
    %2935 = vmatprep.subr.mxu0 0.0
    %2936 = vmatpush1.msra.mxu0 0.0
    %2937 = vmatprep.subr.mxu0 0.0
    %2938 = vmatpush1.msra.mxu0 0.0
    %2939 = vmatprep.subr.mxu0 0.0
    %2940 = vmatpush1.msra.mxu0 0.0
    %2941 = vmatprep.subr.mxu0 0.0
    %2942 = vmatpush1.msra.mxu0 0.0
    %2943 = vmatprep.subr.mxu0 0.0
    %2944 = vmatpush1.msra.mxu0 0.0
    %2945 = vmatprep.subr.mxu0 0.0
    %2946 = vmatpush1.msra.mxu0 0.0
    %2947 = vmatprep.subr.mxu0 0.0
    %2948 = vmatpush1.msra.mxu0 0.0
    %2949 = vmatprep.subr.mxu0 0.0
    %2950 = vmatpush1.msra.mxu0 0.0
    %2951 = vmatprep.subr.mxu0 0.0
    %2952 = vmatpush1.msra.mxu0 0.0
    %2953 = vmatprep.subr.mxu0 0.0
    %2954 = vmatpush1.msra.mxu0 0.0
    %2955 = vmatprep.mubr.f32.mxu0 0.0
    %v2956 = vand.u32 %v2312, 4294901760
    %2957 = vmatmul.mubr.f32.gmra.mrb[0].mxu0 %v2956
    %v2958 = vpop.f32.mrb[0].mxu0
    %v2959 = vadd.f32 %v2820, %v2958
    %v2960 = vpop.f32.mrb[0].mxu0
    %2961 = vmatprep.mubr.f32.mxu0 0.0
    %v2962 = vand.u32 %v2315, 4294901760
    %2963 = vmatmul.mubr.f32.gmra.mrb[0].mxu0 %v2962
    %v2964 = vpop.f32.mrb[0].mxu0
    %v2965 = vadd.f32 %v2828, %v2964
    %v2966 = vpop.f32.mrb[0].mxu0
    %2967 = vmatprep.mubr.f32.mxu0 0.0
    %v2968 = vand.u32 %v2318, 4294901760
    %2969 = vmatmul.mubr.f32.gmra.mrb[0].mxu0 %v2968
    %v2970 = vpop.f32.mrb[0].mxu0
    %v2971 = vadd.f32 %v2836, %v2970
    %v2972 = vpop.f32.mrb[0].mxu0
    %2973 = vmatprep.mubr.f32.mxu0 0.0
    %v2974 = vand.u32 %v2321, 4294901760
    %2975 = vmatmul.mubr.f32.gmra.mrb[0].mxu0 %v2974
    %v2976 = vpop.f32.mrb[0].mxu0
    %v2977 = vadd.f32 %v2844, %v2976
    %v2978 = vpop.f32.mrb[0].mxu0
    %2979 = vmatprep.mubr.f32.mxu0 0.0
    %v2980 = vand.u32 %v2324, 4294901760
    %2981 = vmatmul.mubr.f32.gmra.mrb[0].mxu0 %v2980
    %v2982 = vpop.f32.mrb[0].mxu0
    %v2983 = vadd.f32 %v2852, %v2982
    %v2984 = vpop.f32.mrb[0].mxu0
    %2985 = vmatprep.mubr.f32.mxu0 0.0
    %v2986 = vand.u32 %v2327, 4294901760
    %2987 = vmatmul.mubr.f32.gmra.mrb[0].mxu0 %v2986
    %v2988 = vpop.f32.mrb[0].mxu0
    %v2989 = vadd.f32 %v2860, %v2988
    %v2990 = vpop.f32.mrb[0].mxu0
    %2991 = vmatprep.mubr.f32.mxu0 0.0
    %v2992 = vand.u32 %v2330, 4294901760
    %2993 = vmatmul.mubr.f32.gmra.mrb[0].mxu0 %v2992
    %v2994 = vpop.f32.mrb[0].mxu0
    %v2995 = vadd.f32 %v2868, %v2994
    %v2996 = vpop.f32.mrb[0].mxu0
    %2997 = vmatprep.mubr.f32.mxu0 0.0
    %v2998 = vand.u32 %v2333, 4294901760
    %2999 = vmatmul.mubr.f32.gmra.mrb[0].mxu0 %v2998
    %v3000 = vpop.f32.mrb[0].mxu0
    %v3001 = vadd.f32 %v2876, %v3000
    %v3002 = vpop.f32.mrb[0].mxu0
    %3003 = vdwg.mxu0
    %3004 = vmatprep.subr.mxu0 0.0
    %v3005 = vand.u32 %v2303, 4294901760
    %3006 = vmatpush1.msra.mxu0 %v3005
    %3007 = vmatprep.subr.mxu0 0.0
    %v3008 = vand.u32 %v2304, 4294901760
    %3009 = vmatpush1.msra.mxu0 %v3008
    %3010 = vmatprep.subr.mxu0 0.0
    %v3011 = vand.u32 %v2305, 4294901760
    %3012 = vmatpush1.msra.mxu0 %v3011
    %3013 = vmatprep.subr.mxu0 0.0
    %v3014 = vand.u32 %v2306, 4294901760
    %3015 = vmatpush1.msra.mxu0 %v3014
    %3016 = vmatprep.subr.mxu0 0.0
    %3017 = vmatpush1.msra.mxu0 0.0
    %3018 = vmatprep.subr.mxu0 0.0
    %3019 = vmatpush1.msra.mxu0 0.0
    %3020 = vmatprep.subr.mxu0 0.0
    %3021 = vmatpush1.msra.mxu0 0.0
    %3022 = vmatprep.subr.mxu0 0.0
    %3023 = vmatpush1.msra.mxu0 0.0
    %3024 = vmatprep.subr.mxu0 0.0
    %3025 = vmatpush1.msra.mxu0 0.0
    %3026 = vmatprep.subr.mxu0 0.0
    %3027 = vmatpush1.msra.mxu0 0.0
    %3028 = vmatprep.subr.mxu0 0.0
    %3029 = vmatpush1.msra.mxu0 0.0
    %3030 = vmatprep.subr.mxu0 0.0
    %3031 = vmatpush1.msra.mxu0 0.0
    %3032 = vmatprep.subr.mxu0 0.0
    %3033 = vmatpush1.msra.mxu0 0.0
    %3034 = vmatprep.subr.mxu0 0.0
    %3035 = vmatpush1.msra.mxu0 0.0
    %3036 = vmatprep.subr.mxu0 0.0
    %3037 = vmatpush1.msra.mxu0 0.0
    %3038 = vmatprep.subr.mxu0 0.0
    %3039 = vmatpush1.msra.mxu0 0.0
    %3040 = vmatprep.subr.mxu0 0.0
    %3041 = vmatpush1.msra.mxu0 0.0
    %3042 = vmatprep.subr.mxu0 0.0
    %3043 = vmatpush1.msra.mxu0 0.0
    %3044 = vmatprep.subr.mxu0 0.0
    %3045 = vmatpush1.msra.mxu0 0.0
    %3046 = vmatprep.subr.mxu0 0.0
    %3047 = vmatpush1.msra.mxu0 0.0
    %3048 = vmatprep.subr.mxu0 0.0
    %3049 = vmatpush1.msra.mxu0 0.0
    %3050 = vmatprep.subr.mxu0 0.0
    %3051 = vmatpush1.msra.mxu0 0.0
    %3052 = vmatprep.subr.mxu0 0.0
    %3053 = vmatpush1.msra.mxu0 0.0
    %3054 = vmatprep.subr.mxu0 0.0
    %3055 = vmatpush1.msra.mxu0 0.0
    %3056 = vmatprep.subr.mxu0 0.0
    %3057 = vmatpush1.msra.mxu0 0.0
    %3058 = vmatprep.subr.mxu0 0.0
    %3059 = vmatpush1.msra.mxu0 0.0
    %3060 = vmatprep.subr.mxu0 0.0
    %3061 = vmatpush1.msra.mxu0 0.0
    %3062 = vmatprep.subr.mxu0 0.0
    %3063 = vmatpush1.msra.mxu0 0.0
    %3064 = vmatprep.subr.mxu0 0.0
    %3065 = vmatpush1.msra.mxu0 0.0
    %3066 = vmatprep.subr.mxu0 0.0
    %3067 = vmatpush1.msra.mxu0 0.0
    %3068 = vmatprep.subr.mxu0 0.0
    %3069 = vmatpush1.msra.mxu0 0.0
    %3070 = vmatprep.subr.mxu0 0.0
    %3071 = vmatpush1.msra.mxu0 0.0
    %3072 = vmatprep.mubr.f32.mxu0 0.0
    %v3073 = vand.u32 %v2312, 4294901760
    %3074 = vmatmul.mubr.f32.gmra.mrb[0].mxu0 %v3073
    %v3075 = vpop.f32.mrb[0].mxu0
    %v3076 = vadd.f32 %v2959, %v3075
    %v3077 = vpop.f32.mrb[0].mxu0
    %3078 = vmatprep.mubr.f32.mxu0 0.0
    %v3079 = vand.u32 %v2315, 4294901760
    %3080 = vmatmul.mubr.f32.gmra.mrb[0].mxu0 %v3079
    %v3081 = vpop.f32.mrb[0].mxu0
    %v3082 = vadd.f32 %v2965, %v3081
    %v3083 = vpop.f32.mrb[0].mxu0
    %3084 = vmatprep.mubr.f32.mxu0 0.0
    %v3085 = vand.u32 %v2318, 4294901760
    %3086 = vmatmul.mubr.f32.gmra.mrb[0].mxu0 %v3085
    %v3087 = vpop.f32.mrb[0].mxu0
    %v3088 = vadd.f32 %v2971, %v3087
    %v3089 = vpop.f32.mrb[0].mxu0
    %3090 = vmatprep.mubr.f32.mxu0 0.0
    %v3091 = vand.u32 %v2321, 4294901760
    %3092 = vmatmul.mubr.f32.gmra.mrb[0].mxu0 %v3091
    %v3093 = vpop.f32.mrb[0].mxu0
    %v3094 = vadd.f32 %v2977, %v3093
    %v3095 = vpop.f32.mrb[0].mxu0
    %3096 = vmatprep.mubr.f32.mxu0 0.0
    %v3097 = vand.u32 %v2324, 4294901760
    %3098 = vmatmul.mubr.f32.gmra.mrb[0].mxu0 %v3097
    %v3099 = vpop.f32.mrb[0].mxu0
    %v3100 = vadd.f32 %v2983, %v3099
    %v3101 = vpop.f32.mrb[0].mxu0
    %3102 = vmatprep.mubr.f32.mxu0 0.0
    %v3103 = vand.u32 %v2327, 4294901760
    %3104 = vmatmul.mubr.f32.gmra.mrb[0].mxu0 %v3103
    %v3105 = vpop.f32.mrb[0].mxu0
    %v3106 = vadd.f32 %v2989, %v3105
    %v3107 = vpop.f32.mrb[0].mxu0
    %3108 = vmatprep.mubr.f32.mxu0 0.0
    %v3109 = vand.u32 %v2330, 4294901760
    %3110 = vmatmul.mubr.f32.gmra.mrb[0].mxu0 %v3109
    %v3111 = vpop.f32.mrb[0].mxu0
    %v3112 = vadd.f32 %v2995, %v3111
    %v3113 = vpop.f32.mrb[0].mxu0
    %3114 = vmatprep.mubr.f32.mxu0 0.0
    %v3115 = vand.u32 %v2333, 4294901760
    %3116 = vmatmul.mubr.f32.gmra.mrb[0].mxu0 %v3115
    %v3117 = vpop.f32.mrb[0].mxu0
    %v3118 = vadd.f32 %v3001, %v3117
    %v3119 = vpop.f32.mrb[0].mxu0
    %3120 = vdwg.mxu0
    %3129 = vrot.lane.b32.xlu0 %v2258, 32
    %v3130 = vpop.permute.xlu0 %3129
    %3131 = vrot.lane.b32.xlu0 %v2264, 32
    %v3132 = vpop.permute.xlu0 %3131
    %3133 = vrot.lane.b32.xlu0 %v2270, 32
    %v3134 = vpop.permute.xlu0 %3133
    %3135 = vrot.lane.b32.xlu0 %v2276, 32
    %v3136 = vpop.permute.xlu0 %3135
    %3137 = vrot.lane.b32.xlu0 %v2282, 32
    %v3138 = vpop.permute.xlu0 %3137
    %3139 = vrot.lane.b32.xlu0 %v2288, 32
    %v3140 = vpop.permute.xlu0 %3139
    %3141 = vrot.lane.b32.xlu0 %v2294, 32
    %v3142 = vpop.permute.xlu0 %3141
    %3143 = vrot.lane.b32.xlu0 %v2300, 32
    %v3144 = vpop.permute.xlu0 %3143
    %v3153 = vadd.f32 %v3076, %v3130
    %v3154 = vadd.f32 %v3082, %v3132
    %v3155 = vadd.f32 %v3088, %v3134
    %v3156 = vadd.f32 %v3094, %v3136
    %v3157 = vadd.f32 %v3100, %v3138
    %v3158 = vadd.f32 %v3106, %v3140
    %v3159 = vadd.f32 %v3112, %v3142
    %v3160 = vadd.f32 %v3118, %v3144
    %v3161 = vsub.f32 %v553, %v3076
    %v3162 = vsub.f32 %v553, %v3082
    %v3163 = vsub.f32 %v553, %v3088
    %v3164 = vsub.f32 %v553, %v3094
    %v3165 = vsub.f32 %v553, %v3100
    %v3166 = vsub.f32 %v553, %v3106
    %v3167 = vsub.f32 %v553, %v3112
    %v3168 = vsub.f32 %v553, %v3118
    %v3169 = vadd.f32 %v3161, %v2258
    %v3170 = vadd.f32 %v3162, %v2264
    %v3171 = vadd.f32 %v3163, %v2270
    %v3172 = vadd.f32 %v3164, %v2276
    %v3173 = vadd.f32 %v3165, %v2282
    %v3174 = vadd.f32 %v3166, %v2288
    %v3175 = vadd.f32 %v3167, %v2294
    %v3176 = vadd.f32 %v3168, %v2300
    %v3177 = vld [vmem:[%s5] sm:$0xff]
    %v3178 = vld [vmem:[%s5 + $0x8] sm:$0xff]
    %v3179 = vld [vmem:[%s5 + $0x10] sm:$0xff]
    %v3180 = vld [vmem:[%s5 + $0x18] sm:$0xff]
    %v3181 = vlaneseq
    %v3182 = vshrl.u32 %v3181, 7
    %v3183 = vsub.s32 0, %v3182
    %v3184 = vrot.slane %v40, %v3183
    %v3186 = vsel %vm67, %v3169, 0
    %v3189 = vsel %vm67, %v3170, 0
    %v3192 = vsel %vm67, %v3171, 0
    %v3195 = vsel %vm67, %v3172, 0
    %v3198 = vsel %vm67, %v3173, 0
    %v3201 = vsel %vm67, %v3174, 0
    %v3204 = vsel %vm67, %v3175, 0
    %v3207 = vsel %vm67, %v3176, 0
    %3209 = vmatprep.subr.mxu0 0.0
    %v3210 = vand.u32 %v3177, 4294901760
    %3211 = vmatpush1.msra.mxu0 %v3210
    %3212 = vmatprep.subr.mxu0 0.0
    %v3213 = vand.u32 %v3178, 4294901760
    %3214 = vmatpush1.msra.mxu0 %v3213
    %3215 = vmatprep.subr.mxu0 0.0
    %v3216 = vand.u32 %v3179, 4294901760
    %3217 = vmatpush1.msra.mxu0 %v3216
    %3218 = vmatprep.subr.mxu0 0.0
    %v3219 = vand.u32 %v3180, 4294901760
    %3220 = vmatpush1.msra.mxu0 %v3219
    %3221 = vmatprep.subr.mxu0 0.0
    %3222 = vmatpush1.msra.mxu0 0.0
    %3223 = vmatprep.subr.mxu0 0.0
    %3224 = vmatpush1.msra.mxu0 0.0
    %3225 = vmatprep.subr.mxu0 0.0
    %3226 = vmatpush1.msra.mxu0 0.0
    %3227 = vmatprep.subr.mxu0 0.0
    %3228 = vmatpush1.msra.mxu0 0.0
    %3229 = vmatprep.subr.mxu0 0.0
    %3230 = vmatpush1.msra.mxu0 0.0
    %3231 = vmatprep.subr.mxu0 0.0
    %3232 = vmatpush1.msra.mxu0 0.0
    %3233 = vmatprep.subr.mxu0 0.0
    %3234 = vmatpush1.msra.mxu0 0.0
    %3235 = vmatprep.subr.mxu0 0.0
    %3236 = vmatpush1.msra.mxu0 0.0
    %3237 = vmatprep.subr.mxu0 0.0
    %3238 = vmatpush1.msra.mxu0 0.0
    %3239 = vmatprep.subr.mxu0 0.0
    %3240 = vmatpush1.msra.mxu0 0.0
    %3241 = vmatprep.subr.mxu0 0.0
    %3242 = vmatpush1.msra.mxu0 0.0
    %3243 = vmatprep.subr.mxu0 0.0
    %3244 = vmatpush1.msra.mxu0 0.0
    %3245 = vmatprep.subr.mxu0 0.0
    %3246 = vmatpush1.msra.mxu0 0.0
    %3247 = vmatprep.subr.mxu0 0.0
    %3248 = vmatpush1.msra.mxu0 0.0
    %3249 = vmatprep.subr.mxu0 0.0
    %3250 = vmatpush1.msra.mxu0 0.0
    %3251 = vmatprep.subr.mxu0 0.0
    %3252 = vmatpush1.msra.mxu0 0.0
    %3253 = vmatprep.subr.mxu0 0.0
    %3254 = vmatpush1.msra.mxu0 0.0
    %3255 = vmatprep.subr.mxu0 0.0
    %3256 = vmatpush1.msra.mxu0 0.0
    %3257 = vmatprep.subr.mxu0 0.0
    %3258 = vmatpush1.msra.mxu0 0.0
    %3259 = vmatprep.subr.mxu0 0.0
    %3260 = vmatpush1.msra.mxu0 0.0
    %3261 = vmatprep.subr.mxu0 0.0
    %3262 = vmatpush1.msra.mxu0 0.0
    %3263 = vmatprep.subr.mxu0 0.0
    %3264 = vmatpush1.msra.mxu0 0.0
    %3265 = vmatprep.subr.mxu0 0.0
    %3266 = vmatpush1.msra.mxu0 0.0
    %3267 = vmatprep.subr.mxu0 0.0
    %3268 = vmatpush1.msra.mxu0 0.0
    %3269 = vmatprep.subr.mxu0 0.0
    %3270 = vmatpush1.msra.mxu0 0.0
    %3271 = vmatprep.subr.mxu0 0.0
    %3272 = vmatpush1.msra.mxu0 0.0
    %3273 = vmatprep.subr.mxu0 0.0
    %3274 = vmatpush1.msra.mxu0 0.0
    %3275 = vmatprep.subr.mxu0 0.0
    %3276 = vmatpush1.msra.mxu0 0.0
    %3277 = vmatprep.mubr.f32.mxu0 0.0
    %v3278 = vand.u32 %v3186, 4294901760
    %v3279 = vsub.f32 %v3186, %v3278
    %v3280 = vand.u32 %v3279, 4294901760
    %v3281 = vsub.f32 %v3279, %v3280
    %v3282 = vand.u32 %v3281, 4294901760
    %3283 = vmatmul.mubr.f32.gmra.mrb[0].mxu0 %v3282
    %v3284 = vpop.f32.mrb[0].mxu0
    %v3285 = vadd.f32 %v3184, %v3284
    %v3286 = vpop.f32.mrb[0].mxu0
    %3287 = vmatprep.mubr.f32.mxu0 0.0
    %v3288 = vand.u32 %v3189, 4294901760
    %v3289 = vsub.f32 %v3189, %v3288
    %v3290 = vand.u32 %v3289, 4294901760
    %v3291 = vsub.f32 %v3289, %v3290
    %v3292 = vand.u32 %v3291, 4294901760
    %3293 = vmatmul.mubr.f32.gmra.mrb[0].mxu0 %v3292
    %v3294 = vpop.f32.mrb[0].mxu0
    %v3295 = vadd.f32 %v3184, %v3294
    %v3296 = vpop.f32.mrb[0].mxu0
    %3297 = vmatprep.mubr.f32.mxu0 0.0
    %v3298 = vand.u32 %v3192, 4294901760
    %v3299 = vsub.f32 %v3192, %v3298
    %v3300 = vand.u32 %v3299, 4294901760
    %v3301 = vsub.f32 %v3299, %v3300
    %v3302 = vand.u32 %v3301, 4294901760
    %3303 = vmatmul.mubr.f32.gmra.mrb[0].mxu0 %v3302
    %v3304 = vpop.f32.mrb[0].mxu0
    %v3305 = vadd.f32 %v3184, %v3304
    %v3306 = vpop.f32.mrb[0].mxu0
    %3307 = vmatprep.mubr.f32.mxu0 0.0
    %v3308 = vand.u32 %v3195, 4294901760
    %v3309 = vsub.f32 %v3195, %v3308
    %v3310 = vand.u32 %v3309, 4294901760
    %v3311 = vsub.f32 %v3309, %v3310
    %v3312 = vand.u32 %v3311, 4294901760
    %3313 = vmatmul.mubr.f32.gmra.mrb[0].mxu0 %v3312
    %v3314 = vpop.f32.mrb[0].mxu0
    %v3315 = vadd.f32 %v3184, %v3314
    %v3316 = vpop.f32.mrb[0].mxu0
    %3317 = vmatprep.mubr.f32.mxu0 0.0
    %v3318 = vand.u32 %v3198, 4294901760
    %v3319 = vsub.f32 %v3198, %v3318
    %v3320 = vand.u32 %v3319, 4294901760
    %v3321 = vsub.f32 %v3319, %v3320
    %v3322 = vand.u32 %v3321, 4294901760
    %3323 = vmatmul.mubr.f32.gmra.mrb[0].mxu0 %v3322
    %v3324 = vpop.f32.mrb[0].mxu0
    %v3325 = vadd.f32 %v3184, %v3324
    %v3326 = vpop.f32.mrb[0].mxu0
    %3327 = vmatprep.mubr.f32.mxu0 0.0
    %v3328 = vand.u32 %v3201, 4294901760
    %v3329 = vsub.f32 %v3201, %v3328
    %v3330 = vand.u32 %v3329, 4294901760
    %v3331 = vsub.f32 %v3329, %v3330
    %v3332 = vand.u32 %v3331, 4294901760
    %3333 = vmatmul.mubr.f32.gmra.mrb[0].mxu0 %v3332
    %v3334 = vpop.f32.mrb[0].mxu0
    %v3335 = vadd.f32 %v3184, %v3334
    %v3336 = vpop.f32.mrb[0].mxu0
    %3337 = vmatprep.mubr.f32.mxu0 0.0
    %v3338 = vand.u32 %v3204, 4294901760
    %v3339 = vsub.f32 %v3204, %v3338
    %v3340 = vand.u32 %v3339, 4294901760
    %v3341 = vsub.f32 %v3339, %v3340
    %v3342 = vand.u32 %v3341, 4294901760
    %3343 = vmatmul.mubr.f32.gmra.mrb[0].mxu0 %v3342
    %v3344 = vpop.f32.mrb[0].mxu0
    %v3345 = vadd.f32 %v3184, %v3344
    %v3346 = vpop.f32.mrb[0].mxu0
    %3347 = vmatprep.mubr.f32.mxu0 0.0
    %v3348 = vand.u32 %v3207, 4294901760
    %v3349 = vsub.f32 %v3207, %v3348
    %v3350 = vand.u32 %v3349, 4294901760
    %v3351 = vsub.f32 %v3349, %v3350
    %v3352 = vand.u32 %v3351, 4294901760
    %3353 = vmatmul.mubr.f32.gmra.mrb[0].mxu0 %v3352
    %v3354 = vpop.f32.mrb[0].mxu0
    %v3355 = vadd.f32 %v3184, %v3354
    %v3356 = vpop.f32.mrb[0].mxu0
    %3357 = vdwg.mxu0
    %3358 = vmatprep.subr.mxu0 0.0
    %v3359 = vand.u32 %v3177, 4294901760
    %v3360 = vsub.f32 %v3177, %v3359
    %v3361 = vand.u32 %v3360, 4294901760
    %v3362 = vsub.f32 %v3360, %v3361
    %v3363 = vand.u32 %v3362, 4294901760
    %3364 = vmatpush1.msra.mxu0 %v3363
    %3365 = vmatprep.subr.mxu0 0.0
    %v3366 = vand.u32 %v3178, 4294901760
    %v3367 = vsub.f32 %v3178, %v3366
    %v3368 = vand.u32 %v3367, 4294901760
    %v3369 = vsub.f32 %v3367, %v3368
    %v3370 = vand.u32 %v3369, 4294901760
    %3371 = vmatpush1.msra.mxu0 %v3370
    %3372 = vmatprep.subr.mxu0 0.0
    %v3373 = vand.u32 %v3179, 4294901760
    %v3374 = vsub.f32 %v3179, %v3373
    %v3375 = vand.u32 %v3374, 4294901760
    %v3376 = vsub.f32 %v3374, %v3375
    %v3377 = vand.u32 %v3376, 4294901760
    %3378 = vmatpush1.msra.mxu0 %v3377
    %3379 = vmatprep.subr.mxu0 0.0
    %v3380 = vand.u32 %v3180, 4294901760
    %v3381 = vsub.f32 %v3180, %v3380
    %v3382 = vand.u32 %v3381, 4294901760
    %v3383 = vsub.f32 %v3381, %v3382
    %v3384 = vand.u32 %v3383, 4294901760
    %3385 = vmatpush1.msra.mxu0 %v3384
    %3386 = vmatprep.subr.mxu0 0.0
    %3387 = vmatpush1.msra.mxu0 0.0
    %3388 = vmatprep.subr.mxu0 0.0
    %3389 = vmatpush1.msra.mxu0 0.0
    %3390 = vmatprep.subr.mxu0 0.0
    %3391 = vmatpush1.msra.mxu0 0.0
    %3392 = vmatprep.subr.mxu0 0.0
    %3393 = vmatpush1.msra.mxu0 0.0
    %3394 = vmatprep.subr.mxu0 0.0
    %3395 = vmatpush1.msra.mxu0 0.0
    %3396 = vmatprep.subr.mxu0 0.0
    %3397 = vmatpush1.msra.mxu0 0.0
    %3398 = vmatprep.subr.mxu0 0.0
    %3399 = vmatpush1.msra.mxu0 0.0
    %3400 = vmatprep.subr.mxu0 0.0
    %3401 = vmatpush1.msra.mxu0 0.0
    %3402 = vmatprep.subr.mxu0 0.0
    %3403 = vmatpush1.msra.mxu0 0.0
    %3404 = vmatprep.subr.mxu0 0.0
    %3405 = vmatpush1.msra.mxu0 0.0
    %3406 = vmatprep.subr.mxu0 0.0
    %3407 = vmatpush1.msra.mxu0 0.0
    %3408 = vmatprep.subr.mxu0 0.0
    %3409 = vmatpush1.msra.mxu0 0.0
    %3410 = vmatprep.subr.mxu0 0.0
    %3411 = vmatpush1.msra.mxu0 0.0
    %3412 = vmatprep.subr.mxu0 0.0
    %3413 = vmatpush1.msra.mxu0 0.0
    %3414 = vmatprep.subr.mxu0 0.0
    %3415 = vmatpush1.msra.mxu0 0.0
    %3416 = vmatprep.subr.mxu0 0.0
    %3417 = vmatpush1.msra.mxu0 0.0
    %3418 = vmatprep.subr.mxu0 0.0
    %3419 = vmatpush1.msra.mxu0 0.0
    %3420 = vmatprep.subr.mxu0 0.0
    %3421 = vmatpush1.msra.mxu0 0.0
    %3422 = vmatprep.subr.mxu0 0.0
    %3423 = vmatpush1.msra.mxu0 0.0
    %3424 = vmatprep.subr.mxu0 0.0
    %3425 = vmatpush1.msra.mxu0 0.0
    %3426 = vmatprep.subr.mxu0 0.0
    %3427 = vmatpush1.msra.mxu0 0.0
    %3428 = vmatprep.subr.mxu0 0.0
    %3429 = vmatpush1.msra.mxu0 0.0
    %3430 = vmatprep.subr.mxu0 0.0
    %3431 = vmatpush1.msra.mxu0 0.0
    %3432 = vmatprep.subr.mxu0 0.0
    %3433 = vmatpush1.msra.mxu0 0.0
    %3434 = vmatprep.subr.mxu0 0.0
    %3435 = vmatpush1.msra.mxu0 0.0
    %3436 = vmatprep.subr.mxu0 0.0
    %3437 = vmatpush1.msra.mxu0 0.0
    %3438 = vmatprep.subr.mxu0 0.0
    %3439 = vmatpush1.msra.mxu0 0.0
    %3440 = vmatprep.subr.mxu0 0.0
    %3441 = vmatpush1.msra.mxu0 0.0
    %3442 = vmatprep.mubr.f32.mxu0 0.0
    %v3443 = vand.u32 %v3186, 4294901760
    %3444 = vmatmul.mubr.f32.gmra.mrb[0].mxu0 %v3443
    %v3445 = vpop.f32.mrb[0].mxu0
    %v3446 = vadd.f32 %v3285, %v3445
    %v3447 = vpop.f32.mrb[0].mxu0
    %3448 = vmatprep.mubr.f32.mxu0 0.0
    %v3449 = vand.u32 %v3189, 4294901760
    %3450 = vmatmul.mubr.f32.gmra.mrb[0].mxu0 %v3449
    %v3451 = vpop.f32.mrb[0].mxu0
    %v3452 = vadd.f32 %v3295, %v3451
    %v3453 = vpop.f32.mrb[0].mxu0
    %3454 = vmatprep.mubr.f32.mxu0 0.0
    %v3455 = vand.u32 %v3192, 4294901760
    %3456 = vmatmul.mubr.f32.gmra.mrb[0].mxu0 %v3455
    %v3457 = vpop.f32.mrb[0].mxu0
    %v3458 = vadd.f32 %v3305, %v3457
    %v3459 = vpop.f32.mrb[0].mxu0
    %3460 = vmatprep.mubr.f32.mxu0 0.0
    %v3461 = vand.u32 %v3195, 4294901760
    %3462 = vmatmul.mubr.f32.gmra.mrb[0].mxu0 %v3461
    %v3463 = vpop.f32.mrb[0].mxu0
    %v3464 = vadd.f32 %v3315, %v3463
    %v3465 = vpop.f32.mrb[0].mxu0
    %3466 = vmatprep.mubr.f32.mxu0 0.0
    %v3467 = vand.u32 %v3198, 4294901760
    %3468 = vmatmul.mubr.f32.gmra.mrb[0].mxu0 %v3467
    %v3469 = vpop.f32.mrb[0].mxu0
    %v3470 = vadd.f32 %v3325, %v3469
    %v3471 = vpop.f32.mrb[0].mxu0
    %3472 = vmatprep.mubr.f32.mxu0 0.0
    %v3473 = vand.u32 %v3201, 4294901760
    %3474 = vmatmul.mubr.f32.gmra.mrb[0].mxu0 %v3473
    %v3475 = vpop.f32.mrb[0].mxu0
    %v3476 = vadd.f32 %v3335, %v3475
    %v3477 = vpop.f32.mrb[0].mxu0
    %3478 = vmatprep.mubr.f32.mxu0 0.0
    %v3479 = vand.u32 %v3204, 4294901760
    %3480 = vmatmul.mubr.f32.gmra.mrb[0].mxu0 %v3479
    %v3481 = vpop.f32.mrb[0].mxu0
    %v3482 = vadd.f32 %v3345, %v3481
    %v3483 = vpop.f32.mrb[0].mxu0
    %3484 = vmatprep.mubr.f32.mxu0 0.0
    %v3485 = vand.u32 %v3207, 4294901760
    %3486 = vmatmul.mubr.f32.gmra.mrb[0].mxu0 %v3485
    %v3487 = vpop.f32.mrb[0].mxu0
    %v3488 = vadd.f32 %v3355, %v3487
    %v3489 = vpop.f32.mrb[0].mxu0
    %3490 = vdwg.mxu0
    %3491 = vmatprep.subr.mxu0 0.0
    %v3492 = vand.u32 %v3177, 4294901760
    %v3493 = vsub.f32 %v3177, %v3492
    %3494 = vmatpush1.msra.mxu0 %v3493
    %3495 = vmatprep.subr.mxu0 0.0
    %v3496 = vand.u32 %v3178, 4294901760
    %v3497 = vsub.f32 %v3178, %v3496
    %3498 = vmatpush1.msra.mxu0 %v3497
    %3499 = vmatprep.subr.mxu0 0.0
    %v3500 = vand.u32 %v3179, 4294901760
    %v3501 = vsub.f32 %v3179, %v3500
    %3502 = vmatpush1.msra.mxu0 %v3501
    %3503 = vmatprep.subr.mxu0 0.0
    %v3504 = vand.u32 %v3180, 4294901760
    %v3505 = vsub.f32 %v3180, %v3504
    %3506 = vmatpush1.msra.mxu0 %v3505
    %3507 = vmatprep.subr.mxu0 0.0
    %3508 = vmatpush1.msra.mxu0 0.0
    %3509 = vmatprep.subr.mxu0 0.0
    %3510 = vmatpush1.msra.mxu0 0.0
    %3511 = vmatprep.subr.mxu0 0.0
    %3512 = vmatpush1.msra.mxu0 0.0
    %3513 = vmatprep.subr.mxu0 0.0
    %3514 = vmatpush1.msra.mxu0 0.0
    %3515 = vmatprep.subr.mxu0 0.0
    %3516 = vmatpush1.msra.mxu0 0.0
    %3517 = vmatprep.subr.mxu0 0.0
    %3518 = vmatpush1.msra.mxu0 0.0
    %3519 = vmatprep.subr.mxu0 0.0
    %3520 = vmatpush1.msra.mxu0 0.0
    %3521 = vmatprep.subr.mxu0 0.0
    %3522 = vmatpush1.msra.mxu0 0.0
    %3523 = vmatprep.subr.mxu0 0.0
    %3524 = vmatpush1.msra.mxu0 0.0
    %3525 = vmatprep.subr.mxu0 0.0
    %3526 = vmatpush1.msra.mxu0 0.0
    %3527 = vmatprep.subr.mxu0 0.0
    %3528 = vmatpush1.msra.mxu0 0.0
    %3529 = vmatprep.subr.mxu0 0.0
    %3530 = vmatpush1.msra.mxu0 0.0
    %3531 = vmatprep.subr.mxu0 0.0
    %3532 = vmatpush1.msra.mxu0 0.0
    %3533 = vmatprep.subr.mxu0 0.0
    %3534 = vmatpush1.msra.mxu0 0.0
    %3535 = vmatprep.subr.mxu0 0.0
    %3536 = vmatpush1.msra.mxu0 0.0
    %3537 = vmatprep.subr.mxu0 0.0
    %3538 = vmatpush1.msra.mxu0 0.0
    %3539 = vmatprep.subr.mxu0 0.0
    %3540 = vmatpush1.msra.mxu0 0.0
    %3541 = vmatprep.subr.mxu0 0.0
    %3542 = vmatpush1.msra.mxu0 0.0
    %3543 = vmatprep.subr.mxu0 0.0
    %3544 = vmatpush1.msra.mxu0 0.0
    %3545 = vmatprep.subr.mxu0 0.0
    %3546 = vmatpush1.msra.mxu0 0.0
    %3547 = vmatprep.subr.mxu0 0.0
    %3548 = vmatpush1.msra.mxu0 0.0
    %3549 = vmatprep.subr.mxu0 0.0
    %3550 = vmatpush1.msra.mxu0 0.0
    %3551 = vmatprep.subr.mxu0 0.0
    %3552 = vmatpush1.msra.mxu0 0.0
    %3553 = vmatprep.subr.mxu0 0.0
    %3554 = vmatpush1.msra.mxu0 0.0
    %3555 = vmatprep.subr.mxu0 0.0
    %3556 = vmatpush1.msra.mxu0 0.0
    %3557 = vmatprep.subr.mxu0 0.0
    %3558 = vmatpush1.msra.mxu0 0.0
    %3559 = vmatprep.subr.mxu0 0.0
    %3560 = vmatpush1.msra.mxu0 0.0
    %3561 = vmatprep.subr.mxu0 0.0
    %3562 = vmatpush1.msra.mxu0 0.0
    %3563 = vmatprep.mubr.f32.mxu0 0.0
    %v3564 = vand.u32 %v3186, 4294901760
    %v3565 = vsub.f32 %v3186, %v3564
    %3566 = vmatmul.mubr.f32.gmra.mrb[0].mxu0 %v3565
    %v3567 = vpop.f32.mrb[0].mxu0
    %v3568 = vadd.f32 %v3446, %v3567
    %v3569 = vpop.f32.mrb[0].mxu0
    %3570 = vmatprep.mubr.f32.mxu0 0.0
    %v3571 = vand.u32 %v3189, 4294901760
    %v3572 = vsub.f32 %v3189, %v3571
    %3573 = vmatmul.mubr.f32.gmra.mrb[0].mxu0 %v3572
    %v3574 = vpop.f32.mrb[0].mxu0
    %v3575 = vadd.f32 %v3452, %v3574
    %v3576 = vpop.f32.mrb[0].mxu0
    %3577 = vmatprep.mubr.f32.mxu0 0.0
    %v3578 = vand.u32 %v3192, 4294901760
    %v3579 = vsub.f32 %v3192, %v3578
    %3580 = vmatmul.mubr.f32.gmra.mrb[0].mxu0 %v3579
    %v3581 = vpop.f32.mrb[0].mxu0
    %v3582 = vadd.f32 %v3458, %v3581
    %v3583 = vpop.f32.mrb[0].mxu0
    %3584 = vmatprep.mubr.f32.mxu0 0.0
    %v3585 = vand.u32 %v3195, 4294901760
    %v3586 = vsub.f32 %v3195, %v3585
    %3587 = vmatmul.mubr.f32.gmra.mrb[0].mxu0 %v3586
    %v3588 = vpop.f32.mrb[0].mxu0
    %v3589 = vadd.f32 %v3464, %v3588
    %v3590 = vpop.f32.mrb[0].mxu0
    %3591 = vmatprep.mubr.f32.mxu0 0.0
    %v3592 = vand.u32 %v3198, 4294901760
    %v3593 = vsub.f32 %v3198, %v3592
    %3594 = vmatmul.mubr.f32.gmra.mrb[0].mxu0 %v3593
    %v3595 = vpop.f32.mrb[0].mxu0
    %v3596 = vadd.f32 %v3470, %v3595
    %v3597 = vpop.f32.mrb[0].mxu0
    %3598 = vmatprep.mubr.f32.mxu0 0.0
    %v3599 = vand.u32 %v3201, 4294901760
    %v3600 = vsub.f32 %v3201, %v3599
    %3601 = vmatmul.mubr.f32.gmra.mrb[0].mxu0 %v3600
    %v3602 = vpop.f32.mrb[0].mxu0
    %v3603 = vadd.f32 %v3476, %v3602
    %v3604 = vpop.f32.mrb[0].mxu0
    %3605 = vmatprep.mubr.f32.mxu0 0.0
    %v3606 = vand.u32 %v3204, 4294901760
    %v3607 = vsub.f32 %v3204, %v3606
    %3608 = vmatmul.mubr.f32.gmra.mrb[0].mxu0 %v3607
    %v3609 = vpop.f32.mrb[0].mxu0
    %v3610 = vadd.f32 %v3482, %v3609
    %v3611 = vpop.f32.mrb[0].mxu0
    %3612 = vmatprep.mubr.f32.mxu0 0.0
    %v3613 = vand.u32 %v3207, 4294901760
    %v3614 = vsub.f32 %v3207, %v3613
    %3615 = vmatmul.mubr.f32.gmra.mrb[0].mxu0 %v3614
    %v3616 = vpop.f32.mrb[0].mxu0
    %v3617 = vadd.f32 %v3488, %v3616
    %v3618 = vpop.f32.mrb[0].mxu0
    %3619 = vdwg.mxu0
    %3620 = vmatprep.subr.mxu0 0.0
    %v3621 = vand.u32 %v3177, 4294901760
    %3622 = vmatpush1.msra.mxu0 %v3621
    %3623 = vmatprep.subr.mxu0 0.0
    %v3624 = vand.u32 %v3178, 4294901760
    %3625 = vmatpush1.msra.mxu0 %v3624
    %3626 = vmatprep.subr.mxu0 0.0
    %v3627 = vand.u32 %v3179, 4294901760
    %3628 = vmatpush1.msra.mxu0 %v3627
    %3629 = vmatprep.subr.mxu0 0.0
    %v3630 = vand.u32 %v3180, 4294901760
    %3631 = vmatpush1.msra.mxu0 %v3630
    %3632 = vmatprep.subr.mxu0 0.0
    %3633 = vmatpush1.msra.mxu0 0.0
    %3634 = vmatprep.subr.mxu0 0.0
    %3635 = vmatpush1.msra.mxu0 0.0
    %3636 = vmatprep.subr.mxu0 0.0
    %3637 = vmatpush1.msra.mxu0 0.0
    %3638 = vmatprep.subr.mxu0 0.0
    %3639 = vmatpush1.msra.mxu0 0.0
    %3640 = vmatprep.subr.mxu0 0.0
    %3641 = vmatpush1.msra.mxu0 0.0
    %3642 = vmatprep.subr.mxu0 0.0
    %3643 = vmatpush1.msra.mxu0 0.0
    %3644 = vmatprep.subr.mxu0 0.0
    %3645 = vmatpush1.msra.mxu0 0.0
    %3646 = vmatprep.subr.mxu0 0.0
    %3647 = vmatpush1.msra.mxu0 0.0
    %3648 = vmatprep.subr.mxu0 0.0
    %3649 = vmatpush1.msra.mxu0 0.0
    %3650 = vmatprep.subr.mxu0 0.0
    %3651 = vmatpush1.msra.mxu0 0.0
    %3652 = vmatprep.subr.mxu0 0.0
    %3653 = vmatpush1.msra.mxu0 0.0
    %3654 = vmatprep.subr.mxu0 0.0
    %3655 = vmatpush1.msra.mxu0 0.0
    %3656 = vmatprep.subr.mxu0 0.0
    %3657 = vmatpush1.msra.mxu0 0.0
    %3658 = vmatprep.subr.mxu0 0.0
    %3659 = vmatpush1.msra.mxu0 0.0
    %3660 = vmatprep.subr.mxu0 0.0
    %3661 = vmatpush1.msra.mxu0 0.0
    %3662 = vmatprep.subr.mxu0 0.0
    %3663 = vmatpush1.msra.mxu0 0.0
    %3664 = vmatprep.subr.mxu0 0.0
    %3665 = vmatpush1.msra.mxu0 0.0
    %3666 = vmatprep.subr.mxu0 0.0
    %3667 = vmatpush1.msra.mxu0 0.0
    %3668 = vmatprep.subr.mxu0 0.0
    %3669 = vmatpush1.msra.mxu0 0.0
    %3670 = vmatprep.subr.mxu0 0.0
    %3671 = vmatpush1.msra.mxu0 0.0
    %3672 = vmatprep.subr.mxu0 0.0
    %3673 = vmatpush1.msra.mxu0 0.0
    %3674 = vmatprep.subr.mxu0 0.0
    %3675 = vmatpush1.msra.mxu0 0.0
    %3676 = vmatprep.subr.mxu0 0.0
    %3677 = vmatpush1.msra.mxu0 0.0
    %3678 = vmatprep.subr.mxu0 0.0
    %3679 = vmatpush1.msra.mxu0 0.0
    %3680 = vmatprep.subr.mxu0 0.0
    %3681 = vmatpush1.msra.mxu0 0.0
    %3682 = vmatprep.subr.mxu0 0.0
    %3683 = vmatpush1.msra.mxu0 0.0
    %3684 = vmatprep.subr.mxu0 0.0
    %3685 = vmatpush1.msra.mxu0 0.0
    %3686 = vmatprep.subr.mxu0 0.0
    %3687 = vmatpush1.msra.mxu0 0.0
    %3688 = vmatprep.mubr.f32.mxu0 0.0
    %v3689 = vand.u32 %v3186, 4294901760
    %v3690 = vsub.f32 %v3186, %v3689
    %v3691 = vand.u32 %v3690, 4294901760
    %3692 = vmatmul.mubr.f32.gmra.mrb[0].mxu0 %v3691
    %v3693 = vpop.f32.mrb[0].mxu0
    %v3694 = vadd.f32 %v3568, %v3693
    %v3695 = vpop.f32.mrb[0].mxu0
    %3696 = vmatprep.mubr.f32.mxu0 0.0
    %v3697 = vand.u32 %v3189, 4294901760
    %v3698 = vsub.f32 %v3189, %v3697
    %v3699 = vand.u32 %v3698, 4294901760
    %3700 = vmatmul.mubr.f32.gmra.mrb[0].mxu0 %v3699
    %v3701 = vpop.f32.mrb[0].mxu0
    %v3702 = vadd.f32 %v3575, %v3701
    %v3703 = vpop.f32.mrb[0].mxu0
    %3704 = vmatprep.mubr.f32.mxu0 0.0
    %v3705 = vand.u32 %v3192, 4294901760
    %v3706 = vsub.f32 %v3192, %v3705
    %v3707 = vand.u32 %v3706, 4294901760
    %3708 = vmatmul.mubr.f32.gmra.mrb[0].mxu0 %v3707
    %v3709 = vpop.f32.mrb[0].mxu0
    %v3710 = vadd.f32 %v3582, %v3709
    %v3711 = vpop.f32.mrb[0].mxu0
    %3712 = vmatprep.mubr.f32.mxu0 0.0
    %v3713 = vand.u32 %v3195, 4294901760
    %v3714 = vsub.f32 %v3195, %v3713
    %v3715 = vand.u32 %v3714, 4294901760
    %3716 = vmatmul.mubr.f32.gmra.mrb[0].mxu0 %v3715
    %v3717 = vpop.f32.mrb[0].mxu0
    %v3718 = vadd.f32 %v3589, %v3717
    %v3719 = vpop.f32.mrb[0].mxu0
    %3720 = vmatprep.mubr.f32.mxu0 0.0
    %v3721 = vand.u32 %v3198, 4294901760
    %v3722 = vsub.f32 %v3198, %v3721
    %v3723 = vand.u32 %v3722, 4294901760
    %3724 = vmatmul.mubr.f32.gmra.mrb[0].mxu0 %v3723
    %v3725 = vpop.f32.mrb[0].mxu0
    %v3726 = vadd.f32 %v3596, %v3725
    %v3727 = vpop.f32.mrb[0].mxu0
    %3728 = vmatprep.mubr.f32.mxu0 0.0
    %v3729 = vand.u32 %v3201, 4294901760
    %v3730 = vsub.f32 %v3201, %v3729
    %v3731 = vand.u32 %v3730, 4294901760
    %3732 = vmatmul.mubr.f32.gmra.mrb[0].mxu0 %v3731
    %v3733 = vpop.f32.mrb[0].mxu0
    %v3734 = vadd.f32 %v3603, %v3733
    %v3735 = vpop.f32.mrb[0].mxu0
    %3736 = vmatprep.mubr.f32.mxu0 0.0
    %v3737 = vand.u32 %v3204, 4294901760
    %v3738 = vsub.f32 %v3204, %v3737
    %v3739 = vand.u32 %v3738, 4294901760
    %3740 = vmatmul.mubr.f32.gmra.mrb[0].mxu0 %v3739
    %v3741 = vpop.f32.mrb[0].mxu0
    %v3742 = vadd.f32 %v3610, %v3741
    %v3743 = vpop.f32.mrb[0].mxu0
    %3744 = vmatprep.mubr.f32.mxu0 0.0
    %v3745 = vand.u32 %v3207, 4294901760
    %v3746 = vsub.f32 %v3207, %v3745
    %v3747 = vand.u32 %v3746, 4294901760
    %3748 = vmatmul.mubr.f32.gmra.mrb[0].mxu0 %v3747
    %v3749 = vpop.f32.mrb[0].mxu0
    %v3750 = vadd.f32 %v3617, %v3749
    %v3751 = vpop.f32.mrb[0].mxu0
    %3752 = vdwg.mxu0
    %3753 = vmatprep.subr.mxu0 0.0
    %v3754 = vand.u32 %v3177, 4294901760
    %v3755 = vsub.f32 %v3177, %v3754
    %v3756 = vand.u32 %v3755, 4294901760
    %3757 = vmatpush1.msra.mxu0 %v3756
    %3758 = vmatprep.subr.mxu0 0.0
    %v3759 = vand.u32 %v3178, 4294901760
    %v3760 = vsub.f32 %v3178, %v3759
    %v3761 = vand.u32 %v3760, 4294901760
    %3762 = vmatpush1.msra.mxu0 %v3761
    %3763 = vmatprep.subr.mxu0 0.0
    %v3764 = vand.u32 %v3179, 4294901760
    %v3765 = vsub.f32 %v3179, %v3764
    %v3766 = vand.u32 %v3765, 4294901760
    %3767 = vmatpush1.msra.mxu0 %v3766
    %3768 = vmatprep.subr.mxu0 0.0
    %v3769 = vand.u32 %v3180, 4294901760
    %v3770 = vsub.f32 %v3180, %v3769
    %v3771 = vand.u32 %v3770, 4294901760
    %3772 = vmatpush1.msra.mxu0 %v3771
    %3773 = vmatprep.subr.mxu0 0.0
    %3774 = vmatpush1.msra.mxu0 0.0
    %3775 = vmatprep.subr.mxu0 0.0
    %3776 = vmatpush1.msra.mxu0 0.0
    %3777 = vmatprep.subr.mxu0 0.0
    %3778 = vmatpush1.msra.mxu0 0.0
    %3779 = vmatprep.subr.mxu0 0.0
    %3780 = vmatpush1.msra.mxu0 0.0
    %3781 = vmatprep.subr.mxu0 0.0
    %3782 = vmatpush1.msra.mxu0 0.0
    %3783 = vmatprep.subr.mxu0 0.0
    %3784 = vmatpush1.msra.mxu0 0.0
    %3785 = vmatprep.subr.mxu0 0.0
    %3786 = vmatpush1.msra.mxu0 0.0
    %3787 = vmatprep.subr.mxu0 0.0
    %3788 = vmatpush1.msra.mxu0 0.0
    %3789 = vmatprep.subr.mxu0 0.0
    %3790 = vmatpush1.msra.mxu0 0.0
    %3791 = vmatprep.subr.mxu0 0.0
    %3792 = vmatpush1.msra.mxu0 0.0
    %3793 = vmatprep.subr.mxu0 0.0
    %3794 = vmatpush1.msra.mxu0 0.0
    %3795 = vmatprep.subr.mxu0 0.0
    %3796 = vmatpush1.msra.mxu0 0.0
    %3797 = vmatprep.subr.mxu0 0.0
    %3798 = vmatpush1.msra.mxu0 0.0
    %3799 = vmatprep.subr.mxu0 0.0
    %3800 = vmatpush1.msra.mxu0 0.0
    %3801 = vmatprep.subr.mxu0 0.0
    %3802 = vmatpush1.msra.mxu0 0.0
    %3803 = vmatprep.subr.mxu0 0.0
    %3804 = vmatpush1.msra.mxu0 0.0
    %3805 = vmatprep.subr.mxu0 0.0
    %3806 = vmatpush1.msra.mxu0 0.0
    %3807 = vmatprep.subr.mxu0 0.0
    %3808 = vmatpush1.msra.mxu0 0.0
    %3809 = vmatprep.subr.mxu0 0.0
    %3810 = vmatpush1.msra.mxu0 0.0
    %3811 = vmatprep.subr.mxu0 0.0
    %3812 = vmatpush1.msra.mxu0 0.0
    %3813 = vmatprep.subr.mxu0 0.0
    %3814 = vmatpush1.msra.mxu0 0.0
    %3815 = vmatprep.subr.mxu0 0.0
    %3816 = vmatpush1.msra.mxu0 0.0
    %3817 = vmatprep.subr.mxu0 0.0
    %3818 = vmatpush1.msra.mxu0 0.0
    %3819 = vmatprep.subr.mxu0 0.0
    %3820 = vmatpush1.msra.mxu0 0.0
    %3821 = vmatprep.subr.mxu0 0.0
    %3822 = vmatpush1.msra.mxu0 0.0
    %3823 = vmatprep.subr.mxu0 0.0
    %3824 = vmatpush1.msra.mxu0 0.0
    %3825 = vmatprep.subr.mxu0 0.0
    %3826 = vmatpush1.msra.mxu0 0.0
    %3827 = vmatprep.subr.mxu0 0.0
    %3828 = vmatpush1.msra.mxu0 0.0
    %3829 = vmatprep.mubr.f32.mxu0 0.0
    %v3830 = vand.u32 %v3186, 4294901760
    %3831 = vmatmul.mubr.f32.gmra.mrb[0].mxu0 %v3830
    %v3832 = vpop.f32.mrb[0].mxu0
    %v3833 = vadd.f32 %v3694, %v3832
    %v3834 = vpop.f32.mrb[0].mxu0
    %3835 = vmatprep.mubr.f32.mxu0 0.0
    %v3836 = vand.u32 %v3189, 4294901760
    %3837 = vmatmul.mubr.f32.gmra.mrb[0].mxu0 %v3836
    %v3838 = vpop.f32.mrb[0].mxu0
    %v3839 = vadd.f32 %v3702, %v3838
    %v3840 = vpop.f32.mrb[0].mxu0
    %3841 = vmatprep.mubr.f32.mxu0 0.0
    %v3842 = vand.u32 %v3192, 4294901760
    %3843 = vmatmul.mubr.f32.gmra.mrb[0].mxu0 %v3842
    %v3844 = vpop.f32.mrb[0].mxu0
    %v3845 = vadd.f32 %v3710, %v3844
    %v3846 = vpop.f32.mrb[0].mxu0
    %3847 = vmatprep.mubr.f32.mxu0 0.0
    %v3848 = vand.u32 %v3195, 4294901760
    %3849 = vmatmul.mubr.f32.gmra.mrb[0].mxu0 %v3848
    %v3850 = vpop.f32.mrb[0].mxu0
    %v3851 = vadd.f32 %v3718, %v3850
    %v3852 = vpop.f32.mrb[0].mxu0
    %3853 = vmatprep.mubr.f32.mxu0 0.0
    %v3854 = vand.u32 %v3198, 4294901760
    %3855 = vmatmul.mubr.f32.gmra.mrb[0].mxu0 %v3854
    %v3856 = vpop.f32.mrb[0].mxu0
    %v3857 = vadd.f32 %v3726, %v3856
    %v3858 = vpop.f32.mrb[0].mxu0
    %3859 = vmatprep.mubr.f32.mxu0 0.0
    %v3860 = vand.u32 %v3201, 4294901760
    %3861 = vmatmul.mubr.f32.gmra.mrb[0].mxu0 %v3860
    %v3862 = vpop.f32.mrb[0].mxu0
    %v3863 = vadd.f32 %v3734, %v3862
    %v3864 = vpop.f32.mrb[0].mxu0
    %3865 = vmatprep.mubr.f32.mxu0 0.0
    %v3866 = vand.u32 %v3204, 4294901760
    %3867 = vmatmul.mubr.f32.gmra.mrb[0].mxu0 %v3866
    %v3868 = vpop.f32.mrb[0].mxu0
    %v3869 = vadd.f32 %v3742, %v3868
    %v3870 = vpop.f32.mrb[0].mxu0
    %3871 = vmatprep.mubr.f32.mxu0 0.0
    %v3872 = vand.u32 %v3207, 4294901760
    %3873 = vmatmul.mubr.f32.gmra.mrb[0].mxu0 %v3872
    %v3874 = vpop.f32.mrb[0].mxu0
    %v3875 = vadd.f32 %v3750, %v3874
    %v3876 = vpop.f32.mrb[0].mxu0
    %3877 = vdwg.mxu0
    %3878 = vmatprep.subr.mxu0 0.0
    %v3879 = vand.u32 %v3177, 4294901760
    %3880 = vmatpush1.msra.mxu0 %v3879
    %3881 = vmatprep.subr.mxu0 0.0
    %v3882 = vand.u32 %v3178, 4294901760
    %3883 = vmatpush1.msra.mxu0 %v3882
    %3884 = vmatprep.subr.mxu0 0.0
    %v3885 = vand.u32 %v3179, 4294901760
    %3886 = vmatpush1.msra.mxu0 %v3885
    %3887 = vmatprep.subr.mxu0 0.0
    %v3888 = vand.u32 %v3180, 4294901760
    %3889 = vmatpush1.msra.mxu0 %v3888
    %3890 = vmatprep.subr.mxu0 0.0
    %3891 = vmatpush1.msra.mxu0 0.0
    %3892 = vmatprep.subr.mxu0 0.0
    %3893 = vmatpush1.msra.mxu0 0.0
    %3894 = vmatprep.subr.mxu0 0.0
    %3895 = vmatpush1.msra.mxu0 0.0
    %3896 = vmatprep.subr.mxu0 0.0
    %3897 = vmatpush1.msra.mxu0 0.0
    %3898 = vmatprep.subr.mxu0 0.0
    %3899 = vmatpush1.msra.mxu0 0.0
    %3900 = vmatprep.subr.mxu0 0.0
    %3901 = vmatpush1.msra.mxu0 0.0
    %3902 = vmatprep.subr.mxu0 0.0
    %3903 = vmatpush1.msra.mxu0 0.0
    %3904 = vmatprep.subr.mxu0 0.0
    %3905 = vmatpush1.msra.mxu0 0.0
    %3906 = vmatprep.subr.mxu0 0.0
    %3907 = vmatpush1.msra.mxu0 0.0
    %3908 = vmatprep.subr.mxu0 0.0
    %3909 = vmatpush1.msra.mxu0 0.0
    %3910 = vmatprep.subr.mxu0 0.0
    %3911 = vmatpush1.msra.mxu0 0.0
    %3912 = vmatprep.subr.mxu0 0.0
    %3913 = vmatpush1.msra.mxu0 0.0
    %3914 = vmatprep.subr.mxu0 0.0
    %3915 = vmatpush1.msra.mxu0 0.0
    %3916 = vmatprep.subr.mxu0 0.0
    %3917 = vmatpush1.msra.mxu0 0.0
    %3918 = vmatprep.subr.mxu0 0.0
    %3919 = vmatpush1.msra.mxu0 0.0
    %3920 = vmatprep.subr.mxu0 0.0
    %3921 = vmatpush1.msra.mxu0 0.0
    %3922 = vmatprep.subr.mxu0 0.0
    %3923 = vmatpush1.msra.mxu0 0.0
    %3924 = vmatprep.subr.mxu0 0.0
    %3925 = vmatpush1.msra.mxu0 0.0
    %3926 = vmatprep.subr.mxu0 0.0
    %3927 = vmatpush1.msra.mxu0 0.0
    %3928 = vmatprep.subr.mxu0 0.0
    %3929 = vmatpush1.msra.mxu0 0.0
    %3930 = vmatprep.subr.mxu0 0.0
    %3931 = vmatpush1.msra.mxu0 0.0
    %3932 = vmatprep.subr.mxu0 0.0
    %3933 = vmatpush1.msra.mxu0 0.0
    %3934 = vmatprep.subr.mxu0 0.0
    %3935 = vmatpush1.msra.mxu0 0.0
    %3936 = vmatprep.subr.mxu0 0.0
    %3937 = vmatpush1.msra.mxu0 0.0
    %3938 = vmatprep.subr.mxu0 0.0
    %3939 = vmatpush1.msra.mxu0 0.0
    %3940 = vmatprep.subr.mxu0 0.0
    %3941 = vmatpush1.msra.mxu0 0.0
    %3942 = vmatprep.subr.mxu0 0.0
    %3943 = vmatpush1.msra.mxu0 0.0
    %3944 = vmatprep.subr.mxu0 0.0
    %3945 = vmatpush1.msra.mxu0 0.0
    %3946 = vmatprep.mubr.f32.mxu0 0.0
    %v3947 = vand.u32 %v3186, 4294901760
    %3948 = vmatmul.mubr.f32.gmra.mrb[0].mxu0 %v3947
    %v3949 = vpop.f32.mrb[0].mxu0
    %v3950 = vadd.f32 %v3833, %v3949
    %v3951 = vpop.f32.mrb[0].mxu0
    %3952 = vmatprep.mubr.f32.mxu0 0.0
    %v3953 = vand.u32 %v3189, 4294901760
    %3954 = vmatmul.mubr.f32.gmra.mrb[0].mxu0 %v3953
    %v3955 = vpop.f32.mrb[0].mxu0
    %v3956 = vadd.f32 %v3839, %v3955
    %v3957 = vpop.f32.mrb[0].mxu0
    %3958 = vmatprep.mubr.f32.mxu0 0.0
    %v3959 = vand.u32 %v3192, 4294901760
    %3960 = vmatmul.mubr.f32.gmra.mrb[0].mxu0 %v3959
    %v3961 = vpop.f32.mrb[0].mxu0
    %v3962 = vadd.f32 %v3845, %v3961
    %v3963 = vpop.f32.mrb[0].mxu0
    %3964 = vmatprep.mubr.f32.mxu0 0.0
    %v3965 = vand.u32 %v3195, 4294901760
    %3966 = vmatmul.mubr.f32.gmra.mrb[0].mxu0 %v3965
    %v3967 = vpop.f32.mrb[0].mxu0
    %v3968 = vadd.f32 %v3851, %v3967
    %v3969 = vpop.f32.mrb[0].mxu0
    %3970 = vmatprep.mubr.f32.mxu0 0.0
    %v3971 = vand.u32 %v3198, 4294901760
    %3972 = vmatmul.mubr.f32.gmra.mrb[0].mxu0 %v3971
    %v3973 = vpop.f32.mrb[0].mxu0
    %v3974 = vadd.f32 %v3857, %v3973
    %v3975 = vpop.f32.mrb[0].mxu0
    %3976 = vmatprep.mubr.f32.mxu0 0.0
    %v3977 = vand.u32 %v3201, 4294901760
    %3978 = vmatmul.mubr.f32.gmra.mrb[0].mxu0 %v3977
    %v3979 = vpop.f32.mrb[0].mxu0
    %v3980 = vadd.f32 %v3863, %v3979
    %v3981 = vpop.f32.mrb[0].mxu0
    %3982 = vmatprep.mubr.f32.mxu0 0.0
    %v3983 = vand.u32 %v3204, 4294901760
    %3984 = vmatmul.mubr.f32.gmra.mrb[0].mxu0 %v3983
    %v3985 = vpop.f32.mrb[0].mxu0
    %v3986 = vadd.f32 %v3869, %v3985
    %v3987 = vpop.f32.mrb[0].mxu0
    %3988 = vmatprep.mubr.f32.mxu0 0.0
    %v3989 = vand.u32 %v3207, 4294901760
    %3990 = vmatmul.mubr.f32.gmra.mrb[0].mxu0 %v3989
    %v3991 = vpop.f32.mrb[0].mxu0
    %v3992 = vadd.f32 %v3875, %v3991
    %v3993 = vpop.f32.mrb[0].mxu0
    %3994 = vdwg.mxu0
    %v3995 = vmax.f32 %v3950, 0.0
    %v3996 = vmax.f32 %v3956, 0.0
    %v3997 = vmax.f32 %v3962, 0.0
    %v3998 = vmax.f32 %v3968, 0.0
    %v3999 = vmax.f32 %v3974, 0.0
    %v4000 = vmax.f32 %v3980, 0.0
    %v4001 = vmax.f32 %v3986, 0.0
    %v4002 = vmax.f32 %v3992, 0.0
    %v4003 = vld [vmem:[%s8] sm:$0xff]
    %v4004 = vld [vmem:[%s8 + $0x8] sm:$0xff]
    %v4005 = vld [vmem:[%s8 + $0x10] sm:$0xff]
    %v4006 = vld [vmem:[%s8 + $0x18] sm:$0xff]
    %v4007 = vld [vmem:[%s8 + $0x20] sm:$0xff]
    %v4008 = vld [vmem:[%s8 + $0x28] sm:$0xff]
    %v4009 = vld [vmem:[%s8 + $0x30] sm:$0xff]
    %v4010 = vld [vmem:[%s8 + $0x38] sm:$0xff]
    %v4011 = vld [vmem:[%s8 + $0x40] sm:$0xff]
    %v4012 = vld [vmem:[%s8 + $0x48] sm:$0xff]
    %v4013 = vld [vmem:[%s8 + $0x50] sm:$0xff]
    %v4014 = vld [vmem:[%s8 + $0x58] sm:$0xff]
    %v4015 = vld [vmem:[%s8 + $0x60] sm:$0xff]
    %v4016 = vld [vmem:[%s8 + $0x68] sm:$0xff]
    %v4017 = vld [vmem:[%s8 + $0x70] sm:$0xff]
    %v4018 = vld [vmem:[%s8 + $0x78] sm:$0xff]
    %v4019 = vlaneseq
    %v4020 = vshrl.u32 %v4019, 7
    %v4021 = vsub.s32 0, %v4020
    %v4022 = vrot.slane %v41, %v4021
    %4023 = vmatprep.subr.mxu0 0.0
    %v4024 = vand.u32 %v4003, 4294901760
    %4025 = vmatpush1.msra.mxu0 %v4024
    %4026 = vmatprep.subr.mxu0 0.0
    %v4027 = vand.u32 %v4004, 4294901760
    %4028 = vmatpush1.msra.mxu0 %v4027
    %4029 = vmatprep.subr.mxu0 0.0
    %v4030 = vand.u32 %v4005, 4294901760
    %4031 = vmatpush1.msra.mxu0 %v4030
    %4032 = vmatprep.subr.mxu0 0.0
    %v4033 = vand.u32 %v4006, 4294901760
    %4034 = vmatpush1.msra.mxu0 %v4033
    %4035 = vmatprep.subr.mxu0 0.0
    %v4036 = vand.u32 %v4007, 4294901760
    %4037 = vmatpush1.msra.mxu0 %v4036
    %4038 = vmatprep.subr.mxu0 0.0
    %v4039 = vand.u32 %v4008, 4294901760
    %4040 = vmatpush1.msra.mxu0 %v4039
    %4041 = vmatprep.subr.mxu0 0.0
    %v4042 = vand.u32 %v4009, 4294901760
    %4043 = vmatpush1.msra.mxu0 %v4042
    %4044 = vmatprep.subr.mxu0 0.0
    %v4045 = vand.u32 %v4010, 4294901760
    %4046 = vmatpush1.msra.mxu0 %v4045
    %4047 = vmatprep.subr.mxu0 0.0
    %v4048 = vand.u32 %v4011, 4294901760
    %4049 = vmatpush1.msra.mxu0 %v4048
    %4050 = vmatprep.subr.mxu0 0.0
    %v4051 = vand.u32 %v4012, 4294901760
    %4052 = vmatpush1.msra.mxu0 %v4051
    %4053 = vmatprep.subr.mxu0 0.0
    %v4054 = vand.u32 %v4013, 4294901760
    %4055 = vmatpush1.msra.mxu0 %v4054
    %4056 = vmatprep.subr.mxu0 0.0
    %v4057 = vand.u32 %v4014, 4294901760
    %4058 = vmatpush1.msra.mxu0 %v4057
    %4059 = vmatprep.subr.mxu0 0.0
    %v4060 = vand.u32 %v4015, 4294901760
    %4061 = vmatpush1.msra.mxu0 %v4060
    %4062 = vmatprep.subr.mxu0 0.0
    %v4063 = vand.u32 %v4016, 4294901760
    %4064 = vmatpush1.msra.mxu0 %v4063
    %4065 = vmatprep.subr.mxu0 0.0
    %v4066 = vand.u32 %v4017, 4294901760
    %4067 = vmatpush1.msra.mxu0 %v4066
    %4068 = vmatprep.subr.mxu0 0.0
    %v4069 = vand.u32 %v4018, 4294901760
    %4070 = vmatpush1.msra.mxu0 %v4069
    %4071 = vmatprep.subr.mxu0 0.0
    %4072 = vmatpush1.msra.mxu0 0.0
    %4073 = vmatprep.subr.mxu0 0.0
    %4074 = vmatpush1.msra.mxu0 0.0
    %4075 = vmatprep.subr.mxu0 0.0
    %4076 = vmatpush1.msra.mxu0 0.0
    %4077 = vmatprep.subr.mxu0 0.0
    %4078 = vmatpush1.msra.mxu0 0.0
    %4079 = vmatprep.subr.mxu0 0.0
    %4080 = vmatpush1.msra.mxu0 0.0
    %4081 = vmatprep.subr.mxu0 0.0
    %4082 = vmatpush1.msra.mxu0 0.0
    %4083 = vmatprep.subr.mxu0 0.0
    %4084 = vmatpush1.msra.mxu0 0.0
    %4085 = vmatprep.subr.mxu0 0.0
    %4086 = vmatpush1.msra.mxu0 0.0
    %4087 = vmatprep.subr.mxu0 0.0
    %4088 = vmatpush1.msra.mxu0 0.0
    %4089 = vmatprep.subr.mxu0 0.0
    %4090 = vmatpush1.msra.mxu0 0.0
    %4091 = vmatprep.subr.mxu0 0.0
    %4092 = vmatpush1.msra.mxu0 0.0
    %4093 = vmatprep.subr.mxu0 0.0
    %4094 = vmatpush1.msra.mxu0 0.0
    %4095 = vmatprep.subr.mxu0 0.0
    %4096 = vmatpush1.msra.mxu0 0.0
    %4097 = vmatprep.subr.mxu0 0.0
    %4098 = vmatpush1.msra.mxu0 0.0
    %4099 = vmatprep.subr.mxu0 0.0
    %4100 = vmatpush1.msra.mxu0 0.0
    %4101 = vmatprep.subr.mxu0 0.0
    %4102 = vmatpush1.msra.mxu0 0.0
    %4103 = vmatprep.mubr.f32.mxu0 0.0
    %v4104 = vand.u32 %v3995, 4294901760
    %v4105 = vsub.f32 %v3995, %v4104
    %v4106 = vand.u32 %v4105, 4294901760
    %v4107 = vsub.f32 %v4105, %v4106
    %v4108 = vand.u32 %v4107, 4294901760
    %4109 = vmatmul.mubr.f32.gmra.mrb[0].mxu0 %v4108
    %v4110 = vpop.f32.mrb[0].mxu0
    %v4111 = vadd.f32 %v4022, %v4110
    %v4112 = vpop.f32.mrb[0].mxu0
    %4113 = vmatprep.mubr.f32.mxu0 0.0
    %v4114 = vand.u32 %v3996, 4294901760
    %v4115 = vsub.f32 %v3996, %v4114
    %v4116 = vand.u32 %v4115, 4294901760
    %v4117 = vsub.f32 %v4115, %v4116
    %v4118 = vand.u32 %v4117, 4294901760
    %4119 = vmatmul.mubr.f32.gmra.mrb[0].mxu0 %v4118
    %v4120 = vpop.f32.mrb[0].mxu0
    %v4121 = vadd.f32 %v4022, %v4120
    %v4122 = vpop.f32.mrb[0].mxu0
    %4123 = vmatprep.mubr.f32.mxu0 0.0
    %v4124 = vand.u32 %v3997, 4294901760
    %v4125 = vsub.f32 %v3997, %v4124
    %v4126 = vand.u32 %v4125, 4294901760
    %v4127 = vsub.f32 %v4125, %v4126
    %v4128 = vand.u32 %v4127, 4294901760
    %4129 = vmatmul.mubr.f32.gmra.mrb[0].mxu0 %v4128
    %v4130 = vpop.f32.mrb[0].mxu0
    %v4131 = vadd.f32 %v4022, %v4130
    %v4132 = vpop.f32.mrb[0].mxu0
    %4133 = vmatprep.mubr.f32.mxu0 0.0
    %v4134 = vand.u32 %v3998, 4294901760
    %v4135 = vsub.f32 %v3998, %v4134
    %v4136 = vand.u32 %v4135, 4294901760
    %v4137 = vsub.f32 %v4135, %v4136
    %v4138 = vand.u32 %v4137, 4294901760
    %4139 = vmatmul.mubr.f32.gmra.mrb[0].mxu0 %v4138
    %v4140 = vpop.f32.mrb[0].mxu0
    %v4141 = vadd.f32 %v4022, %v4140
    %v4142 = vpop.f32.mrb[0].mxu0
    %4143 = vmatprep.mubr.f32.mxu0 0.0
    %v4144 = vand.u32 %v3999, 4294901760
    %v4145 = vsub.f32 %v3999, %v4144
    %v4146 = vand.u32 %v4145, 4294901760
    %v4147 = vsub.f32 %v4145, %v4146
    %v4148 = vand.u32 %v4147, 4294901760
    %4149 = vmatmul.mubr.f32.gmra.mrb[0].mxu0 %v4148
    %v4150 = vpop.f32.mrb[0].mxu0
    %v4151 = vadd.f32 %v4022, %v4150
    %v4152 = vpop.f32.mrb[0].mxu0
    %4153 = vmatprep.mubr.f32.mxu0 0.0
    %v4154 = vand.u32 %v4000, 4294901760
    %v4155 = vsub.f32 %v4000, %v4154
    %v4156 = vand.u32 %v4155, 4294901760
    %v4157 = vsub.f32 %v4155, %v4156
    %v4158 = vand.u32 %v4157, 4294901760
    %4159 = vmatmul.mubr.f32.gmra.mrb[0].mxu0 %v4158
    %v4160 = vpop.f32.mrb[0].mxu0
    %v4161 = vadd.f32 %v4022, %v4160
    %v4162 = vpop.f32.mrb[0].mxu0
    %4163 = vmatprep.mubr.f32.mxu0 0.0
    %v4164 = vand.u32 %v4001, 4294901760
    %v4165 = vsub.f32 %v4001, %v4164
    %v4166 = vand.u32 %v4165, 4294901760
    %v4167 = vsub.f32 %v4165, %v4166
    %v4168 = vand.u32 %v4167, 4294901760
    %4169 = vmatmul.mubr.f32.gmra.mrb[0].mxu0 %v4168
    %v4170 = vpop.f32.mrb[0].mxu0
    %v4171 = vadd.f32 %v4022, %v4170
    %v4172 = vpop.f32.mrb[0].mxu0
    %4173 = vmatprep.mubr.f32.mxu0 0.0
    %v4174 = vand.u32 %v4002, 4294901760
    %v4175 = vsub.f32 %v4002, %v4174
    %v4176 = vand.u32 %v4175, 4294901760
    %v4177 = vsub.f32 %v4175, %v4176
    %v4178 = vand.u32 %v4177, 4294901760
    %4179 = vmatmul.mubr.f32.gmra.mrb[0].mxu0 %v4178
    %v4180 = vpop.f32.mrb[0].mxu0
    %v4181 = vadd.f32 %v4022, %v4180
    %v4182 = vpop.f32.mrb[0].mxu0
    %4183 = vdwg.mxu0
    %4184 = vmatprep.subr.mxu0 0.0
    %v4185 = vand.u32 %v4003, 4294901760
    %v4186 = vsub.f32 %v4003, %v4185
    %v4187 = vand.u32 %v4186, 4294901760
    %v4188 = vsub.f32 %v4186, %v4187
    %v4189 = vand.u32 %v4188, 4294901760
    %4190 = vmatpush1.msra.mxu0 %v4189
    %4191 = vmatprep.subr.mxu0 0.0
    %v4192 = vand.u32 %v4004, 4294901760
    %v4193 = vsub.f32 %v4004, %v4192
    %v4194 = vand.u32 %v4193, 4294901760
    %v4195 = vsub.f32 %v4193, %v4194
    %v4196 = vand.u32 %v4195, 4294901760
    %4197 = vmatpush1.msra.mxu0 %v4196
    %4198 = vmatprep.subr.mxu0 0.0
    %v4199 = vand.u32 %v4005, 4294901760
    %v4200 = vsub.f32 %v4005, %v4199
    %v4201 = vand.u32 %v4200, 4294901760
    %v4202 = vsub.f32 %v4200, %v4201
    %v4203 = vand.u32 %v4202, 4294901760
    %4204 = vmatpush1.msra.mxu0 %v4203
    %4205 = vmatprep.subr.mxu0 0.0
    %v4206 = vand.u32 %v4006, 4294901760
    %v4207 = vsub.f32 %v4006, %v4206
    %v4208 = vand.u32 %v4207, 4294901760
    %v4209 = vsub.f32 %v4207, %v4208
    %v4210 = vand.u32 %v4209, 4294901760
    %4211 = vmatpush1.msra.mxu0 %v4210
    %4212 = vmatprep.subr.mxu0 0.0
    %v4213 = vand.u32 %v4007, 4294901760
    %v4214 = vsub.f32 %v4007, %v4213
    %v4215 = vand.u32 %v4214, 4294901760
    %v4216 = vsub.f32 %v4214, %v4215
    %v4217 = vand.u32 %v4216, 4294901760
    %4218 = vmatpush1.msra.mxu0 %v4217
    %4219 = vmatprep.subr.mxu0 0.0
    %v4220 = vand.u32 %v4008, 4294901760
    %v4221 = vsub.f32 %v4008, %v4220
    %v4222 = vand.u32 %v4221, 4294901760
    %v4223 = vsub.f32 %v4221, %v4222
    %v4224 = vand.u32 %v4223, 4294901760
    %4225 = vmatpush1.msra.mxu0 %v4224
    %4226 = vmatprep.subr.mxu0 0.0
    %v4227 = vand.u32 %v4009, 4294901760
    %v4228 = vsub.f32 %v4009, %v4227
    %v4229 = vand.u32 %v4228, 4294901760
    %v4230 = vsub.f32 %v4228, %v4229
    %v4231 = vand.u32 %v4230, 4294901760
    %4232 = vmatpush1.msra.mxu0 %v4231
    %4233 = vmatprep.subr.mxu0 0.0
    %v4234 = vand.u32 %v4010, 4294901760
    %v4235 = vsub.f32 %v4010, %v4234
    %v4236 = vand.u32 %v4235, 4294901760
    %v4237 = vsub.f32 %v4235, %v4236
    %v4238 = vand.u32 %v4237, 4294901760
    %4239 = vmatpush1.msra.mxu0 %v4238
    %4240 = vmatprep.subr.mxu0 0.0
    %v4241 = vand.u32 %v4011, 4294901760
    %v4242 = vsub.f32 %v4011, %v4241
    %v4243 = vand.u32 %v4242, 4294901760
    %v4244 = vsub.f32 %v4242, %v4243
    %v4245 = vand.u32 %v4244, 4294901760
    %4246 = vmatpush1.msra.mxu0 %v4245
    %4247 = vmatprep.subr.mxu0 0.0
    %v4248 = vand.u32 %v4012, 4294901760
    %v4249 = vsub.f32 %v4012, %v4248
    %v4250 = vand.u32 %v4249, 4294901760
    %v4251 = vsub.f32 %v4249, %v4250
    %v4252 = vand.u32 %v4251, 4294901760
    %4253 = vmatpush1.msra.mxu0 %v4252
    %4254 = vmatprep.subr.mxu0 0.0
    %v4255 = vand.u32 %v4013, 4294901760
    %v4256 = vsub.f32 %v4013, %v4255
    %v4257 = vand.u32 %v4256, 4294901760
    %v4258 = vsub.f32 %v4256, %v4257
    %v4259 = vand.u32 %v4258, 4294901760
    %4260 = vmatpush1.msra.mxu0 %v4259
    %4261 = vmatprep.subr.mxu0 0.0
    %v4262 = vand.u32 %v4014, 4294901760
    %v4263 = vsub.f32 %v4014, %v4262
    %v4264 = vand.u32 %v4263, 4294901760
    %v4265 = vsub.f32 %v4263, %v4264
    %v4266 = vand.u32 %v4265, 4294901760
    %4267 = vmatpush1.msra.mxu0 %v4266
    %4268 = vmatprep.subr.mxu0 0.0
    %v4269 = vand.u32 %v4015, 4294901760
    %v4270 = vsub.f32 %v4015, %v4269
    %v4271 = vand.u32 %v4270, 4294901760
    %v4272 = vsub.f32 %v4270, %v4271
    %v4273 = vand.u32 %v4272, 4294901760
    %4274 = vmatpush1.msra.mxu0 %v4273
    %4275 = vmatprep.subr.mxu0 0.0
    %v4276 = vand.u32 %v4016, 4294901760
    %v4277 = vsub.f32 %v4016, %v4276
    %v4278 = vand.u32 %v4277, 4294901760
    %v4279 = vsub.f32 %v4277, %v4278
    %v4280 = vand.u32 %v4279, 4294901760
    %4281 = vmatpush1.msra.mxu0 %v4280
    %4282 = vmatprep.subr.mxu0 0.0
    %v4283 = vand.u32 %v4017, 4294901760
    %v4284 = vsub.f32 %v4017, %v4283
    %v4285 = vand.u32 %v4284, 4294901760
    %v4286 = vsub.f32 %v4284, %v4285
    %v4287 = vand.u32 %v4286, 4294901760
    %4288 = vmatpush1.msra.mxu0 %v4287
    %4289 = vmatprep.subr.mxu0 0.0
    %v4290 = vand.u32 %v4018, 4294901760
    %v4291 = vsub.f32 %v4018, %v4290
    %v4292 = vand.u32 %v4291, 4294901760
    %v4293 = vsub.f32 %v4291, %v4292
    %v4294 = vand.u32 %v4293, 4294901760
    %4295 = vmatpush1.msra.mxu0 %v4294
    %4296 = vmatprep.subr.mxu0 0.0
    %4297 = vmatpush1.msra.mxu0 0.0
    %4298 = vmatprep.subr.mxu0 0.0
    %4299 = vmatpush1.msra.mxu0 0.0
    %4300 = vmatprep.subr.mxu0 0.0
    %4301 = vmatpush1.msra.mxu0 0.0
    %4302 = vmatprep.subr.mxu0 0.0
    %4303 = vmatpush1.msra.mxu0 0.0
    %4304 = vmatprep.subr.mxu0 0.0
    %4305 = vmatpush1.msra.mxu0 0.0
    %4306 = vmatprep.subr.mxu0 0.0
    %4307 = vmatpush1.msra.mxu0 0.0
    %4308 = vmatprep.subr.mxu0 0.0
    %4309 = vmatpush1.msra.mxu0 0.0
    %4310 = vmatprep.subr.mxu0 0.0
    %4311 = vmatpush1.msra.mxu0 0.0
    %4312 = vmatprep.subr.mxu0 0.0
    %4313 = vmatpush1.msra.mxu0 0.0
    %4314 = vmatprep.subr.mxu0 0.0
    %4315 = vmatpush1.msra.mxu0 0.0
    %4316 = vmatprep.subr.mxu0 0.0
    %4317 = vmatpush1.msra.mxu0 0.0
    %4318 = vmatprep.subr.mxu0 0.0
    %4319 = vmatpush1.msra.mxu0 0.0
    %4320 = vmatprep.subr.mxu0 0.0
    %4321 = vmatpush1.msra.mxu0 0.0
    %4322 = vmatprep.subr.mxu0 0.0
    %4323 = vmatpush1.msra.mxu0 0.0
    %4324 = vmatprep.subr.mxu0 0.0
    %4325 = vmatpush1.msra.mxu0 0.0
    %4326 = vmatprep.subr.mxu0 0.0
    %4327 = vmatpush1.msra.mxu0 0.0
    %4328 = vmatprep.mubr.f32.mxu0 0.0
    %v4329 = vand.u32 %v3995, 4294901760
    %4330 = vmatmul.mubr.f32.gmra.mrb[0].mxu0 %v4329
    %v4331 = vpop.f32.mrb[0].mxu0
    %v4332 = vadd.f32 %v4111, %v4331
    %v4333 = vpop.f32.mrb[0].mxu0
    %4334 = vmatprep.mubr.f32.mxu0 0.0
    %v4335 = vand.u32 %v3996, 4294901760
    %4336 = vmatmul.mubr.f32.gmra.mrb[0].mxu0 %v4335
    %v4337 = vpop.f32.mrb[0].mxu0
    %v4338 = vadd.f32 %v4121, %v4337
    %v4339 = vpop.f32.mrb[0].mxu0
    %4340 = vmatprep.mubr.f32.mxu0 0.0
    %v4341 = vand.u32 %v3997, 4294901760
    %4342 = vmatmul.mubr.f32.gmra.mrb[0].mxu0 %v4341
    %v4343 = vpop.f32.mrb[0].mxu0
    %v4344 = vadd.f32 %v4131, %v4343
    %v4345 = vpop.f32.mrb[0].mxu0
    %4346 = vmatprep.mubr.f32.mxu0 0.0
    %v4347 = vand.u32 %v3998, 4294901760
    %4348 = vmatmul.mubr.f32.gmra.mrb[0].mxu0 %v4347
    %v4349 = vpop.f32.mrb[0].mxu0
    %v4350 = vadd.f32 %v4141, %v4349
    %v4351 = vpop.f32.mrb[0].mxu0
    %4352 = vmatprep.mubr.f32.mxu0 0.0
    %v4353 = vand.u32 %v3999, 4294901760
    %4354 = vmatmul.mubr.f32.gmra.mrb[0].mxu0 %v4353
    %v4355 = vpop.f32.mrb[0].mxu0
    %v4356 = vadd.f32 %v4151, %v4355
    %v4357 = vpop.f32.mrb[0].mxu0
    %4358 = vmatprep.mubr.f32.mxu0 0.0
    %v4359 = vand.u32 %v4000, 4294901760
    %4360 = vmatmul.mubr.f32.gmra.mrb[0].mxu0 %v4359
    %v4361 = vpop.f32.mrb[0].mxu0
    %v4362 = vadd.f32 %v4161, %v4361
    %v4363 = vpop.f32.mrb[0].mxu0
    %4364 = vmatprep.mubr.f32.mxu0 0.0
    %v4365 = vand.u32 %v4001, 4294901760
    %4366 = vmatmul.mubr.f32.gmra.mrb[0].mxu0 %v4365
    %v4367 = vpop.f32.mrb[0].mxu0
    %v4368 = vadd.f32 %v4171, %v4367
    %v4369 = vpop.f32.mrb[0].mxu0
    %4370 = vmatprep.mubr.f32.mxu0 0.0
    %v4371 = vand.u32 %v4002, 4294901760
    %4372 = vmatmul.mubr.f32.gmra.mrb[0].mxu0 %v4371
    %v4373 = vpop.f32.mrb[0].mxu0
    %v4374 = vadd.f32 %v4181, %v4373
    %v4375 = vpop.f32.mrb[0].mxu0
    %4376 = vdwg.mxu0
    %4377 = vmatprep.subr.mxu0 0.0
    %v4378 = vand.u32 %v4003, 4294901760
    %v4379 = vsub.f32 %v4003, %v4378
    %4380 = vmatpush1.msra.mxu0 %v4379
    %4381 = vmatprep.subr.mxu0 0.0
    %v4382 = vand.u32 %v4004, 4294901760
    %v4383 = vsub.f32 %v4004, %v4382
    %4384 = vmatpush1.msra.mxu0 %v4383
    %4385 = vmatprep.subr.mxu0 0.0
    %v4386 = vand.u32 %v4005, 4294901760
    %v4387 = vsub.f32 %v4005, %v4386
    %4388 = vmatpush1.msra.mxu0 %v4387
    %4389 = vmatprep.subr.mxu0 0.0
    %v4390 = vand.u32 %v4006, 4294901760
    %v4391 = vsub.f32 %v4006, %v4390
    %4392 = vmatpush1.msra.mxu0 %v4391
    %4393 = vmatprep.subr.mxu0 0.0
    %v4394 = vand.u32 %v4007, 4294901760
    %v4395 = vsub.f32 %v4007, %v4394
    %4396 = vmatpush1.msra.mxu0 %v4395
    %4397 = vmatprep.subr.mxu0 0.0
    %v4398 = vand.u32 %v4008, 4294901760
    %v4399 = vsub.f32 %v4008, %v4398
    %4400 = vmatpush1.msra.mxu0 %v4399
    %4401 = vmatprep.subr.mxu0 0.0
    %v4402 = vand.u32 %v4009, 4294901760
    %v4403 = vsub.f32 %v4009, %v4402
    %4404 = vmatpush1.msra.mxu0 %v4403
    %4405 = vmatprep.subr.mxu0 0.0
    %v4406 = vand.u32 %v4010, 4294901760
    %v4407 = vsub.f32 %v4010, %v4406
    %4408 = vmatpush1.msra.mxu0 %v4407
    %4409 = vmatprep.subr.mxu0 0.0
    %v4410 = vand.u32 %v4011, 4294901760
    %v4411 = vsub.f32 %v4011, %v4410
    %4412 = vmatpush1.msra.mxu0 %v4411
    %4413 = vmatprep.subr.mxu0 0.0
    %v4414 = vand.u32 %v4012, 4294901760
    %v4415 = vsub.f32 %v4012, %v4414
    %4416 = vmatpush1.msra.mxu0 %v4415
    %4417 = vmatprep.subr.mxu0 0.0
    %v4418 = vand.u32 %v4013, 4294901760
    %v4419 = vsub.f32 %v4013, %v4418
    %4420 = vmatpush1.msra.mxu0 %v4419
    %4421 = vmatprep.subr.mxu0 0.0
    %v4422 = vand.u32 %v4014, 4294901760
    %v4423 = vsub.f32 %v4014, %v4422
    %4424 = vmatpush1.msra.mxu0 %v4423
    %4425 = vmatprep.subr.mxu0 0.0
    %v4426 = vand.u32 %v4015, 4294901760
    %v4427 = vsub.f32 %v4015, %v4426
    %4428 = vmatpush1.msra.mxu0 %v4427
    %4429 = vmatprep.subr.mxu0 0.0
    %v4430 = vand.u32 %v4016, 4294901760
    %v4431 = vsub.f32 %v4016, %v4430
    %4432 = vmatpush1.msra.mxu0 %v4431
    %4433 = vmatprep.subr.mxu0 0.0
    %v4434 = vand.u32 %v4017, 4294901760
    %v4435 = vsub.f32 %v4017, %v4434
    %4436 = vmatpush1.msra.mxu0 %v4435
    %4437 = vmatprep.subr.mxu0 0.0
    %v4438 = vand.u32 %v4018, 4294901760
    %v4439 = vsub.f32 %v4018, %v4438
    %4440 = vmatpush1.msra.mxu0 %v4439
    %4441 = vmatprep.subr.mxu0 0.0
    %4442 = vmatpush1.msra.mxu0 0.0
    %4443 = vmatprep.subr.mxu0 0.0
    %4444 = vmatpush1.msra.mxu0 0.0
    %4445 = vmatprep.subr.mxu0 0.0
    %4446 = vmatpush1.msra.mxu0 0.0
    %4447 = vmatprep.subr.mxu0 0.0
    %4448 = vmatpush1.msra.mxu0 0.0
    %4449 = vmatprep.subr.mxu0 0.0
    %4450 = vmatpush1.msra.mxu0 0.0
    %4451 = vmatprep.subr.mxu0 0.0
    %4452 = vmatpush1.msra.mxu0 0.0
    %4453 = vmatprep.subr.mxu0 0.0
    %4454 = vmatpush1.msra.mxu0 0.0
    %4455 = vmatprep.subr.mxu0 0.0
    %4456 = vmatpush1.msra.mxu0 0.0
    %4457 = vmatprep.subr.mxu0 0.0
    %4458 = vmatpush1.msra.mxu0 0.0
    %4459 = vmatprep.subr.mxu0 0.0
    %4460 = vmatpush1.msra.mxu0 0.0
    %4461 = vmatprep.subr.mxu0 0.0
    %4462 = vmatpush1.msra.mxu0 0.0
    %4463 = vmatprep.subr.mxu0 0.0
    %4464 = vmatpush1.msra.mxu0 0.0
    %4465 = vmatprep.subr.mxu0 0.0
    %4466 = vmatpush1.msra.mxu0 0.0
    %4467 = vmatprep.subr.mxu0 0.0
    %4468 = vmatpush1.msra.mxu0 0.0
    %4469 = vmatprep.subr.mxu0 0.0
    %4470 = vmatpush1.msra.mxu0 0.0
    %4471 = vmatprep.subr.mxu0 0.0
    %4472 = vmatpush1.msra.mxu0 0.0
    %4473 = vmatprep.mubr.f32.mxu0 0.0
    %v4474 = vand.u32 %v3995, 4294901760
    %v4475 = vsub.f32 %v3995, %v4474
    %4476 = vmatmul.mubr.f32.gmra.mrb[0].mxu0 %v4475
    %v4477 = vpop.f32.mrb[0].mxu0
    %v4478 = vadd.f32 %v4332, %v4477
    %v4479 = vpop.f32.mrb[0].mxu0
    %4480 = vmatprep.mubr.f32.mxu0 0.0
    %v4481 = vand.u32 %v3996, 4294901760
    %v4482 = vsub.f32 %v3996, %v4481
    %4483 = vmatmul.mubr.f32.gmra.mrb[0].mxu0 %v4482
    %v4484 = vpop.f32.mrb[0].mxu0
    %v4485 = vadd.f32 %v4338, %v4484
    %v4486 = vpop.f32.mrb[0].mxu0
    %4487 = vmatprep.mubr.f32.mxu0 0.0
    %v4488 = vand.u32 %v3997, 4294901760
    %v4489 = vsub.f32 %v3997, %v4488
    %4490 = vmatmul.mubr.f32.gmra.mrb[0].mxu0 %v4489
    %v4491 = vpop.f32.mrb[0].mxu0
    %v4492 = vadd.f32 %v4344, %v4491
    %v4493 = vpop.f32.mrb[0].mxu0
    %4494 = vmatprep.mubr.f32.mxu0 0.0
    %v4495 = vand.u32 %v3998, 4294901760
    %v4496 = vsub.f32 %v3998, %v4495
    %4497 = vmatmul.mubr.f32.gmra.mrb[0].mxu0 %v4496
    %v4498 = vpop.f32.mrb[0].mxu0
    %v4499 = vadd.f32 %v4350, %v4498
    %v4500 = vpop.f32.mrb[0].mxu0
    %4501 = vmatprep.mubr.f32.mxu0 0.0
    %v4502 = vand.u32 %v3999, 4294901760
    %v4503 = vsub.f32 %v3999, %v4502
    %4504 = vmatmul.mubr.f32.gmra.mrb[0].mxu0 %v4503
    %v4505 = vpop.f32.mrb[0].mxu0
    %v4506 = vadd.f32 %v4356, %v4505
    %v4507 = vpop.f32.mrb[0].mxu0
    %4508 = vmatprep.mubr.f32.mxu0 0.0
    %v4509 = vand.u32 %v4000, 4294901760
    %v4510 = vsub.f32 %v4000, %v4509
    %4511 = vmatmul.mubr.f32.gmra.mrb[0].mxu0 %v4510
    %v4512 = vpop.f32.mrb[0].mxu0
    %v4513 = vadd.f32 %v4362, %v4512
    %v4514 = vpop.f32.mrb[0].mxu0
    %4515 = vmatprep.mubr.f32.mxu0 0.0
    %v4516 = vand.u32 %v4001, 4294901760
    %v4517 = vsub.f32 %v4001, %v4516
    %4518 = vmatmul.mubr.f32.gmra.mrb[0].mxu0 %v4517
    %v4519 = vpop.f32.mrb[0].mxu0
    %v4520 = vadd.f32 %v4368, %v4519
    %v4521 = vpop.f32.mrb[0].mxu0
    %4522 = vmatprep.mubr.f32.mxu0 0.0
    %v4523 = vand.u32 %v4002, 4294901760
    %v4524 = vsub.f32 %v4002, %v4523
    %4525 = vmatmul.mubr.f32.gmra.mrb[0].mxu0 %v4524
    %v4526 = vpop.f32.mrb[0].mxu0
    %v4527 = vadd.f32 %v4374, %v4526
    %v4528 = vpop.f32.mrb[0].mxu0
    %4529 = vdwg.mxu0
    %4530 = vmatprep.subr.mxu0 0.0
    %v4531 = vand.u32 %v4003, 4294901760
    %4532 = vmatpush1.msra.mxu0 %v4531
    %4533 = vmatprep.subr.mxu0 0.0
    %v4534 = vand.u32 %v4004, 4294901760
    %4535 = vmatpush1.msra.mxu0 %v4534
    %4536 = vmatprep.subr.mxu0 0.0
    %v4537 = vand.u32 %v4005, 4294901760
    %4538 = vmatpush1.msra.mxu0 %v4537
    %4539 = vmatprep.subr.mxu0 0.0
    %v4540 = vand.u32 %v4006, 4294901760
    %4541 = vmatpush1.msra.mxu0 %v4540
    %4542 = vmatprep.subr.mxu0 0.0
    %v4543 = vand.u32 %v4007, 4294901760
    %4544 = vmatpush1.msra.mxu0 %v4543
    %4545 = vmatprep.subr.mxu0 0.0
    %v4546 = vand.u32 %v4008, 4294901760
    %4547 = vmatpush1.msra.mxu0 %v4546
    %4548 = vmatprep.subr.mxu0 0.0
    %v4549 = vand.u32 %v4009, 4294901760
    %4550 = vmatpush1.msra.mxu0 %v4549
    %4551 = vmatprep.subr.mxu0 0.0
    %v4552 = vand.u32 %v4010, 4294901760
    %4553 = vmatpush1.msra.mxu0 %v4552
    %4554 = vmatprep.subr.mxu0 0.0
    %v4555 = vand.u32 %v4011, 4294901760
    %4556 = vmatpush1.msra.mxu0 %v4555
    %4557 = vmatprep.subr.mxu0 0.0
    %v4558 = vand.u32 %v4012, 4294901760
    %4559 = vmatpush1.msra.mxu0 %v4558
    %4560 = vmatprep.subr.mxu0 0.0
    %v4561 = vand.u32 %v4013, 4294901760
    %4562 = vmatpush1.msra.mxu0 %v4561
    %4563 = vmatprep.subr.mxu0 0.0
    %v4564 = vand.u32 %v4014, 4294901760
    %4565 = vmatpush1.msra.mxu0 %v4564
    %4566 = vmatprep.subr.mxu0 0.0
    %v4567 = vand.u32 %v4015, 4294901760
    %4568 = vmatpush1.msra.mxu0 %v4567
    %4569 = vmatprep.subr.mxu0 0.0
    %v4570 = vand.u32 %v4016, 4294901760
    %4571 = vmatpush1.msra.mxu0 %v4570
    %4572 = vmatprep.subr.mxu0 0.0
    %v4573 = vand.u32 %v4017, 4294901760
    %4574 = vmatpush1.msra.mxu0 %v4573
    %4575 = vmatprep.subr.mxu0 0.0
    %v4576 = vand.u32 %v4018, 4294901760
    %4577 = vmatpush1.msra.mxu0 %v4576
    %4578 = vmatprep.subr.mxu0 0.0
    %4579 = vmatpush1.msra.mxu0 0.0
    %4580 = vmatprep.subr.mxu0 0.0
    %4581 = vmatpush1.msra.mxu0 0.0
    %4582 = vmatprep.subr.mxu0 0.0
    %4583 = vmatpush1.msra.mxu0 0.0
    %4584 = vmatprep.subr.mxu0 0.0
    %4585 = vmatpush1.msra.mxu0 0.0
    %4586 = vmatprep.subr.mxu0 0.0
    %4587 = vmatpush1.msra.mxu0 0.0
    %4588 = vmatprep.subr.mxu0 0.0
    %4589 = vmatpush1.msra.mxu0 0.0
    %4590 = vmatprep.subr.mxu0 0.0
    %4591 = vmatpush1.msra.mxu0 0.0
    %4592 = vmatprep.subr.mxu0 0.0
    %4593 = vmatpush1.msra.mxu0 0.0
    %4594 = vmatprep.subr.mxu0 0.0
    %4595 = vmatpush1.msra.mxu0 0.0
    %4596 = vmatprep.subr.mxu0 0.0
    %4597 = vmatpush1.msra.mxu0 0.0
    %4598 = vmatprep.subr.mxu0 0.0
    %4599 = vmatpush1.msra.mxu0 0.0
    %4600 = vmatprep.subr.mxu0 0.0
    %4601 = vmatpush1.msra.mxu0 0.0
    %4602 = vmatprep.subr.mxu0 0.0
    %4603 = vmatpush1.msra.mxu0 0.0
    %4604 = vmatprep.subr.mxu0 0.0
    %4605 = vmatpush1.msra.mxu0 0.0
    %4606 = vmatprep.subr.mxu0 0.0
    %4607 = vmatpush1.msra.mxu0 0.0
    %4608 = vmatprep.subr.mxu0 0.0
    %4609 = vmatpush1.msra.mxu0 0.0
    %4610 = vmatprep.mubr.f32.mxu0 0.0
    %v4611 = vand.u32 %v3995, 4294901760
    %v4612 = vsub.f32 %v3995, %v4611
    %v4613 = vand.u32 %v4612, 4294901760
    %4614 = vmatmul.mubr.f32.gmra.mrb[0].mxu0 %v4613
    %v4615 = vpop.f32.mrb[0].mxu0
    %v4616 = vadd.f32 %v4478, %v4615
    %v4617 = vpop.f32.mrb[0].mxu0
    %4618 = vmatprep.mubr.f32.mxu0 0.0
    %v4619 = vand.u32 %v3996, 4294901760
    %v4620 = vsub.f32 %v3996, %v4619
    %v4621 = vand.u32 %v4620, 4294901760
    %4622 = vmatmul.mubr.f32.gmra.mrb[0].mxu0 %v4621
    %v4623 = vpop.f32.mrb[0].mxu0
    %v4624 = vadd.f32 %v4485, %v4623
    %v4625 = vpop.f32.mrb[0].mxu0
    %4626 = vmatprep.mubr.f32.mxu0 0.0
    %v4627 = vand.u32 %v3997, 4294901760
    %v4628 = vsub.f32 %v3997, %v4627
    %v4629 = vand.u32 %v4628, 4294901760
    %4630 = vmatmul.mubr.f32.gmra.mrb[0].mxu0 %v4629
    %v4631 = vpop.f32.mrb[0].mxu0
    %v4632 = vadd.f32 %v4492, %v4631
    %v4633 = vpop.f32.mrb[0].mxu0
    %4634 = vmatprep.mubr.f32.mxu0 0.0
    %v4635 = vand.u32 %v3998, 4294901760
    %v4636 = vsub.f32 %v3998, %v4635
    %v4637 = vand.u32 %v4636, 4294901760
    %4638 = vmatmul.mubr.f32.gmra.mrb[0].mxu0 %v4637
    %v4639 = vpop.f32.mrb[0].mxu0
    %v4640 = vadd.f32 %v4499, %v4639
    %v4641 = vpop.f32.mrb[0].mxu0
    %4642 = vmatprep.mubr.f32.mxu0 0.0
    %v4643 = vand.u32 %v3999, 4294901760
    %v4644 = vsub.f32 %v3999, %v4643
    %v4645 = vand.u32 %v4644, 4294901760
    %4646 = vmatmul.mubr.f32.gmra.mrb[0].mxu0 %v4645
    %v4647 = vpop.f32.mrb[0].mxu0
    %v4648 = vadd.f32 %v4506, %v4647
    %v4649 = vpop.f32.mrb[0].mxu0
    %4650 = vmatprep.mubr.f32.mxu0 0.0
    %v4651 = vand.u32 %v4000, 4294901760
    %v4652 = vsub.f32 %v4000, %v4651
    %v4653 = vand.u32 %v4652, 4294901760
    %4654 = vmatmul.mubr.f32.gmra.mrb[0].mxu0 %v4653
    %v4655 = vpop.f32.mrb[0].mxu0
    %v4656 = vadd.f32 %v4513, %v4655
    %v4657 = vpop.f32.mrb[0].mxu0
    %4658 = vmatprep.mubr.f32.mxu0 0.0
    %v4659 = vand.u32 %v4001, 4294901760
    %v4660 = vsub.f32 %v4001, %v4659
    %v4661 = vand.u32 %v4660, 4294901760
    %4662 = vmatmul.mubr.f32.gmra.mrb[0].mxu0 %v4661
    %v4663 = vpop.f32.mrb[0].mxu0
    %v4664 = vadd.f32 %v4520, %v4663
    %v4665 = vpop.f32.mrb[0].mxu0
    %4666 = vmatprep.mubr.f32.mxu0 0.0
    %v4667 = vand.u32 %v4002, 4294901760
    %v4668 = vsub.f32 %v4002, %v4667
    %v4669 = vand.u32 %v4668, 4294901760
    %4670 = vmatmul.mubr.f32.gmra.mrb[0].mxu0 %v4669
    %v4671 = vpop.f32.mrb[0].mxu0
    %v4672 = vadd.f32 %v4527, %v4671
    %v4673 = vpop.f32.mrb[0].mxu0
    %4674 = vdwg.mxu0
    %4675 = vmatprep.subr.mxu0 0.0
    %v4676 = vand.u32 %v4003, 4294901760
    %v4677 = vsub.f32 %v4003, %v4676
    %v4678 = vand.u32 %v4677, 4294901760
    %4679 = vmatpush1.msra.mxu0 %v4678
    %4680 = vmatprep.subr.mxu0 0.0
    %v4681 = vand.u32 %v4004, 4294901760
    %v4682 = vsub.f32 %v4004, %v4681
    %v4683 = vand.u32 %v4682, 4294901760
    %4684 = vmatpush1.msra.mxu0 %v4683
    %4685 = vmatprep.subr.mxu0 0.0
    %v4686 = vand.u32 %v4005, 4294901760
    %v4687 = vsub.f32 %v4005, %v4686
    %v4688 = vand.u32 %v4687, 4294901760
    %4689 = vmatpush1.msra.mxu0 %v4688
    %4690 = vmatprep.subr.mxu0 0.0
    %v4691 = vand.u32 %v4006, 4294901760
    %v4692 = vsub.f32 %v4006, %v4691
    %v4693 = vand.u32 %v4692, 4294901760
    %4694 = vmatpush1.msra.mxu0 %v4693
    %4695 = vmatprep.subr.mxu0 0.0
    %v4696 = vand.u32 %v4007, 4294901760
    %v4697 = vsub.f32 %v4007, %v4696
    %v4698 = vand.u32 %v4697, 4294901760
    %4699 = vmatpush1.msra.mxu0 %v4698
    %4700 = vmatprep.subr.mxu0 0.0
    %v4701 = vand.u32 %v4008, 4294901760
    %v4702 = vsub.f32 %v4008, %v4701
    %v4703 = vand.u32 %v4702, 4294901760
    %4704 = vmatpush1.msra.mxu0 %v4703
    %4705 = vmatprep.subr.mxu0 0.0
    %v4706 = vand.u32 %v4009, 4294901760
    %v4707 = vsub.f32 %v4009, %v4706
    %v4708 = vand.u32 %v4707, 4294901760
    %4709 = vmatpush1.msra.mxu0 %v4708
    %4710 = vmatprep.subr.mxu0 0.0
    %v4711 = vand.u32 %v4010, 4294901760
    %v4712 = vsub.f32 %v4010, %v4711
    %v4713 = vand.u32 %v4712, 4294901760
    %4714 = vmatpush1.msra.mxu0 %v4713
    %4715 = vmatprep.subr.mxu0 0.0
    %v4716 = vand.u32 %v4011, 4294901760
    %v4717 = vsub.f32 %v4011, %v4716
    %v4718 = vand.u32 %v4717, 4294901760
    %4719 = vmatpush1.msra.mxu0 %v4718
    %4720 = vmatprep.subr.mxu0 0.0
    %v4721 = vand.u32 %v4012, 4294901760
    %v4722 = vsub.f32 %v4012, %v4721
    %v4723 = vand.u32 %v4722, 4294901760
    %4724 = vmatpush1.msra.mxu0 %v4723
    %4725 = vmatprep.subr.mxu0 0.0
    %v4726 = vand.u32 %v4013, 4294901760
    %v4727 = vsub.f32 %v4013, %v4726
    %v4728 = vand.u32 %v4727, 4294901760
    %4729 = vmatpush1.msra.mxu0 %v4728
    %4730 = vmatprep.subr.mxu0 0.0
    %v4731 = vand.u32 %v4014, 4294901760
    %v4732 = vsub.f32 %v4014, %v4731
    %v4733 = vand.u32 %v4732, 4294901760
    %4734 = vmatpush1.msra.mxu0 %v4733
    %4735 = vmatprep.subr.mxu0 0.0
    %v4736 = vand.u32 %v4015, 4294901760
    %v4737 = vsub.f32 %v4015, %v4736
    %v4738 = vand.u32 %v4737, 4294901760
    %4739 = vmatpush1.msra.mxu0 %v4738
    %4740 = vmatprep.subr.mxu0 0.0
    %v4741 = vand.u32 %v4016, 4294901760
    %v4742 = vsub.f32 %v4016, %v4741
    %v4743 = vand.u32 %v4742, 4294901760
    %4744 = vmatpush1.msra.mxu0 %v4743
    %4745 = vmatprep.subr.mxu0 0.0
    %v4746 = vand.u32 %v4017, 4294901760
    %v4747 = vsub.f32 %v4017, %v4746
    %v4748 = vand.u32 %v4747, 4294901760
    %4749 = vmatpush1.msra.mxu0 %v4748
    %4750 = vmatprep.subr.mxu0 0.0
    %v4751 = vand.u32 %v4018, 4294901760
    %v4752 = vsub.f32 %v4018, %v4751
    %v4753 = vand.u32 %v4752, 4294901760
    %4754 = vmatpush1.msra.mxu0 %v4753
    %4755 = vmatprep.subr.mxu0 0.0
    %4756 = vmatpush1.msra.mxu0 0.0
    %4757 = vmatprep.subr.mxu0 0.0
    %4758 = vmatpush1.msra.mxu0 0.0
    %4759 = vmatprep.subr.mxu0 0.0
    %4760 = vmatpush1.msra.mxu0 0.0
    %4761 = vmatprep.subr.mxu0 0.0
    %4762 = vmatpush1.msra.mxu0 0.0
    %4763 = vmatprep.subr.mxu0 0.0
    %4764 = vmatpush1.msra.mxu0 0.0
    %4765 = vmatprep.subr.mxu0 0.0
    %4766 = vmatpush1.msra.mxu0 0.0
    %4767 = vmatprep.subr.mxu0 0.0
    %4768 = vmatpush1.msra.mxu0 0.0
    %4769 = vmatprep.subr.mxu0 0.0
    %4770 = vmatpush1.msra.mxu0 0.0
    %4771 = vmatprep.subr.mxu0 0.0
    %4772 = vmatpush1.msra.mxu0 0.0
    %4773 = vmatprep.subr.mxu0 0.0
    %4774 = vmatpush1.msra.mxu0 0.0
    %4775 = vmatprep.subr.mxu0 0.0
    %4776 = vmatpush1.msra.mxu0 0.0
    %4777 = vmatprep.subr.mxu0 0.0
    %4778 = vmatpush1.msra.mxu0 0.0
    %4779 = vmatprep.subr.mxu0 0.0
    %4780 = vmatpush1.msra.mxu0 0.0
    %4781 = vmatprep.subr.mxu0 0.0
    %4782 = vmatpush1.msra.mxu0 0.0
    %4783 = vmatprep.subr.mxu0 0.0
    %4784 = vmatpush1.msra.mxu0 0.0
    %4785 = vmatprep.subr.mxu0 0.0
    %4786 = vmatpush1.msra.mxu0 0.0
    %4787 = vmatprep.mubr.f32.mxu0 0.0
    %v4788 = vand.u32 %v3995, 4294901760
    %4789 = vmatmul.mubr.f32.gmra.mrb[0].mxu0 %v4788
    %v4790 = vpop.f32.mrb[0].mxu0
    %v4791 = vadd.f32 %v4616, %v4790
    %v4792 = vpop.f32.mrb[0].mxu0
    %4793 = vmatprep.mubr.f32.mxu0 0.0
    %v4794 = vand.u32 %v3996, 4294901760
    %4795 = vmatmul.mubr.f32.gmra.mrb[0].mxu0 %v4794
    %v4796 = vpop.f32.mrb[0].mxu0
    %v4797 = vadd.f32 %v4624, %v4796
    %v4798 = vpop.f32.mrb[0].mxu0
    %4799 = vmatprep.mubr.f32.mxu0 0.0
    %v4800 = vand.u32 %v3997, 4294901760
    %4801 = vmatmul.mubr.f32.gmra.mrb[0].mxu0 %v4800
    %v4802 = vpop.f32.mrb[0].mxu0
    %v4803 = vadd.f32 %v4632, %v4802
    %v4804 = vpop.f32.mrb[0].mxu0
    %4805 = vmatprep.mubr.f32.mxu0 0.0
    %v4806 = vand.u32 %v3998, 4294901760
    %4807 = vmatmul.mubr.f32.gmra.mrb[0].mxu0 %v4806
    %v4808 = vpop.f32.mrb[0].mxu0
    %v4809 = vadd.f32 %v4640, %v4808
    %v4810 = vpop.f32.mrb[0].mxu0
    %4811 = vmatprep.mubr.f32.mxu0 0.0
    %v4812 = vand.u32 %v3999, 4294901760
    %4813 = vmatmul.mubr.f32.gmra.mrb[0].mxu0 %v4812
    %v4814 = vpop.f32.mrb[0].mxu0
    %v4815 = vadd.f32 %v4648, %v4814
    %v4816 = vpop.f32.mrb[0].mxu0
    %4817 = vmatprep.mubr.f32.mxu0 0.0
    %v4818 = vand.u32 %v4000, 4294901760
    %4819 = vmatmul.mubr.f32.gmra.mrb[0].mxu0 %v4818
    %v4820 = vpop.f32.mrb[0].mxu0
    %v4821 = vadd.f32 %v4656, %v4820
    %v4822 = vpop.f32.mrb[0].mxu0
    %4823 = vmatprep.mubr.f32.mxu0 0.0
    %v4824 = vand.u32 %v4001, 4294901760
    %4825 = vmatmul.mubr.f32.gmra.mrb[0].mxu0 %v4824
    %v4826 = vpop.f32.mrb[0].mxu0
    %v4827 = vadd.f32 %v4664, %v4826
    %v4828 = vpop.f32.mrb[0].mxu0
    %4829 = vmatprep.mubr.f32.mxu0 0.0
    %v4830 = vand.u32 %v4002, 4294901760
    %4831 = vmatmul.mubr.f32.gmra.mrb[0].mxu0 %v4830
    %v4832 = vpop.f32.mrb[0].mxu0
    %v4833 = vadd.f32 %v4672, %v4832
    %v4834 = vpop.f32.mrb[0].mxu0
    %4835 = vdwg.mxu0
    %4836 = vmatprep.subr.mxu0 0.0
    %v4837 = vand.u32 %v4003, 4294901760
    %4838 = vmatpush1.msra.mxu0 %v4837
    %4839 = vmatprep.subr.mxu0 0.0
    %v4840 = vand.u32 %v4004, 4294901760
    %4841 = vmatpush1.msra.mxu0 %v4840
    %4842 = vmatprep.subr.mxu0 0.0
    %v4843 = vand.u32 %v4005, 4294901760
    %4844 = vmatpush1.msra.mxu0 %v4843
    %4845 = vmatprep.subr.mxu0 0.0
    %v4846 = vand.u32 %v4006, 4294901760
    %4847 = vmatpush1.msra.mxu0 %v4846
    %4848 = vmatprep.subr.mxu0 0.0
    %v4849 = vand.u32 %v4007, 4294901760
    %4850 = vmatpush1.msra.mxu0 %v4849
    %4851 = vmatprep.subr.mxu0 0.0
    %v4852 = vand.u32 %v4008, 4294901760
    %4853 = vmatpush1.msra.mxu0 %v4852
    %4854 = vmatprep.subr.mxu0 0.0
    %v4855 = vand.u32 %v4009, 4294901760
    %4856 = vmatpush1.msra.mxu0 %v4855
    %4857 = vmatprep.subr.mxu0 0.0
    %v4858 = vand.u32 %v4010, 4294901760
    %4859 = vmatpush1.msra.mxu0 %v4858
    %4860 = vmatprep.subr.mxu0 0.0
    %v4861 = vand.u32 %v4011, 4294901760
    %4862 = vmatpush1.msra.mxu0 %v4861
    %4863 = vmatprep.subr.mxu0 0.0
    %v4864 = vand.u32 %v4012, 4294901760
    %4865 = vmatpush1.msra.mxu0 %v4864
    %4866 = vmatprep.subr.mxu0 0.0
    %v4867 = vand.u32 %v4013, 4294901760
    %4868 = vmatpush1.msra.mxu0 %v4867
    %4869 = vmatprep.subr.mxu0 0.0
    %v4870 = vand.u32 %v4014, 4294901760
    %4871 = vmatpush1.msra.mxu0 %v4870
    %4872 = vmatprep.subr.mxu0 0.0
    %v4873 = vand.u32 %v4015, 4294901760
    %4874 = vmatpush1.msra.mxu0 %v4873
    %4875 = vmatprep.subr.mxu0 0.0
    %v4876 = vand.u32 %v4016, 4294901760
    %4877 = vmatpush1.msra.mxu0 %v4876
    %4878 = vmatprep.subr.mxu0 0.0
    %v4879 = vand.u32 %v4017, 4294901760
    %4880 = vmatpush1.msra.mxu0 %v4879
    %4881 = vmatprep.subr.mxu0 0.0
    %v4882 = vand.u32 %v4018, 4294901760
    %4883 = vmatpush1.msra.mxu0 %v4882
    %4884 = vmatprep.subr.mxu0 0.0
    %4885 = vmatpush1.msra.mxu0 0.0
    %4886 = vmatprep.subr.mxu0 0.0
    %4887 = vmatpush1.msra.mxu0 0.0
    %4888 = vmatprep.subr.mxu0 0.0
    %4889 = vmatpush1.msra.mxu0 0.0
    %4890 = vmatprep.subr.mxu0 0.0
    %4891 = vmatpush1.msra.mxu0 0.0
    %4892 = vmatprep.subr.mxu0 0.0
    %4893 = vmatpush1.msra.mxu0 0.0
    %4894 = vmatprep.subr.mxu0 0.0
    %4895 = vmatpush1.msra.mxu0 0.0
    %4896 = vmatprep.subr.mxu0 0.0
    %4897 = vmatpush1.msra.mxu0 0.0
    %4898 = vmatprep.subr.mxu0 0.0
    %4899 = vmatpush1.msra.mxu0 0.0
    %4900 = vmatprep.subr.mxu0 0.0
    %4901 = vmatpush1.msra.mxu0 0.0
    %4902 = vmatprep.subr.mxu0 0.0
    %4903 = vmatpush1.msra.mxu0 0.0
    %4904 = vmatprep.subr.mxu0 0.0
    %4905 = vmatpush1.msra.mxu0 0.0
    %4906 = vmatprep.subr.mxu0 0.0
    %4907 = vmatpush1.msra.mxu0 0.0
    %4908 = vmatprep.subr.mxu0 0.0
    %4909 = vmatpush1.msra.mxu0 0.0
    %4910 = vmatprep.subr.mxu0 0.0
    %4911 = vmatpush1.msra.mxu0 0.0
    %4912 = vmatprep.subr.mxu0 0.0
    %4913 = vmatpush1.msra.mxu0 0.0
    %4914 = vmatprep.subr.mxu0 0.0
    %4915 = vmatpush1.msra.mxu0 0.0
    %4916 = vmatprep.mubr.f32.mxu0 0.0
    %v4917 = vand.u32 %v3995, 4294901760
    %4918 = vmatmul.mubr.f32.gmra.mrb[0].mxu0 %v4917
    %v4919 = vpop.f32.mrb[0].mxu0
    %v4920 = vadd.f32 %v4791, %v4919
    %v4921 = vpop.f32.mrb[0].mxu0
    %4922 = vmatprep.mubr.f32.mxu0 0.0
    %v4923 = vand.u32 %v3996, 4294901760
    %4924 = vmatmul.mubr.f32.gmra.mrb[0].mxu0 %v4923
    %v4925 = vpop.f32.mrb[0].mxu0
    %v4926 = vadd.f32 %v4797, %v4925
    %v4927 = vpop.f32.mrb[0].mxu0
    %4928 = vmatprep.mubr.f32.mxu0 0.0
    %v4929 = vand.u32 %v3997, 4294901760
    %4930 = vmatmul.mubr.f32.gmra.mrb[0].mxu0 %v4929
    %v4931 = vpop.f32.mrb[0].mxu0
    %v4932 = vadd.f32 %v4803, %v4931
    %v4933 = vpop.f32.mrb[0].mxu0
    %4934 = vmatprep.mubr.f32.mxu0 0.0
    %v4935 = vand.u32 %v3998, 4294901760
    %4936 = vmatmul.mubr.f32.gmra.mrb[0].mxu0 %v4935
    %v4937 = vpop.f32.mrb[0].mxu0
    %v4938 = vadd.f32 %v4809, %v4937
    %v4939 = vpop.f32.mrb[0].mxu0
    %4940 = vmatprep.mubr.f32.mxu0 0.0
    %v4941 = vand.u32 %v3999, 4294901760
    %4942 = vmatmul.mubr.f32.gmra.mrb[0].mxu0 %v4941
    %v4943 = vpop.f32.mrb[0].mxu0
    %v4944 = vadd.f32 %v4815, %v4943
    %v4945 = vpop.f32.mrb[0].mxu0
    %4946 = vmatprep.mubr.f32.mxu0 0.0
    %v4947 = vand.u32 %v4000, 4294901760
    %4948 = vmatmul.mubr.f32.gmra.mrb[0].mxu0 %v4947
    %v4949 = vpop.f32.mrb[0].mxu0
    %v4950 = vadd.f32 %v4821, %v4949
    %v4951 = vpop.f32.mrb[0].mxu0
    %4952 = vmatprep.mubr.f32.mxu0 0.0
    %v4953 = vand.u32 %v4001, 4294901760
    %4954 = vmatmul.mubr.f32.gmra.mrb[0].mxu0 %v4953
    %v4955 = vpop.f32.mrb[0].mxu0
    %v4956 = vadd.f32 %v4827, %v4955
    %v4957 = vpop.f32.mrb[0].mxu0
    %4958 = vmatprep.mubr.f32.mxu0 0.0
    %v4959 = vand.u32 %v4002, 4294901760
    %4960 = vmatmul.mubr.f32.gmra.mrb[0].mxu0 %v4959
    %v4961 = vpop.f32.mrb[0].mxu0
    %v4962 = vadd.f32 %v4833, %v4961
    %v4963 = vpop.f32.mrb[0].mxu0
    %4964 = vdwg.mxu0
    %v4965 = vsel %vm67, %v4920, -inf
    %v4966 = vsel %vm67, %v4926, -inf
    %v4967 = vsel %vm67, %v4932, -inf
    %v4968 = vsel %vm67, %v4938, -inf
    %v4969 = vsel %vm67, %v4944, -inf
    %v4970 = vmax.f32 %v4965, %v4969
    %v4971 = vsel %vm67, %v4950, -inf
    %v4972 = vmax.f32 %v4966, %v4971
    %v4973 = vsel %vm67, %v4956, -inf
    %v4974 = vmax.f32 %v4967, %v4973
    %v4975 = vsel %vm67, %v4962, -inf
    %v4976 = vmax.f32 %v4968, %v4975
    %v4977 = vmax.f32 %v4970, %v4972
    %v4978 = vmax.f32 %v4974, %v4976
    %v4979 = vmax.f32 %v4977, %v4978
    %v4980 = vsub.f32 %v4920, %v4979
    %v4981 = vsub.f32 %v4926, %v4979
    %v4982 = vsub.f32 %v4932, %v4979
    %v4983 = vsub.f32 %v4938, %v4979
    %v4984 = vsub.f32 %v4944, %v4979
    %v4985 = vsub.f32 %v4950, %v4979
    %v4986 = vsub.f32 %v4956, %v4979
    %v4987 = vsub.f32 %v4962, %v4979
    %v4988 = vmul.f32 %v4980, 1.442695
    %v4989 = vpow.pop %v4988
    %v4990 = vmul.f32 %v4981, 1.442695
    %v4991 = vpow.pop %v4990
    %v4992 = vmul.f32 %v4982, 1.442695
    %v4993 = vpow.pop %v4992
    %v4994 = vmul.f32 %v4983, 1.442695
    %v4995 = vpow.pop %v4994
    %v4996 = vmul.f32 %v4984, 1.442695
    %v4997 = vpow.pop %v4996
    %v4998 = vmul.f32 %v4985, 1.442695
    %v4999 = vpow.pop %v4998
    %v5000 = vmul.f32 %v4986, 1.442695
    %v5001 = vpow.pop %v5000
    %v5002 = vmul.f32 %v4987, 1.442695
    %v5003 = vpow.pop %v5002
    %v5004 = vsel %vm67, %v4989, 0.0
    %v5005 = vsel %vm67, %v4991, 0.0
    %v5006 = vadd.f32 %v5004, %v5005
    %v5007 = vsel %vm67, %v4993, 0.0
    %v5008 = vadd.f32 %v5006, %v5007
    %v5009 = vsel %vm67, %v4995, 0.0
    %v5010 = vadd.f32 %v5008, %v5009
    %v5011 = vsel %vm67, %v4997, 0.0
    %v5012 = vadd.f32 %v5010, %v5011
    %v5013 = vsel %vm67, %v4999, 0.0
    %v5014 = vadd.f32 %v5012, %v5013
    %v5015 = vsel %vm67, %v5001, 0.0
    %v5016 = vadd.f32 %v5014, %v5015
    %v5017 = vsel %vm67, %v5003, 0.0
    %v5018 = vadd.f32 %v5016, %v5017
    %5027 = vrot.lane.b32.xlu0 %v3153, 96
    %v5028 = vpop.permute.xlu0 %5027
    %5029 = vrot.lane.b32.xlu0 %v3154, 96
    %v5030 = vpop.permute.xlu0 %5029
    %5031 = vrot.lane.b32.xlu0 %v3155, 96
    %v5032 = vpop.permute.xlu0 %5031
    %5033 = vrot.lane.b32.xlu0 %v3156, 96
    %v5034 = vpop.permute.xlu0 %5033
    %5035 = vrot.lane.b32.xlu0 %v3157, 96
    %v5036 = vpop.permute.xlu0 %5035
    %5037 = vrot.lane.b32.xlu0 %v3158, 96
    %v5038 = vpop.permute.xlu0 %5037
    %5039 = vrot.lane.b32.xlu0 %v3159, 96
    %v5040 = vpop.permute.xlu0 %5039
    %5041 = vrot.lane.b32.xlu0 %v3160, 96
    %v5042 = vpop.permute.xlu0 %5041
    %v5051 = vmul.f32 %v4989, %v5028
    %v5052 = vmul.f32 %v4991, %v5030
    %v5053 = vmul.f32 %v4993, %v5032
    %v5054 = vmul.f32 %v4995, %v5034
    %v5055 = vmul.f32 %v4997, %v5036
    %v5056 = vmul.f32 %v4999, %v5038
    %v5057 = vmul.f32 %v5001, %v5040
    %v5058 = vmul.f32 %v5003, %v5042
    %v5059 = vsel %vm67, %v5051, 0.0
    %v5060 = vsel %vm67, %v5052, 0.0
    %v5061 = vadd.f32 %v5059, %v5060
    %v5062 = vsel %vm67, %v5053, 0.0
    %v5063 = vadd.f32 %v5061, %v5062
    %v5064 = vsel %vm67, %v5054, 0.0
    %v5065 = vadd.f32 %v5063, %v5064
    %v5066 = vsel %vm67, %v5055, 0.0
    %v5067 = vadd.f32 %v5065, %v5066
    %v5068 = vsel %vm67, %v5056, 0.0
    %v5069 = vadd.f32 %v5067, %v5068
    %v5070 = vsel %vm67, %v5057, 0.0
    %v5071 = vadd.f32 %v5069, %v5070
    %v5072 = vsel %vm67, %v5058, 0.0
    %v5073 = vadd.f32 %v5071, %v5072
    %v5074 = vrcp.pop %v5018
    %v5075 = vmul.f32 %v5073, %v5074
    %5076 = vst.msk [vmem:[#allocation2] sm:$0xff] %vm67, %v5075
    // Predicated region
    $region42: #{tpu_custom_call.1} parent=1 // pred_check
      _
    $region43: #{tpu_custom_call.1} parent=1 // pred_check_branch
      %5078 = sbr.rel (0) target = $region45
    $region44: #{tpu_custom_call.1} parent=1 // pred_region
      %s5080 = ssub.s32 128, 128
      %5081 = vsyncadd [#allocation3], %s5080
      %s5083 = sshll.u32 [#allocation2], 4
      %s5084 = int_to_ptr.vmem [resolvable:$true] %s5083
      %5086 = dma.vmem_to_hbm [thread:$0]  %s5084, 128, %s10, [#allocation3]
    $region45: #{tpu_custom_call.1} parent=1 // pred_fallthru
      _
    // Predicated region
    $region46: #{tpu_custom_call.1} parent=1 // pred_check
      _
    $region47: #{tpu_custom_call.1} parent=1 // pred_check_branch
      %5088 = sbr.rel (0) target = $region49
    $region48: #{tpu_custom_call.1} parent=1 // pred_region
      %5089 = dma.done [#allocation3], 128
    $region49: #{tpu_custom_call.1} parent=1 // pred_fallthru
      _
    %5090 = vsyncpa [#allocation3], 1

</llo_original>
